<compile_context>
chip_gen: v6e
topology: v6e:2x2x1
jax: 0.10.0
libtpu: 0.0.40
codegen_flags: <defaults>
</compile_context>

<pallas_src>
import math
import functools

import jax
import jax.numpy as jnp
from jax.experimental import pallas as pl
from jax.experimental.pallas import tpu as pltpu


VMEM_LIMIT_BYTES = 48 * 1024 * 1024  # safe on v5e/v6e (128 MiB) and v7x (64 MiB)


# ---------------------------------------------------------------------------
# Pallas kernels
# ---------------------------------------------------------------------------

def decoder_stack_kernel(x_ref,
                         wq_ref, bq_ref, wk_ref, bk_ref, wv_ref, bv_ref,
                         wo_ref, bo_ref,
                         g1_ref, be1_ref, g2_ref, be2_ref,
                         w1_ref, b1_ref, w2_ref, b2_ref,
                         o_ref, *, num_heads, head_dim):
    """Fused decoder stack. grid = (batch, layer); o_ref carries the activation.

    x_ref/o_ref: (1, S, D).  Per-head weights: (1, H, D, hd)/(1, H, hd, D).
    """
    layer = pl.program_id(1)

    # Load the initial activation into the resident output block at layer 0.
    @pl.when(layer == 0)
    def _():
        o_ref[0] = x_ref[0]

    x = o_ref[0]                              # (S, D), resident across layers
    S, D = x.shape
    H, hd = num_heads, head_dim
    eps = 1e-5

    def layernorm(v, g, b):                   # g, b: (1, D)
        mu = jnp.mean(v, axis=-1, keepdims=True)
        var = jnp.mean((v - mu) ** 2, axis=-1, keepdims=True)
        return (v - mu) * jax.lax.rsqrt(var + eps) * g + b

    # ---- self-attention block (pre-norm), all heads batched ----
    xn = layernorm(x, g1_ref[0], be1_ref[0])          # (S, D)
    xb = jnp.broadcast_to(xn, (H, S, D))              # head-batched view

    q = jnp.einsum('hsd,hdf->hsf', xb, wq_ref[0],
                   preferred_element_type=jnp.float32) + bq_ref[0]   # (H, S, hd)
    k = jnp.einsum('hsd,hdf->hsf', xb, wk_ref[0],
                   preferred_element_type=jnp.float32) + bk_ref[0]
    v = jnp.einsum('hsd,hdf->hsf', xb, wv_ref[0],
                   preferred_element_type=jnp.float32) + bv_ref[0]

    # In-kernel additive causal mask (0 on/below diagonal, -1e9 above).
    row = jax.lax.broadcasted_iota(jnp.int32, (S, S), 0)
    col = jax.lax.broadcasted_iota(jnp.int32, (S, S), 1)
    mask = jnp.where(col <= row, 0.0, -1e9).astype(jnp.float32)

    scale = 1.0 / math.sqrt(hd)               # folded into q
    s = jnp.einsum('hqd,hkd->hqk', q * scale, k,
                   preferred_element_type=jnp.float32)               # (H, S, S)
    s = s + mask[None]
    m = jnp.max(s, axis=-1, keepdims=True)
    e = jnp.exp(s - m)
    p = e * pl.reciprocal(jnp.sum(e, axis=-1, keepdims=True), approx=True)
    attn = jnp.einsum('hqk,hkd->hqd', p, v,
                      preferred_element_type=jnp.float32)            # (H, S, hd)

    # Head merge folded into the output projection: sum_h attn_h @ Wo_h.
    proj = jnp.einsum('hsf,hfd->hsd', attn, wo_ref[0],
                      preferred_element_type=jnp.float32)            # (H, S, D)
    attn_out = jnp.sum(proj, axis=0) + bo_ref[0]                     # (S, D)
    x1 = x + attn_out                          # residual (dropout == identity)

    # ---- feed-forward block (pre-norm) ----
    xn2 = layernorm(x1, g2_ref[0], be2_ref[0])
    h1 = jnp.dot(xn2, w1_ref[0], preferred_element_type=jnp.float32) + b1_ref[0]
    h1 = jnp.maximum(h1, 0.0)                  # ReLU
    ff = jnp.dot(h1, w2_ref[0], preferred_element_type=jnp.float32) + b2_ref[0]

    o_ref[0] = x1 + ff                         # residual (dropout == identity)


def final_linear_kernel(x_ref, w_ref, b_ref, o_ref):
    """Final vocab projection tile: (S, D) @ (D, TV) + (1, TV)."""
    o_ref[0] = jnp.dot(x_ref[0], w_ref[...],
                       preferred_element_type=jnp.float32) + b_ref[...]


# ---------------------------------------------------------------------------
# Wrappers (pallas_call plumbing)
# ---------------------------------------------------------------------------

def stack_layer_params(layers, num_heads):
    """Stack per-layer dicts into layer-indexed arrays; split Q/K/V/O per head."""
    H = num_heads
    D = layers[0]["wq"].shape[0]
    hd = D // H
    L = len(layers)

    def st(name):
        return jnp.stack([lyr[name] for lyr in layers], axis=0)

    def head_w(name):                 # (L, D, D) -> (L, H, D, hd)
        return st(name).reshape(L, D, H, hd).transpose(0, 2, 1, 3)

    def head_b(name):                 # (L, 1, D) -> (L, H, 1, hd)
        return st(name).reshape(L, 1, H, hd).transpose(0, 2, 1, 3)

    return {
        "wq": head_w("wq"), "bq": head_b("bq"),
        "wk": head_w("wk"), "bk": head_b("bk"),
        "wv": head_w("wv"), "bv": head_b("bv"),
        "wo": st("wo").reshape(L, H, hd, D),          # input features are head-major
        "bo": st("bo"),
        "g1": st("g1"), "be1": st("be1"),
        "g2": st("g2"), "be2": st("be2"),
        "w1": st("w1"), "b1": st("b1"),
        "w2": st("w2"), "b2": st("b2"),
    }


def run_decoder_stack(x, sp, num_heads):
    B, S, D = x.shape
    L = sp["wq"].shape[0]
    hd = D // num_heads

    kern = functools.partial(decoder_stack_kernel,
                             num_heads=num_heads, head_dim=hd)

    def layer_spec(arr):
        """One layer's slab per grid step, indexed by the layer grid coordinate."""
        rest = arr.shape[1:]
        n = len(rest)
        return pl.BlockSpec((1,) + rest, lambda b, l, _n=n: (l,) + (0,) * _n)

    args = [x,
            sp["wq"], sp["bq"], sp["wk"], sp["bk"], sp["wv"], sp["bv"],
            sp["wo"], sp["bo"],
            sp["g1"], sp["be1"], sp["g2"], sp["be2"],
            sp["w1"], sp["b1"], sp["w2"], sp["b2"]]
    in_specs = [pl.BlockSpec((1, S, D), lambda b, l: (b, 0, 0))] + \
               [layer_spec(a) for a in args[1:]]

    return pl.pallas_call(
        kern,
        out_shape=jax.ShapeDtypeStruct((B, S, D), jnp.float32),
        grid=(B, L),
        in_specs=in_specs,
        out_specs=pl.BlockSpec((1, S, D), lambda b, l: (b, 0, 0)),
        compiler_params=pltpu.CompilerParams(
            dimension_semantics=("parallel", "arbitrary"),
            vmem_limit_bytes=VMEM_LIMIT_BYTES),
    )(*args)


def _vocab_tile(V):
    for t in (1024, 512, 256, 128):
        if V % t == 0:
            return t
    return V


def run_final_linear(x, wf, bf):
    B, S, D = x.shape
    V = wf.shape[1]
    TV = _vocab_tile(V)
    return pl.pallas_call(
        final_linear_kernel,
        out_shape=jax.ShapeDtypeStruct((B, S, V), jnp.float32),
        grid=(B, V // TV),
        in_specs=[pl.BlockSpec((1, S, D), lambda b, j: (b, 0, 0)),
                  pl.BlockSpec((D, TV), lambda b, j: (0, j)),
                  pl.BlockSpec((1, TV), lambda b, j: (0, j))],
        out_specs=pl.BlockSpec((1, S, TV), lambda b, j: (b, 0, j)),
        compiler_params=pltpu.CompilerParams(
            dimension_semantics=("parallel", "parallel"),
            vmem_limit_bytes=VMEM_LIMIT_BYTES),
    )(x, wf, bf)


def transformer_forward(src, params, num_heads):
    """src: (B, S) int32 token ids -> logits (B, S, vocab)."""
    B, S = src.shape
    D = params["emb"].shape[1]
    # Embedding + positional encoding (cheap glue, plain JAX gather).
    x = params["emb"][src] * math.sqrt(D)
    x = x + params["pos"][jnp.arange(S)][None, :, :]
    # TODO(synk): dropout is a no-op here (inference semantics).
    stacked = stack_layer_params(params["layers"], num_heads)
    x = run_decoder_stack(x, stacked, num_heads)
    return run_final_linear(x, params["wf"], params["bf"])


# ---------------------------------------------------------------------------
# Pure-JAX reference (for correctness check)
# ---------------------------------------------------------------------------

def causal_mask(S):
    i = jnp.arange(S)[:, None]
    j = jnp.arange(S)[None, :]
    return jnp.where(j <= i, 0.0, -1e9).astype(jnp.float32)


def _ref_ln(v, g, b, eps=1e-5):
    mu = jnp.mean(v, axis=-1, keepdims=True)
    var = jnp.mean((v - mu) ** 2, axis=-1, keepdims=True)
    return (v - mu) * jax.lax.rsqrt(var + eps) * g + b


def ref_forward(src, params, num_heads):
    B, S = src.shape
    D = params["emb"].shape[1]
    hd = D // num_heads
    x = params["emb"][src] * math.sqrt(D) + params["pos"][jnp.arange(S)][None]
    mask = causal_mask(S)[None, None]          # (1,1,S,S)
    for p in params["layers"]:
        xn = _ref_ln(x, p["g1"], p["be1"])
        q = xn @ p["wq"] + p["bq"]
        k = xn @ p["wk"] + p["bk"]
        v = xn @ p["wv"] + p["bv"]
        q = q.reshape(B, S, num_heads, hd).transpose(0, 2, 1, 3)
        k = k.reshape(B, S, num_heads, hd).transpose(0, 2, 1, 3)
        v = v.reshape(B, S, num_heads, hd).transpose(0, 2, 1, 3)
        s = jnp.einsum("bhqd,bhkd->bhqk", q, k) / math.sqrt(hd) + mask
        pr = jax.nn.softmax(s, axis=-1)
        a = jnp.einsum("bhqk,bhkd->bhqd", pr, v)
        a = a.transpose(0, 2, 1, 3).reshape(B, S, D)
        x = x + (a @ p["wo"] + p["bo"])
        xn2 = _ref_ln(x, p["g2"], p["be2"])
        h1 = jnp.maximum(xn2 @ p["w1"] + p["b1"], 0.0)
        x = x + (h1 @ p["w2"] + p["b2"])
    return x @ params["wf"] + params["bf"]


# ---------------------------------------------------------------------------
# Deterministic parameter init + main
# ---------------------------------------------------------------------------

def init_params(key, num_layers, d_model, d_ff, vocab_size, max_seq_len):
    def nrm(k, shape, scale=0.02):
        return (scale * jax.random.normal(k, shape)).astype(jnp.float32)

    keys = jax.random.split(key, 3 + num_layers)
    params = {
        "emb": nrm(keys[0], (vocab_size, d_model), 1.0),
        "pos": nrm(keys[1], (max_seq_len, d_model), 0.1),
        "wf": nrm(keys[2], (d_model, vocab_size)),
        "bf": jnp.zeros((1, vocab_size), jnp.float32),
        "layers": [],
    }
    for li in range(num_layers):
        ks = jax.random.split(keys[3 + li], 12)
        layer = {
            "wq": nrm(ks[0], (d_model, d_model)), "bq": nrm(ks[1], (1, d_model), 0.01),
            "wk": nrm(ks[2], (d_model, d_model)), "bk": nrm(ks[3], (1, d_model), 0.01),
            "wv": nrm(ks[4], (d_model, d_model)), "bv": nrm(ks[5], (1, d_model), 0.01),
            "wo": nrm(ks[6], (d_model, d_model)), "bo": nrm(ks[7], (1, d_model), 0.01),
            "g1": jnp.ones((1, d_model), jnp.float32),
            "be1": jnp.zeros((1, d_model), jnp.float32),
            "g2": jnp.ones((1, d_model), jnp.float32),
            "be2": jnp.zeros((1, d_model), jnp.float32),
            "w1": nrm(ks[8], (d_model, d_ff)), "b1": nrm(ks[9], (1, d_ff), 0.01),
            "w2": nrm(ks[10], (d_ff, d_model)), "b2": nrm(ks[11], (1, d_model), 0.01),
        }
        params["layers"].append(layer)
    return params


if __name__ == "__main__":
    # Small, module-consistent shapes.
    num_layers = 2
    d_model = 32
    num_heads = 4
    d_ff = 64
    vocab_size = 64
    max_seq_len = 16
    batch = 2
    seq_len = 8

    key = jax.random.PRNGKey(0)
    k_param, k_tok = jax.random.split(key)
    params = init_params(k_param, num_layers, d_model, d_ff, vocab_size, max_seq_len)
    src = jax.random.randint(k_tok, (batch, seq_len), 0, vocab_size, dtype=jnp.int32)

    logits = transformer_forward(src, params, num_heads)
    logits = jax.block_until_ready(logits)

    ref = jax.block_until_ready(ref_forward(src, params, num_heads))
    assert logits.shape == (batch, seq_len, vocab_size)
    assert jnp.allclose(logits, ref, rtol=1e-3, atol=1e-3), \
        f"max abs err {jnp.max(jnp.abs(logits - ref))}"

    print("KERNEL_OK")
</pallas_src>

<mosaic_0001>
module attributes {stable_mosaic.version = 11 : i64} {
  func.func @decoder_stack_kernel(%arg0: i32, %arg1: i32, %arg2: memref<1x8x32xf32, #tpu.memory_space<vmem>>, %arg3: memref<1x4x32x8xf32, #tpu.memory_space<vmem>>, %arg4: memref<1x4x1x8xf32, #tpu.memory_space<vmem>>, %arg5: memref<1x4x32x8xf32, #tpu.memory_space<vmem>>, %arg6: memref<1x4x1x8xf32, #tpu.memory_space<vmem>>, %arg7: memref<1x4x32x8xf32, #tpu.memory_space<vmem>>, %arg8: memref<1x4x1x8xf32, #tpu.memory_space<vmem>>, %arg9: memref<1x4x8x32xf32, #tpu.memory_space<vmem>>, %arg10: memref<1x1x32xf32, #tpu.memory_space<vmem>>, %arg11: memref<1x1x32xf32, #tpu.memory_space<vmem>>, %arg12: memref<1x1x32xf32, #tpu.memory_space<vmem>>, %arg13: memref<1x1x32xf32, #tpu.memory_space<vmem>>, %arg14: memref<1x1x32xf32, #tpu.memory_space<vmem>>, %arg15: memref<1x32x64xf32, #tpu.memory_space<vmem>>, %arg16: memref<1x1x64xf32, #tpu.memory_space<vmem>>, %arg17: memref<1x64x32xf32, #tpu.memory_space<vmem>>, %arg18: memref<1x1x32xf32, #tpu.memory_space<vmem>>, %arg19: memref<1x8x32xf32, #tpu.memory_space<vmem>>) attributes {dimension_semantics = [#tpu.dimension_semantics<parallel>, #tpu.dimension_semantics<arbitrary>], iteration_bounds = array<i64: 2, 2>, scalar_prefetch = 0 : i64, scratch_operands = 0 : i64, tpu.core_type = #tpu.core_type<tc>, window_params = [{transform_indices = @transform_0, window_bounds = array<i64: 1, 8, 32>}, {transform_indices = @transform_1, window_bounds = array<i64: 1, 4, 32, 8>}, {transform_indices = @transform_2, window_bounds = array<i64: 1, 4, 1, 8>}, {transform_indices = @transform_3, window_bounds = array<i64: 1, 4, 32, 8>}, {transform_indices = @transform_4, window_bounds = array<i64: 1, 4, 1, 8>}, {transform_indices = @transform_5, window_bounds = array<i64: 1, 4, 32, 8>}, {transform_indices = @transform_6, window_bounds = array<i64: 1, 4, 1, 8>}, {transform_indices = @transform_7, window_bounds = array<i64: 1, 4, 8, 32>}, {transform_indices = @transform_8, window_bounds = array<i64: 1, 1, 32>}, {transform_indices = @transform_9, window_bounds = array<i64: 1, 1, 32>}, {transform_indices = @transform_10, window_bounds = array<i64: 1, 1, 32>}, {transform_indices = @transform_11, window_bounds = array<i64: 1, 1, 32>}, {transform_indices = @transform_12, window_bounds = array<i64: 1, 1, 32>}, {transform_indices = @transform_13, window_bounds = array<i64: 1, 32, 64>}, {transform_indices = @transform_14, window_bounds = array<i64: 1, 1, 64>}, {transform_indices = @transform_15, window_bounds = array<i64: 1, 64, 32>}, {transform_indices = @transform_16, window_bounds = array<i64: 1, 1, 32>}, {transform_indices = @transform_17, window_bounds = array<i64: 1, 8, 32>}]} {
    %c0_i32 = arith.constant 0 : i32
    %0 = arith.cmpi eq, %arg1, %c0_i32 : i32
    %1 = arith.extui %0 : i1 to i32
    %c0_i32_0 = arith.constant 0 : i32
    %2 = arith.cmpi ne, %1, %c0_i32_0 : i32
    scf.if %2 {
      %c0_85 = arith.constant 0 : index
      %c0_86 = arith.constant 0 : index
      %c0_87 = arith.constant 0 : index
      %132 = vector.load %arg2[%c0_85, %c0_86, %c0_87] : memref<1x8x32xf32, #tpu.memory_space<vmem>>, vector<1x8x32xf32>
      %133 = vector.shape_cast %132 : vector<1x8x32xf32> to vector<8x32xf32>
      %c0_88 = arith.constant 0 : index
      %c0_89 = arith.constant 0 : index
      %c0_90 = arith.constant 0 : index
      %134 = vector.load %arg19[%c0_88, %c0_89, %c0_90] : memref<1x8x32xf32, #tpu.memory_space<vmem>>, vector<1x8x32xf32>
      %135 = vector.shape_cast %134 : vector<1x8x32xf32> to vector<8x32xf32>
      %136 = vector.shape_cast %133 : vector<8x32xf32> to vector<1x8x32xf32>
      tpu.vector_store %arg19[%c0_88, %c0_89, %c0_90], %136 {strides = array<i32>} : memref<1x8x32xf32, #tpu.memory_space<vmem>>, vector<1x8x32xf32>,
    } else {
    }
    %c0 = arith.constant 0 : index
    %c0_1 = arith.constant 0 : index
    %c0_2 = arith.constant 0 : index
    %3 = vector.load %arg19[%c0, %c0_1, %c0_2] : memref<1x8x32xf32, #tpu.memory_space<vmem>>, vector<1x8x32xf32>
    %4 = vector.shape_cast %3 : vector<1x8x32xf32> to vector<8x32xf32>
    %c0_3 = arith.constant 0 : index
    %c0_4 = arith.constant 0 : index
    %c0_5 = arith.constant 0 : index
    %5 = vector.load %arg11[%c0_3, %c0_4, %c0_5] : memref<1x1x32xf32, #tpu.memory_space<vmem>>, vector<1x1x32xf32>
    %6 = vector.shape_cast %5 : vector<1x1x32xf32> to vector<1x32xf32>
    %c0_6 = arith.constant 0 : index
    %c0_7 = arith.constant 0 : index
    %c0_8 = arith.constant 0 : index
    %7 = vector.load %arg12[%c0_6, %c0_7, %c0_8] : memref<1x1x32xf32, #tpu.memory_space<vmem>>, vector<1x1x32xf32>
    %8 = vector.shape_cast %7 : vector<1x1x32xf32> to vector<1x32xf32>
    %cst = arith.constant dense<0.000000e+00> : vector<8xf32>
    %9 = vector.multi_reduction <add>, %4, %cst [1] : vector<8x32xf32> to vector<8xf32>
    %10 = vector.shape_cast %9 : vector<8xf32> to vector<8x1xf32>
    %cst_9 = arith.constant 3.200000e+01 : f32
    %11 = vector.broadcast %cst_9 : f32 to vector<8x1xf32>
    %12 = arith.divf %10, %11 : vector<8x1xf32>
    %13 = vector.broadcast %12 : vector<8x1xf32> to vector<8x32xf32>
    %14 = arith.subf %4, %13 : vector<8x32xf32>
    %15 = arith.mulf %14, %14 : vector<8x32xf32>
    %cst_10 = arith.constant dense<0.000000e+00> : vector<8xf32>
    %16 = vector.multi_reduction <add>, %15, %cst_10 [1] : vector<8x32xf32> to vector<8xf32>
    %17 = vector.shape_cast %16 : vector<8xf32> to vector<8x1xf32>
    %cst_11 = arith.constant 3.200000e+01 : f32
    %18 = vector.broadcast %cst_11 : f32 to vector<8x1xf32>
    %19 = arith.divf %17, %18 : vector<8x1xf32>
    %20 = vector.broadcast %12 : vector<8x1xf32> to vector<8x32xf32>
    %21 = arith.subf %4, %20 : vector<8x32xf32>
    %cst_12 = arith.constant 9.99999974E-6 : f32
    %22 = vector.broadcast %cst_12 : f32 to vector<8x1xf32>
    %23 = arith.addf %19, %22 : vector<8x1xf32>
    %24 = math.rsqrt %23 : vector<8x1xf32>
    %25 = vector.broadcast %24 : vector<8x1xf32> to vector<8x32xf32>
    %26 = arith.mulf %21, %25 : vector<8x32xf32>
    %27 = vector.broadcast %6 : vector<1x32xf32> to vector<8x32xf32>
    %28 = arith.mulf %26, %27 : vector<8x32xf32>
    %29 = vector.broadcast %8 : vector<1x32xf32> to vector<8x32xf32>
    %30 = arith.addf %28, %29 : vector<8x32xf32>
    %31 = vector.shape_cast %30 : vector<8x32xf32> to vector<1x8x32xf32>
    %32 = vector.broadcast %31 : vector<1x8x32xf32> to vector<4x8x32xf32>
    %c0_13 = arith.constant 0 : index
    %c0_14 = arith.constant 0 : index
    %c0_15 = arith.constant 0 : index
    %c0_16 = arith.constant 0 : index
    %33 = vector.load %arg3[%c0_13, %c0_14, %c0_15, %c0_16] : memref<1x4x32x8xf32, #tpu.memory_space<vmem>>, vector<1x4x32x8xf32>
    %34 = vector.shape_cast %33 : vector<1x4x32x8xf32> to vector<4x32x8xf32>
    "tpu.trace_start"() <{level = 10 : i32, message = "hsd,hdf->hsf"}> : () -> ()
    %cst_17 = arith.constant dense<0.000000e+00> : vector<4x8x8xf32>
    %35 = tpu.matmul %32, %34, %cst_17 {dimension_numbers = #tpu.dot_dimension_numbers<[2], [1], [1], [2], [0, 0, 0, 1, 1, 2], [0], [0]>} : vector<4x8x32xf32>, vector<4x32x8xf32>, vector<4x8x8xf32> -> vector<4x8x8xf32>
    "tpu.trace_stop"() : () -> ()
    %c0_18 = arith.constant 0 : index
    %c0_19 = arith.constant 0 : index
    %c0_20 = arith.constant 0 : index
    %c0_21 = arith.constant 0 : index
    %36 = vector.load %arg4[%c0_18, %c0_19, %c0_20, %c0_21] : memref<1x4x1x8xf32, #tpu.memory_space<vmem>>, vector<1x4x1x8xf32>
    %37 = vector.shape_cast %36 : vector<1x4x1x8xf32> to vector<4x1x8xf32>
    %38 = vector.broadcast %37 : vector<4x1x8xf32> to vector<4x8x8xf32>
    %39 = arith.addf %35, %38 : vector<4x8x8xf32>
    %c0_22 = arith.constant 0 : index
    %c0_23 = arith.constant 0 : index
    %c0_24 = arith.constant 0 : index
    %c0_25 = arith.constant 0 : index
    %40 = vector.load %arg5[%c0_22, %c0_23, %c0_24, %c0_25] : memref<1x4x32x8xf32, #tpu.memory_space<vmem>>, vector<1x4x32x8xf32>
    %41 = vector.shape_cast %40 : vector<1x4x32x8xf32> to vector<4x32x8xf32>
    "tpu.trace_start"() <{level = 10 : i32, message = "hsd,hdf->hsf"}> : () -> ()
    %cst_26 = arith.constant dense<0.000000e+00> : vector<4x8x8xf32>
    %42 = tpu.matmul %32, %41, %cst_26 {dimension_numbers = #tpu.dot_dimension_numbers<[2], [1], [1], [2], [0, 0, 0, 1, 1, 2], [0], [0]>} : vector<4x8x32xf32>, vector<4x32x8xf32>, vector<4x8x8xf32> -> vector<4x8x8xf32>
    "tpu.trace_stop"() : () -> ()
    %c0_27 = arith.constant 0 : index
    %c0_28 = arith.constant 0 : index
    %c0_29 = arith.constant 0 : index
    %c0_30 = arith.constant 0 : index
    %43 = vector.load %arg6[%c0_27, %c0_28, %c0_29, %c0_30] : memref<1x4x1x8xf32, #tpu.memory_space<vmem>>, vector<1x4x1x8xf32>
    %44 = vector.shape_cast %43 : vector<1x4x1x8xf32> to vector<4x1x8xf32>
    %45 = vector.broadcast %44 : vector<4x1x8xf32> to vector<4x8x8xf32>
    %46 = arith.addf %42, %45 : vector<4x8x8xf32>
    %c0_31 = arith.constant 0 : index
    %c0_32 = arith.constant 0 : index
    %c0_33 = arith.constant 0 : index
    %c0_34 = arith.constant 0 : index
    %47 = vector.load %arg7[%c0_31, %c0_32, %c0_33, %c0_34] : memref<1x4x32x8xf32, #tpu.memory_space<vmem>>, vector<1x4x32x8xf32>
    %48 = vector.shape_cast %47 : vector<1x4x32x8xf32> to vector<4x32x8xf32>
    "tpu.trace_start"() <{level = 10 : i32, message = "hsd,hdf->hsf"}> : () -> ()
    %cst_35 = arith.constant dense<0.000000e+00> : vector<4x8x8xf32>
    %49 = tpu.matmul %32, %48, %cst_35 {dimension_numbers = #tpu.dot_dimension_numbers<[2], [1], [1], [2], [0, 0, 0, 1, 1, 2], [0], [0]>} : vector<4x8x32xf32>, vector<4x32x8xf32>, vector<4x8x8xf32> -> vector<4x8x8xf32>
    "tpu.trace_stop"() : () -> ()
    %c0_36 = arith.constant 0 : index
    %c0_37 = arith.constant 0 : index
    %c0_38 = arith.constant 0 : index
    %c0_39 = arith.constant 0 : index
    %50 = vector.load %arg8[%c0_36, %c0_37, %c0_38, %c0_39] : memref<1x4x1x8xf32, #tpu.memory_space<vmem>>, vector<1x4x1x8xf32>
    %51 = vector.shape_cast %50 : vector<1x4x1x8xf32> to vector<4x1x8xf32>
    %52 = vector.broadcast %51 : vector<4x1x8xf32> to vector<4x8x8xf32>
    %53 = arith.addf %49, %52 : vector<4x8x8xf32>
    %54 = tpu.iota {dimensions = array<i32: 0>} : vector<8x8xi32>
    %55 = tpu.iota {dimensions = array<i32: 1>} : vector<8x8xi32>
    %56 = arith.cmpi sle, %55, %54 : vector<8x8xi32>
    %cst_40 = arith.constant 0.000000e+00 : f32
    %cst_41 = arith.constant -1.000000e+09 : f32
    %57 = vector.broadcast %cst_40 : f32 to vector<8x8xf32>
    %58 = vector.broadcast %cst_41 : f32 to vector<8x8xf32>
    %59 = arith.select %56, %57, %58 : vector<8x8xi1>, vector<8x8xf32>
    %cst_42 = arith.constant 0.353553385 : f32
    %60 = vector.broadcast %cst_42 : f32 to vector<4x8x8xf32>
    %61 = arith.mulf %39, %60 : vector<4x8x8xf32>
    "tpu.trace_start"() <{level = 10 : i32, message = "hqd,hkd->hqk"}> : () -> ()
    %cst_43 = arith.constant dense<0.000000e+00> : vector<4x8x8xf32>
    %62 = tpu.matmul %61, %46, %cst_43 {dimension_numbers = #tpu.dot_dimension_numbers<[2], [2], [1], [1], [0, 0, 0, 1, 1, 1], [0], [0]>} : vector<4x8x8xf32>, vector<4x8x8xf32>, vector<4x8x8xf32> -> vector<4x8x8xf32>
    "tpu.trace_stop"() : () -> ()
    %63 = vector.shape_cast %59 : vector<8x8xf32> to vector<1x8x8xf32>
    %64 = vector.broadcast %63 : vector<1x8x8xf32> to vector<4x8x8xf32>
    %65 = arith.addf %62, %64 : vector<4x8x8xf32>
    %cst_44 = arith.constant dense<0xFF800000> : vector<4x8xf32>
    %66 = vector.multi_reduction <maximumf>, %65, %cst_44 [2] : vector<4x8x8xf32> to vector<4x8xf32>
    %67 = vector.shape_cast %66 : vector<4x8xf32> to vector<4x8x1xf32>
    %68 = vector.broadcast %67 : vector<4x8x1xf32> to vector<4x8x8xf32>
    %69 = arith.subf %65, %68 : vector<4x8x8xf32>
    %70 = math.exp %69 : vector<4x8x8xf32>
    %cst_45 = arith.constant dense<0.000000e+00> : vector<4x8xf32>
    %71 = vector.multi_reduction <add>, %70, %cst_45 [2] : vector<4x8x8xf32> to vector<4x8xf32>
    %72 = vector.shape_cast %71 : vector<4x8xf32> to vector<4x8x1xf32>
    %73 = tpu.reciprocal %72 {approx = true} : vector<4x8x1xf32> -> vector<4x8x1xf32>
    %74 = vector.broadcast %73 : vector<4x8x1xf32> to vector<4x8x8xf32>
    %75 = arith.mulf %70, %74 : vector<4x8x8xf32>
    "tpu.trace_start"() <{level = 10 : i32, message = "hqk,hkd->hqd"}> : () -> ()
    %cst_46 = arith.constant dense<0.000000e+00> : vector<4x8x8xf32>
    %76 = tpu.matmul %75, %53, %cst_46 {dimension_numbers = #tpu.dot_dimension_numbers<[2], [1], [1], [2], [0, 0, 0, 1, 1, 2], [0], [0]>} : vector<4x8x8xf32>, vector<4x8x8xf32>, vector<4x8x8xf32> -> vector<4x8x8xf32>
    "tpu.trace_stop"() : () -> ()
    %c0_47 = arith.constant 0 : index
    %c0_48 = arith.constant 0 : index
    %c0_49 = arith.constant 0 : index
    %c0_50 = arith.constant 0 : index
    %77 = vector.load %arg9[%c0_47, %c0_48, %c0_49, %c0_50] : memref<1x4x8x32xf32, #tpu.memory_space<vmem>>, vector<1x4x8x32xf32>
    %78 = vector.shape_cast %77 : vector<1x4x8x32xf32> to vector<4x8x32xf32>
    "tpu.trace_start"() <{level = 10 : i32, message = "hsf,hfd->hsd"}> : () -> ()
    %cst_51 = arith.constant dense<0.000000e+00> : vector<4x8x32xf32>
    %79 = tpu.matmul %76, %78, %cst_51 {dimension_numbers = #tpu.dot_dimension_numbers<[2], [1], [1], [2], [0, 0, 0, 1, 1, 2], [0], [0]>} : vector<4x8x8xf32>, vector<4x8x32xf32>, vector<4x8x32xf32> -> vector<4x8x32xf32>
    "tpu.trace_stop"() : () -> ()
    %cst_52 = arith.constant dense<0.000000e+00> : vector<8x32xf32>
    %80 = vector.multi_reduction <add>, %79, %cst_52 [0] : vector<4x8x32xf32> to vector<8x32xf32>
    %c0_53 = arith.constant 0 : index
    %c0_54 = arith.constant 0 : index
    %c0_55 = arith.constant 0 : index
    %81 = vector.load %arg10[%c0_53, %c0_54, %c0_55] : memref<1x1x32xf32, #tpu.memory_space<vmem>>, vector<1x1x32xf32>
    %82 = vector.shape_cast %81 : vector<1x1x32xf32> to vector<1x32xf32>
    %83 = vector.broadcast %82 : vector<1x32xf32> to vector<8x32xf32>
    %84 = arith.addf %80, %83 : vector<8x32xf32>
    %85 = arith.addf %4, %84 : vector<8x32xf32>
    %c0_56 = arith.constant 0 : index
    %c0_57 = arith.constant 0 : index
    %c0_58 = arith.constant 0 : index
    %86 = vector.load %arg13[%c0_56, %c0_57, %c0_58] : memref<1x1x32xf32, #tpu.memory_space<vmem>>, vector<1x1x32xf32>
    %87 = vector.shape_cast %86 : vector<1x1x32xf32> to vector<1x32xf32>
    %c0_59 = arith.constant 0 : index
    %c0_60 = arith.constant 0 : index
    %c0_61 = arith.constant 0 : index
    %88 = vector.load %arg14[%c0_59, %c0_60, %c0_61] : memref<1x1x32xf32, #tpu.memory_space<vmem>>, vector<1x1x32xf32>
    %89 = vector.shape_cast %88 : vector<1x1x32xf32> to vector<1x32xf32>
    %cst_62 = arith.constant dense<0.000000e+00> : vector<8xf32>
    %90 = vector.multi_reduction <add>, %85, %cst_62 [1] : vector<8x32xf32> to vector<8xf32>
    %91 = vector.shape_cast %90 : vector<8xf32> to vector<8x1xf32>
    %cst_63 = arith.constant 3.200000e+01 : f32
    %92 = vector.broadcast %cst_63 : f32 to vector<8x1xf32>
    %93 = arith.divf %91, %92 : vector<8x1xf32>
    %94 = vector.broadcast %93 : vector<8x1xf32> to vector<8x32xf32>
    %95 = arith.subf %85, %94 : vector<8x32xf32>
    %96 = arith.mulf %95, %95 : vector<8x32xf32>
    %cst_64 = arith.constant dense<0.000000e+00> : vector<8xf32>
    %97 = vector.multi_reduction <add>, %96, %cst_64 [1] : vector<8x32xf32> to vector<8xf32>
    %98 = vector.shape_cast %97 : vector<8xf32> to vector<8x1xf32>
    %cst_65 = arith.constant 3.200000e+01 : f32
    %99 = vector.broadcast %cst_65 : f32 to vector<8x1xf32>
    %100 = arith.divf %98, %99 : vector<8x1xf32>
    %101 = vector.broadcast %93 : vector<8x1xf32> to vector<8x32xf32>
    %102 = arith.subf %85, %101 : vector<8x32xf32>
    %cst_66 = arith.constant 9.99999974E-6 : f32
    %103 = vector.broadcast %cst_66 : f32 to vector<8x1xf32>
    %104 = arith.addf %100, %103 : vector<8x1xf32>
    %105 = math.rsqrt %104 : vector<8x1xf32>
    %106 = vector.broadcast %105 : vector<8x1xf32> to vector<8x32xf32>
    %107 = arith.mulf %102, %106 : vector<8x32xf32>
    %108 = vector.broadcast %87 : vector<1x32xf32> to vector<8x32xf32>
    %109 = arith.mulf %107, %108 : vector<8x32xf32>
    %110 = vector.broadcast %89 : vector<1x32xf32> to vector<8x32xf32>
    %111 = arith.addf %109, %110 : vector<8x32xf32>
    %c0_67 = arith.constant 0 : index
    %c0_68 = arith.constant 0 : index
    %c0_69 = arith.constant 0 : index
    %112 = vector.load %arg15[%c0_67, %c0_68, %c0_69] : memref<1x32x64xf32, #tpu.memory_space<vmem>>, vector<1x32x64xf32>
    %113 = vector.shape_cast %112 : vector<1x32x64xf32> to vector<32x64xf32>
    %cst_70 = arith.constant dense<0.000000e+00> : vector<8x64xf32>
    %114 = tpu.matmul %111, %113, %cst_70 {dimension_numbers = #tpu.dot_dimension_numbers<[1], [0], [0], [1], [0, 0, 1, 1], [], []>} : vector<8x32xf32>, vector<32x64xf32>, vector<8x64xf32> -> vector<8x64xf32>
    %c0_71 = arith.constant 0 : index
    %c0_72 = arith.constant 0 : index
    %c0_73 = arith.constant 0 : index
    %115 = vector.load %arg16[%c0_71, %c0_72, %c0_73] : memref<1x1x64xf32, #tpu.memory_space<vmem>>, vector<1x1x64xf32>
    %116 = vector.shape_cast %115 : vector<1x1x64xf32> to vector<1x64xf32>
    %117 = vector.broadcast %116 : vector<1x64xf32> to vector<8x64xf32>
    %118 = arith.addf %114, %117 : vector<8x64xf32>
    %cst_74 = arith.constant 0.000000e+00 : f32
    %119 = vector.broadcast %cst_74 : f32 to vector<8x64xf32>
    %120 = arith.maximumf %118, %119 : vector<8x64xf32>
    %c0_75 = arith.constant 0 : index
    %c0_76 = arith.constant 0 : index
    %c0_77 = arith.constant 0 : index
    %121 = vector.load %arg17[%c0_75, %c0_76, %c0_77] : memref<1x64x32xf32, #tpu.memory_space<vmem>>, vector<1x64x32xf32>
    %122 = vector.shape_cast %121 : vector<1x64x32xf32> to vector<64x32xf32>
    %cst_78 = arith.constant dense<0.000000e+00> : vector<8x32xf32>
    %123 = tpu.matmul %120, %122, %cst_78 {dimension_numbers = #tpu.dot_dimension_numbers<[1], [0], [0], [1], [0, 0, 1, 1], [], []>} : vector<8x64xf32>, vector<64x32xf32>, vector<8x32xf32> -> vector<8x32xf32>
    %c0_79 = arith.constant 0 : index
    %c0_80 = arith.constant 0 : index
    %c0_81 = arith.constant 0 : index
    %124 = vector.load %arg18[%c0_79, %c0_80, %c0_81] : memref<1x1x32xf32, #tpu.memory_space<vmem>>, vector<1x1x32xf32>
    %125 = vector.shape_cast %124 : vector<1x1x32xf32> to vector<1x32xf32>
    %126 = vector.broadcast %125 : vector<1x32xf32> to vector<8x32xf32>
    %127 = arith.addf %123, %126 : vector<8x32xf32>
    %128 = arith.addf %85, %127 : vector<8x32xf32>
    %c0_82 = arith.constant 0 : index
    %c0_83 = arith.constant 0 : index
    %c0_84 = arith.constant 0 : index
    %129 = vector.load %arg19[%c0_82, %c0_83, %c0_84] : memref<1x8x32xf32, #tpu.memory_space<vmem>>, vector<1x8x32xf32>
    %130 = vector.shape_cast %129 : vector<1x8x32xf32> to vector<8x32xf32>
    %131 = vector.shape_cast %128 : vector<8x32xf32> to vector<1x8x32xf32>
    tpu.vector_store %arg19[%c0_82, %c0_83, %c0_84], %131 {strides = array<i32>} : memref<1x8x32xf32, #tpu.memory_space<vmem>>, vector<1x8x32xf32>,
    return
  }
  func.func @transform_0(%arg0: i32, %arg1: i32) -> (i32, i32, i32) {
    %c0_i32 = arith.constant 0 : i32
    %c0_i32_0 = arith.constant 0 : i32
    %c0_i32_1 = arith.constant 0 : i32
    return %arg0, %c0_i32, %c0_i32_0 : i32, i32, i32
  }
  func.func @transform_1(%arg0: i32, %arg1: i32) -> (i32, i32, i32, i32) {
    %c0_i32 = arith.constant 0 : i32
    %c0_i32_0 = arith.constant 0 : i32
    %c0_i32_1 = arith.constant 0 : i32
    %c0_i32_2 = arith.constant 0 : i32
    return %arg1, %c0_i32, %c0_i32_0, %c0_i32_1 : i32, i32, i32, i32
  }
  func.func @transform_2(%arg0: i32, %arg1: i32) -> (i32, i32, i32, i32) {
    %c0_i32 = arith.constant 0 : i32
    %c0_i32_0 = arith.constant 0 : i32
    %c0_i32_1 = arith.constant 0 : i32
    %c0_i32_2 = arith.constant 0 : i32
    return %arg1, %c0_i32, %c0_i32_0, %c0_i32_1 : i32, i32, i32, i32
  }
  func.func @transform_3(%arg0: i32, %arg1: i32) -> (i32, i32, i32, i32) {
    %c0_i32 = arith.constant 0 : i32
    %c0_i32_0 = arith.constant 0 : i32
    %c0_i32_1 = arith.constant 0 : i32
    %c0_i32_2 = arith.constant 0 : i32
    return %arg1, %c0_i32, %c0_i32_0, %c0_i32_1 : i32, i32, i32, i32
  }
  func.func @transform_4(%arg0: i32, %arg1: i32) -> (i32, i32, i32, i32) {
    %c0_i32 = arith.constant 0 : i32
    %c0_i32_0 = arith.constant 0 : i32
    %c0_i32_1 = arith.constant 0 : i32
    %c0_i32_2 = arith.constant 0 : i32
    return %arg1, %c0_i32, %c0_i32_0, %c0_i32_1 : i32, i32, i32, i32
  }
  func.func @transform_5(%arg0: i32, %arg1: i32) -> (i32, i32, i32, i32) {
    %c0_i32 = arith.constant 0 : i32
    %c0_i32_0 = arith.constant 0 : i32
    %c0_i32_1 = arith.constant 0 : i32
    %c0_i32_2 = arith.constant 0 : i32
    return %arg1, %c0_i32, %c0_i32_0, %c0_i32_1 : i32, i32, i32, i32
  }
  func.func @transform_6(%arg0: i32, %arg1: i32) -> (i32, i32, i32, i32) {
    %c0_i32 = arith.constant 0 : i32
    %c0_i32_0 = arith.constant 0 : i32
    %c0_i32_1 = arith.constant 0 : i32
    %c0_i32_2 = arith.constant 0 : i32
    return %arg1, %c0_i32, %c0_i32_0, %c0_i32_1 : i32, i32, i32, i32
  }
  func.func @transform_7(%arg0: i32, %arg1: i32) -> (i32, i32, i32, i32) {
    %c0_i32 = arith.constant 0 : i32
    %c0_i32_0 = arith.constant 0 : i32
    %c0_i32_1 = arith.constant 0 : i32
    %c0_i32_2 = arith.constant 0 : i32
    return %arg1, %c0_i32, %c0_i32_0, %c0_i32_1 : i32, i32, i32, i32
  }
  func.func @transform_8(%arg0: i32, %arg1: i32) -> (i32, i32, i32) {
    %c0_i32 = arith.constant 0 : i32
    %c0_i32_0 = arith.constant 0 : i32
    %c0_i32_1 = arith.constant 0 : i32
    return %arg1, %c0_i32, %c0_i32_0 : i32, i32, i32
  }
  func.func @transform_9(%arg0: i32, %arg1: i32) -> (i32, i32, i32) {
    %c0_i32 = arith.constant 0 : i32
    %c0_i32_0 = arith.constant 0 : i32
    %c0_i32_1 = arith.constant 0 : i32
    return %arg1, %c0_i32, %c0_i32_0 : i32, i32, i32
  }
  func.func @transform_10(%arg0: i32, %arg1: i32) -> (i32, i32, i32) {
    %c0_i32 = arith.constant 0 : i32
    %c0_i32_0 = arith.constant 0 : i32
    %c0_i32_1 = arith.constant 0 : i32
    return %arg1, %c0_i32, %c0_i32_0 : i32, i32, i32
  }
  func.func @transform_11(%arg0: i32, %arg1: i32) -> (i32, i32, i32) {
    %c0_i32 = arith.constant 0 : i32
    %c0_i32_0 = arith.constant 0 : i32
    %c0_i32_1 = arith.constant 0 : i32
    return %arg1, %c0_i32, %c0_i32_0 : i32, i32, i32
  }
  func.func @transform_12(%arg0: i32, %arg1: i32) -> (i32, i32, i32) {
    %c0_i32 = arith.constant 0 : i32
    %c0_i32_0 = arith.constant 0 : i32
    %c0_i32_1 = arith.constant 0 : i32
    return %arg1, %c0_i32, %c0_i32_0 : i32, i32, i32
  }
  func.func @transform_13(%arg0: i32, %arg1: i32) -> (i32, i32, i32) {
    %c0_i32 = arith.constant 0 : i32
    %c0_i32_0 = arith.constant 0 : i32
    %c0_i32_1 = arith.constant 0 : i32
    return %arg1, %c0_i32, %c0_i32_0 : i32, i32, i32
  }
  func.func @transform_14(%arg0: i32, %arg1: i32) -> (i32, i32, i32) {
    %c0_i32 = arith.constant 0 : i32
    %c0_i32_0 = arith.constant 0 : i32
    %c0_i32_1 = arith.constant 0 : i32
    return %arg1, %c0_i32, %c0_i32_0 : i32, i32, i32
  }
  func.func @transform_15(%arg0: i32, %arg1: i32) -> (i32, i32, i32) {
    %c0_i32 = arith.constant 0 : i32
    %c0_i32_0 = arith.constant 0 : i32
    %c0_i32_1 = arith.constant 0 : i32
    return %arg1, %c0_i32, %c0_i32_0 : i32, i32, i32
  }
  func.func @transform_16(%arg0: i32, %arg1: i32) -> (i32, i32, i32) {
    %c0_i32 = arith.constant 0 : i32
    %c0_i32_0 = arith.constant 0 : i32
    %c0_i32_1 = arith.constant 0 : i32
    return %arg1, %c0_i32, %c0_i32_0 : i32, i32, i32
  }
  func.func @transform_17(%arg0: i32, %arg1: i32) -> (i32, i32, i32) {
    %c0_i32 = arith.constant 0 : i32
    %c0_i32_0 = arith.constant 0 : i32
    %c0_i32_1 = arith.constant 0 : i32
    return %arg0, %c0_i32, %c0_i32_0 : i32, i32, i32
  }
}

</mosaic_0001>

<llo_original>
// kernel: tpu_custom_call.1
$region0: #{tpu_custom_call.1}
  #allocation0 [shape = 'u32[]', space=smem, size = 0x4, offset = 0x4, fixed_abs, tag = 'smem constant byte address 0x4 - core index']
  #allocation1 [shape = 'u32[144,128]{1,0:T(1,128)}', space=vmem, size = 0x12000, scoped, tag = 'internal scratch']
  %s0 = inlined_call_operand.vmem [shape: f32[2,8,32], index: 0, kind: input, shape index: {}]
  %s1 = inlined_call_operand.vmem [shape: f32[2,4,32,8], index: 1, kind: input, shape index: {}]
  %s2 = inlined_call_operand.vmem [shape: f32[2,4,1,8], index: 2, kind: input, shape index: {}]
  %s3 = inlined_call_operand.vmem [shape: f32[2,4,32,8], index: 3, kind: input, shape index: {}]
  %s4 = inlined_call_operand.vmem [shape: f32[2,4,1,8], index: 4, kind: input, shape index: {}]
  %s5 = inlined_call_operand.vmem [shape: f32[2,4,32,8], index: 5, kind: input, shape index: {}]
  %s6 = inlined_call_operand.vmem [shape: f32[2,4,1,8], index: 6, kind: input, shape index: {}]
  %s7 = inlined_call_operand.vmem [shape: f32[2,4,8,32], index: 7, kind: input, shape index: {}]
  %s8 = inlined_call_operand.vmem [shape: f32[2,1,32], index: 8, kind: input, shape index: {}]
  %s9 = inlined_call_operand.vmem [shape: f32[2,1,32], index: 9, kind: input, shape index: {}]
  %s10 = inlined_call_operand.vmem [shape: f32[2,1,32], index: 10, kind: input, shape index: {}]
  %s11 = inlined_call_operand.vmem [shape: f32[2,1,32], index: 11, kind: input, shape index: {}]
  %s12 = inlined_call_operand.vmem [shape: f32[2,1,32], index: 12, kind: input, shape index: {}]
  %s13 = inlined_call_operand.vmem [shape: f32[2,32,64], index: 13, kind: input, shape index: {}]
  %s14 = inlined_call_operand.vmem [shape: f32[2,1,64], index: 14, kind: input, shape index: {}]
  %s15 = inlined_call_operand.vmem [shape: f32[2,64,32], index: 15, kind: input, shape index: {}]
  %s16 = inlined_call_operand.vmem [shape: f32[2,1,32], index: 16, kind: input, shape index: {}]
  %s17 = inlined_call_operand.hbm [shape: f32[2,8,32], index: 17, kind: output, shape index: {}]
  %s18 = sld [smem:[#allocation0]]
  $region105: #{tpu_custom_call.1} parent=0
    _
  %s20 = ssub.s32 1, %s18
  %s21 = scalar_select 0, %s20, %s18
  $region1: #{tpu_custom_call.1} parent=0
    #allocation2 [shape = 'u8[8192]{0}', space=vmem, size = 0x2000, scoped, tag = 'output window, operand 0']
    #allocation3 [shape = 's32[2]{0}', space=sflag, size = 0x8, scoped, tag = 'scoped memory for tpu_custom_call.1']
    %22 = vsyncpa [#allocation3], 0
    %s23 = scalar_lea.sflag [#allocation3], 1
    %24 = vsyncpa %s23, 0
    loop: start=0, step=1, limit=6
    $region2: #{tpu_custom_call.1} parent=1 // loop_pre_header
      _
    $region3: #{tpu_custom_call.1} parent=1 // loop_header
      %s26 = sphi 0, %s30
      %p27 = scmp.ge.s32.totalorder %s26, 6
      %s33 = sphi 0, %s45
      %s34 = sphi 0, %s41
      %s35 = sphi 0, %s33
      %s36 = sphi 0, %s34
      %s37 = sphi 0, %s35
      %s38 = sphi 0, %s36
      %s48 = sphi 0, %s50
      %s51 = sphi 0, %s48
      %s52 = sphi 0, %s51
      %s68 = sphi 0, %s52
      %s74 = sphi 0, %s76
      %s77 = sphi 0, %s74
      %s78 = sphi 0, %s77
      %s94 = sphi 0, %s78
      %s100 = sphi 0, %s102
      %s103 = sphi 0, %s100
      %s104 = sphi 0, %s103
      %s120 = sphi 0, %s104
      %s126 = sphi 0, %s128
      %s129 = sphi 0, %s126
      %s130 = sphi 0, %s129
      %s146 = sphi 0, %s130
      %s152 = sphi 0, %s154
      %s155 = sphi 0, %s152
      %s156 = sphi 0, %s155
      %s172 = sphi 0, %s156
      %s178 = sphi 0, %s180
      %s181 = sphi 0, %s178
      %s182 = sphi 0, %s181
      %s198 = sphi 0, %s182
      %s204 = sphi 0, %s206
      %s207 = sphi 0, %s204
      %s208 = sphi 0, %s207
      %s224 = sphi 0, %s208
      %s230 = sphi 0, %s232
      %s233 = sphi 0, %s230
      %s234 = sphi 0, %s233
      %s250 = sphi 0, %s234
      %s256 = sphi 0, %s258
      %s259 = sphi 0, %s256
      %s260 = sphi 0, %s259
      %s276 = sphi 0, %s260
      %s282 = sphi 0, %s284
      %s285 = sphi 0, %s282
      %s286 = sphi 0, %s285
      %s302 = sphi 0, %s286
      %s308 = sphi 0, %s310
      %s311 = sphi 0, %s308
      %s312 = sphi 0, %s311
      %s328 = sphi 0, %s312
      %s334 = sphi 0, %s336
      %s337 = sphi 0, %s334
      %s338 = sphi 0, %s337
      %s354 = sphi 0, %s338
      %s360 = sphi 0, %s362
      %s363 = sphi 0, %s360
      %s364 = sphi 0, %s363
      %s380 = sphi 0, %s364
      %s386 = sphi 0, %s388
      %s389 = sphi 0, %s386
      %s390 = sphi 0, %s389
      %s406 = sphi 0, %s390
      %s412 = sphi 0, %s414
      %s415 = sphi 0, %s412
      %s416 = sphi 0, %s415
      %s432 = sphi 0, %s416
      %s438 = sphi 0, %s440
      %s441 = sphi 0, %s438
      %s442 = sphi 0, %s441
      %s458 = sphi 0, %s442
      %s464 = sphi 0, %s466
      %s467 = sphi 0, %s464
      %s468 = sphi 0, %s467
      %s484 = sphi 0, %s468
      %s490 = sphi 0, %s492
      %s493 = sphi 0, %s490
      %s494 = sphi 0, %s493
      %s510 = sphi 0, %s494
    $region4: #{tpu_custom_call.1} parent=1 // loop_header_branch
      %29 = sbr.rel (%p27) target = $region8
    $region5: #{tpu_custom_call.1} parent=1 // loop_body
      %s31 = ssub.s32 %s26, 1
      %s32 = ssub.s32 %s26, 2
      %s39 = sadd.s32 1, %s34
      %p40 = scmp.ge.s32.totalorder %s39, 2
      %s41 = scalar_select %p40, 0, %s39
      %s42 = sadd.s32 1, %s33
      %s43 = scalar_select %p40, %s42, %s33
      %p44 = scmp.ge.s32.totalorder %s43, 2
      %s45 = scalar_select %p44, 0, %s43
      %s46 = ssub.s32 %s33, %s45
      %p47 = scmp.eq.s32.totalorder %s46, 0
      %s49 = sadd.s32 %s48, 1
      %s50 = scalar_select %p47, %s48, %s49
      %p53 = pneg %p47
      %p54 = scmp.eq.s32.totalorder %s26, 3
      %p55 = por %p53, %p54
      %p56 = scmp.ne.s32.totalorder %s48, %s51
      %p57 = scmp.eq.s32.totalorder %s26, 0
      %p58 = por %p56, %p57
      %p59 = scmp.ne.s32.totalorder %s48, %s51
      %p60 = scmp.eq.s32.totalorder %s31, 3
      %p61 = por %p59, %p60
      %p62 = scmp.ne.s32.totalorder %s51, %s52
      %p63 = scmp.eq.s32.totalorder %s31, 0
      %p64 = por %p62, %p63
      %p65 = scmp.ne.s32.totalorder %s51, %s52
      %p66 = scmp.eq.s32.totalorder %s32, 3
      %p67 = por %p65, %p66
      %p69 = scmp.ne.s32.totalorder %s52, %s68
      %p70 = scmp.eq.s32.totalorder %s32, 0
      %p71 = por %p69, %p70
      %s72 = ssub.s32 %s34, %s41
      %p73 = scmp.eq.s32.totalorder %s72, 0
      %s75 = sadd.s32 %s74, 1
      %s76 = scalar_select %p73, %s74, %s75
      %p79 = pneg %p73
      %p80 = scmp.eq.s32.totalorder %s26, 3
      %p81 = por %p79, %p80
      %p82 = scmp.ne.s32.totalorder %s74, %s77
      %p83 = scmp.eq.s32.totalorder %s26, 0
      %p84 = por %p82, %p83
      %p85 = scmp.ne.s32.totalorder %s74, %s77
      %p86 = scmp.eq.s32.totalorder %s31, 3
      %p87 = por %p85, %p86
      %p88 = scmp.ne.s32.totalorder %s77, %s78
      %p89 = scmp.eq.s32.totalorder %s31, 0
      %p90 = por %p88, %p89
      %p91 = scmp.ne.s32.totalorder %s77, %s78
      %p92 = scmp.eq.s32.totalorder %s32, 3
      %p93 = por %p91, %p92
      %p95 = scmp.ne.s32.totalorder %s78, %s94
      %p96 = scmp.eq.s32.totalorder %s32, 0
      %p97 = por %p95, %p96
      %s98 = ssub.s32 %s34, %s41
      %p99 = scmp.eq.s32.totalorder %s98, 0
      %s101 = sadd.s32 %s100, 1
      %s102 = scalar_select %p99, %s100, %s101
      %p105 = pneg %p99
      %p106 = scmp.eq.s32.totalorder %s26, 3
      %p107 = por %p105, %p106
      %p108 = scmp.ne.s32.totalorder %s100, %s103
      %p109 = scmp.eq.s32.totalorder %s26, 0
      %p110 = por %p108, %p109
      %p111 = scmp.ne.s32.totalorder %s100, %s103
      %p112 = scmp.eq.s32.totalorder %s31, 3
      %p113 = por %p111, %p112
      %p114 = scmp.ne.s32.totalorder %s103, %s104
      %p115 = scmp.eq.s32.totalorder %s31, 0
      %p116 = por %p114, %p115
      %p117 = scmp.ne.s32.totalorder %s103, %s104
      %p118 = scmp.eq.s32.totalorder %s32, 3
      %p119 = por %p117, %p118
      %p121 = scmp.ne.s32.totalorder %s104, %s120
      %p122 = scmp.eq.s32.totalorder %s32, 0
      %p123 = por %p121, %p122
      %s124 = ssub.s32 %s34, %s41
      %p125 = scmp.eq.s32.totalorder %s124, 0
      %s127 = sadd.s32 %s126, 1
      %s128 = scalar_select %p125, %s126, %s127
      %p131 = pneg %p125
      %p132 = scmp.eq.s32.totalorder %s26, 3
      %p133 = por %p131, %p132
      %p134 = scmp.ne.s32.totalorder %s126, %s129
      %p135 = scmp.eq.s32.totalorder %s26, 0
      %p136 = por %p134, %p135
      %p137 = scmp.ne.s32.totalorder %s126, %s129
      %p138 = scmp.eq.s32.totalorder %s31, 3
      %p139 = por %p137, %p138
      %p140 = scmp.ne.s32.totalorder %s129, %s130
      %p141 = scmp.eq.s32.totalorder %s31, 0
      %p142 = por %p140, %p141
      %p143 = scmp.ne.s32.totalorder %s129, %s130
      %p144 = scmp.eq.s32.totalorder %s32, 3
      %p145 = por %p143, %p144
      %p147 = scmp.ne.s32.totalorder %s130, %s146
      %p148 = scmp.eq.s32.totalorder %s32, 0
      %p149 = por %p147, %p148
      %s150 = ssub.s32 %s34, %s41
      %p151 = scmp.eq.s32.totalorder %s150, 0
      %s153 = sadd.s32 %s152, 1
      %s154 = scalar_select %p151, %s152, %s153
      %p157 = pneg %p151
      %p158 = scmp.eq.s32.totalorder %s26, 3
      %p159 = por %p157, %p158
      %p160 = scmp.ne.s32.totalorder %s152, %s155
      %p161 = scmp.eq.s32.totalorder %s26, 0
      %p162 = por %p160, %p161
      %p163 = scmp.ne.s32.totalorder %s152, %s155
      %p164 = scmp.eq.s32.totalorder %s31, 3
      %p165 = por %p163, %p164
      %p166 = scmp.ne.s32.totalorder %s155, %s156
      %p167 = scmp.eq.s32.totalorder %s31, 0
      %p168 = por %p166, %p167
      %p169 = scmp.ne.s32.totalorder %s155, %s156
      %p170 = scmp.eq.s32.totalorder %s32, 3
      %p171 = por %p169, %p170
      %p173 = scmp.ne.s32.totalorder %s156, %s172
      %p174 = scmp.eq.s32.totalorder %s32, 0
      %p175 = por %p173, %p174
      %s176 = ssub.s32 %s34, %s41
      %p177 = scmp.eq.s32.totalorder %s176, 0
      %s179 = sadd.s32 %s178, 1
      %s180 = scalar_select %p177, %s178, %s179
      %p183 = pneg %p177
      %p184 = scmp.eq.s32.totalorder %s26, 3
      %p185 = por %p183, %p184
      %p186 = scmp.ne.s32.totalorder %s178, %s181
      %p187 = scmp.eq.s32.totalorder %s26, 0
      %p188 = por %p186, %p187
      %p189 = scmp.ne.s32.totalorder %s178, %s181
      %p190 = scmp.eq.s32.totalorder %s31, 3
      %p191 = por %p189, %p190
      %p192 = scmp.ne.s32.totalorder %s181, %s182
      %p193 = scmp.eq.s32.totalorder %s31, 0
      %p194 = por %p192, %p193
      %p195 = scmp.ne.s32.totalorder %s181, %s182
      %p196 = scmp.eq.s32.totalorder %s32, 3
      %p197 = por %p195, %p196
      %p199 = scmp.ne.s32.totalorder %s182, %s198
      %p200 = scmp.eq.s32.totalorder %s32, 0
      %p201 = por %p199, %p200
      %s202 = ssub.s32 %s34, %s41
      %p203 = scmp.eq.s32.totalorder %s202, 0
      %s205 = sadd.s32 %s204, 1
      %s206 = scalar_select %p203, %s204, %s205
      %p209 = pneg %p203
      %p210 = scmp.eq.s32.totalorder %s26, 3
      %p211 = por %p209, %p210
      %p212 = scmp.ne.s32.totalorder %s204, %s207
      %p213 = scmp.eq.s32.totalorder %s26, 0
      %p214 = por %p212, %p213
      %p215 = scmp.ne.s32.totalorder %s204, %s207
      %p216 = scmp.eq.s32.totalorder %s31, 3
      %p217 = por %p215, %p216
      %p218 = scmp.ne.s32.totalorder %s207, %s208
      %p219 = scmp.eq.s32.totalorder %s31, 0
      %p220 = por %p218, %p219
      %p221 = scmp.ne.s32.totalorder %s207, %s208
      %p222 = scmp.eq.s32.totalorder %s32, 3
      %p223 = por %p221, %p222
      %p225 = scmp.ne.s32.totalorder %s208, %s224
      %p226 = scmp.eq.s32.totalorder %s32, 0
      %p227 = por %p225, %p226
      %s228 = ssub.s32 %s34, %s41
      %p229 = scmp.eq.s32.totalorder %s228, 0
      %s231 = sadd.s32 %s230, 1
      %s232 = scalar_select %p229, %s230, %s231
      %p235 = pneg %p229
      %p236 = scmp.eq.s32.totalorder %s26, 3
      %p237 = por %p235, %p236
      %p238 = scmp.ne.s32.totalorder %s230, %s233
      %p239 = scmp.eq.s32.totalorder %s26, 0
      %p240 = por %p238, %p239
      %p241 = scmp.ne.s32.totalorder %s230, %s233
      %p242 = scmp.eq.s32.totalorder %s31, 3
      %p243 = por %p241, %p242
      %p244 = scmp.ne.s32.totalorder %s233, %s234
      %p245 = scmp.eq.s32.totalorder %s31, 0
      %p246 = por %p244, %p245
      %p247 = scmp.ne.s32.totalorder %s233, %s234
      %p248 = scmp.eq.s32.totalorder %s32, 3
      %p249 = por %p247, %p248
      %p251 = scmp.ne.s32.totalorder %s234, %s250
      %p252 = scmp.eq.s32.totalorder %s32, 0
      %p253 = por %p251, %p252
      %s254 = ssub.s32 %s34, %s41
      %p255 = scmp.eq.s32.totalorder %s254, 0
      %s257 = sadd.s32 %s256, 1
      %s258 = scalar_select %p255, %s256, %s257
      %p261 = pneg %p255
      %p262 = scmp.eq.s32.totalorder %s26, 3
      %p263 = por %p261, %p262
      %p264 = scmp.ne.s32.totalorder %s256, %s259
      %p265 = scmp.eq.s32.totalorder %s26, 0
      %p266 = por %p264, %p265
      %p267 = scmp.ne.s32.totalorder %s256, %s259
      %p268 = scmp.eq.s32.totalorder %s31, 3
      %p269 = por %p267, %p268
      %p270 = scmp.ne.s32.totalorder %s259, %s260
      %p271 = scmp.eq.s32.totalorder %s31, 0
      %p272 = por %p270, %p271
      %p273 = scmp.ne.s32.totalorder %s259, %s260
      %p274 = scmp.eq.s32.totalorder %s32, 3
      %p275 = por %p273, %p274
      %p277 = scmp.ne.s32.totalorder %s260, %s276
      %p278 = scmp.eq.s32.totalorder %s32, 0
      %p279 = por %p277, %p278
      %s280 = ssub.s32 %s34, %s41
      %p281 = scmp.eq.s32.totalorder %s280, 0
      %s283 = sadd.s32 %s282, 1
      %s284 = scalar_select %p281, %s282, %s283
      %p287 = pneg %p281
      %p288 = scmp.eq.s32.totalorder %s26, 3
      %p289 = por %p287, %p288
      %p290 = scmp.ne.s32.totalorder %s282, %s285
      %p291 = scmp.eq.s32.totalorder %s26, 0
      %p292 = por %p290, %p291
      %p293 = scmp.ne.s32.totalorder %s282, %s285
      %p294 = scmp.eq.s32.totalorder %s31, 3
      %p295 = por %p293, %p294
      %p296 = scmp.ne.s32.totalorder %s285, %s286
      %p297 = scmp.eq.s32.totalorder %s31, 0
      %p298 = por %p296, %p297
      %p299 = scmp.ne.s32.totalorder %s285, %s286
      %p300 = scmp.eq.s32.totalorder %s32, 3
      %p301 = por %p299, %p300
      %p303 = scmp.ne.s32.totalorder %s286, %s302
      %p304 = scmp.eq.s32.totalorder %s32, 0
      %p305 = por %p303, %p304
      %s306 = ssub.s32 %s34, %s41
      %p307 = scmp.eq.s32.totalorder %s306, 0
      %s309 = sadd.s32 %s308, 1
      %s310 = scalar_select %p307, %s308, %s309
      %p313 = pneg %p307
      %p314 = scmp.eq.s32.totalorder %s26, 3
      %p315 = por %p313, %p314
      %p316 = scmp.ne.s32.totalorder %s308, %s311
      %p317 = scmp.eq.s32.totalorder %s26, 0
      %p318 = por %p316, %p317
      %p319 = scmp.ne.s32.totalorder %s308, %s311
      %p320 = scmp.eq.s32.totalorder %s31, 3
      %p321 = por %p319, %p320
      %p322 = scmp.ne.s32.totalorder %s311, %s312
      %p323 = scmp.eq.s32.totalorder %s31, 0
      %p324 = por %p322, %p323
      %p325 = scmp.ne.s32.totalorder %s311, %s312
      %p326 = scmp.eq.s32.totalorder %s32, 3
      %p327 = por %p325, %p326
      %p329 = scmp.ne.s32.totalorder %s312, %s328
      %p330 = scmp.eq.s32.totalorder %s32, 0
      %p331 = por %p329, %p330
      %s332 = ssub.s32 %s34, %s41
      %p333 = scmp.eq.s32.totalorder %s332, 0
      %s335 = sadd.s32 %s334, 1
      %s336 = scalar_select %p333, %s334, %s335
      %p339 = pneg %p333
      %p340 = scmp.eq.s32.totalorder %s26, 3
      %p341 = por %p339, %p340
      %p342 = scmp.ne.s32.totalorder %s334, %s337
      %p343 = scmp.eq.s32.totalorder %s26, 0
      %p344 = por %p342, %p343
      %p345 = scmp.ne.s32.totalorder %s334, %s337
      %p346 = scmp.eq.s32.totalorder %s31, 3
      %p347 = por %p345, %p346
      %p348 = scmp.ne.s32.totalorder %s337, %s338
      %p349 = scmp.eq.s32.totalorder %s31, 0
      %p350 = por %p348, %p349
      %p351 = scmp.ne.s32.totalorder %s337, %s338
      %p352 = scmp.eq.s32.totalorder %s32, 3
      %p353 = por %p351, %p352
      %p355 = scmp.ne.s32.totalorder %s338, %s354
      %p356 = scmp.eq.s32.totalorder %s32, 0
      %p357 = por %p355, %p356
      %s358 = ssub.s32 %s34, %s41
      %p359 = scmp.eq.s32.totalorder %s358, 0
      %s361 = sadd.s32 %s360, 1
      %s362 = scalar_select %p359, %s360, %s361
      %p365 = pneg %p359
      %p366 = scmp.eq.s32.totalorder %s26, 3
      %p367 = por %p365, %p366
      %p368 = scmp.ne.s32.totalorder %s360, %s363
      %p369 = scmp.eq.s32.totalorder %s26, 0
      %p370 = por %p368, %p369
      %p371 = scmp.ne.s32.totalorder %s360, %s363
      %p372 = scmp.eq.s32.totalorder %s31, 3
      %p373 = por %p371, %p372
      %p374 = scmp.ne.s32.totalorder %s363, %s364
      %p375 = scmp.eq.s32.totalorder %s31, 0
      %p376 = por %p374, %p375
      %p377 = scmp.ne.s32.totalorder %s363, %s364
      %p378 = scmp.eq.s32.totalorder %s32, 3
      %p379 = por %p377, %p378
      %p381 = scmp.ne.s32.totalorder %s364, %s380
      %p382 = scmp.eq.s32.totalorder %s32, 0
      %p383 = por %p381, %p382
      %s384 = ssub.s32 %s34, %s41
      %p385 = scmp.eq.s32.totalorder %s384, 0
      %s387 = sadd.s32 %s386, 1
      %s388 = scalar_select %p385, %s386, %s387
      %p391 = pneg %p385
      %p392 = scmp.eq.s32.totalorder %s26, 3
      %p393 = por %p391, %p392
      %p394 = scmp.ne.s32.totalorder %s386, %s389
      %p395 = scmp.eq.s32.totalorder %s26, 0
      %p396 = por %p394, %p395
      %p397 = scmp.ne.s32.totalorder %s386, %s389
      %p398 = scmp.eq.s32.totalorder %s31, 3
      %p399 = por %p397, %p398
      %p400 = scmp.ne.s32.totalorder %s389, %s390
      %p401 = scmp.eq.s32.totalorder %s31, 0
      %p402 = por %p400, %p401
      %p403 = scmp.ne.s32.totalorder %s389, %s390
      %p404 = scmp.eq.s32.totalorder %s32, 3
      %p405 = por %p403, %p404
      %p407 = scmp.ne.s32.totalorder %s390, %s406
      %p408 = scmp.eq.s32.totalorder %s32, 0
      %p409 = por %p407, %p408
      %s410 = ssub.s32 %s34, %s41
      %p411 = scmp.eq.s32.totalorder %s410, 0
      %s413 = sadd.s32 %s412, 1
      %s414 = scalar_select %p411, %s412, %s413
      %p417 = pneg %p411
      %p418 = scmp.eq.s32.totalorder %s26, 3
      %p419 = por %p417, %p418
      %p420 = scmp.ne.s32.totalorder %s412, %s415
      %p421 = scmp.eq.s32.totalorder %s26, 0
      %p422 = por %p420, %p421
      %p423 = scmp.ne.s32.totalorder %s412, %s415
      %p424 = scmp.eq.s32.totalorder %s31, 3
      %p425 = por %p423, %p424
      %p426 = scmp.ne.s32.totalorder %s415, %s416
      %p427 = scmp.eq.s32.totalorder %s31, 0
      %p428 = por %p426, %p427
      %p429 = scmp.ne.s32.totalorder %s415, %s416
      %p430 = scmp.eq.s32.totalorder %s32, 3
      %p431 = por %p429, %p430
      %p433 = scmp.ne.s32.totalorder %s416, %s432
      %p434 = scmp.eq.s32.totalorder %s32, 0
      %p435 = por %p433, %p434
      %s436 = ssub.s32 %s34, %s41
      %p437 = scmp.eq.s32.totalorder %s436, 0
      %s439 = sadd.s32 %s438, 1
      %s440 = scalar_select %p437, %s438, %s439
      %p443 = pneg %p437
      %p444 = scmp.eq.s32.totalorder %s26, 3
      %p445 = por %p443, %p444
      %p446 = scmp.ne.s32.totalorder %s438, %s441
      %p447 = scmp.eq.s32.totalorder %s26, 0
      %p448 = por %p446, %p447
      %p449 = scmp.ne.s32.totalorder %s438, %s441
      %p450 = scmp.eq.s32.totalorder %s31, 3
      %p451 = por %p449, %p450
      %p452 = scmp.ne.s32.totalorder %s441, %s442
      %p453 = scmp.eq.s32.totalorder %s31, 0
      %p454 = por %p452, %p453
      %p455 = scmp.ne.s32.totalorder %s441, %s442
      %p456 = scmp.eq.s32.totalorder %s32, 3
      %p457 = por %p455, %p456
      %p459 = scmp.ne.s32.totalorder %s442, %s458
      %p460 = scmp.eq.s32.totalorder %s32, 0
      %p461 = por %p459, %p460
      %s462 = ssub.s32 %s34, %s41
      %p463 = scmp.eq.s32.totalorder %s462, 0
      %s465 = sadd.s32 %s464, 1
      %s466 = scalar_select %p463, %s464, %s465
      %p469 = pneg %p463
      %p470 = scmp.eq.s32.totalorder %s26, 3
      %p471 = por %p469, %p470
      %p472 = scmp.ne.s32.totalorder %s464, %s467
      %p473 = scmp.eq.s32.totalorder %s26, 0
      %p474 = por %p472, %p473
      %p475 = scmp.ne.s32.totalorder %s464, %s467
      %p476 = scmp.eq.s32.totalorder %s31, 3
      %p477 = por %p475, %p476
      %p478 = scmp.ne.s32.totalorder %s467, %s468
      %p479 = scmp.eq.s32.totalorder %s31, 0
      %p480 = por %p478, %p479
      %p481 = scmp.ne.s32.totalorder %s467, %s468
      %p482 = scmp.eq.s32.totalorder %s32, 3
      %p483 = por %p481, %p482
      %p485 = scmp.ne.s32.totalorder %s468, %s484
      %p486 = scmp.eq.s32.totalorder %s32, 0
      %p487 = por %p485, %p486
      %s488 = ssub.s32 %s33, %s45
      %p489 = scmp.eq.s32.totalorder %s488, 0
      %s491 = sadd.s32 %s490, 1
      %s492 = scalar_select %p489, %s490, %s491
      %p495 = pneg %p489
      %p496 = scmp.eq.s32.totalorder %s26, 3
      %p497 = por %p495, %p496
      %p498 = scmp.ne.s32.totalorder %s490, %s493
      %p499 = scmp.eq.s32.totalorder %s26, 0
      %p500 = por %p498, %p499
      %p501 = scmp.ne.s32.totalorder %s490, %s493
      %p502 = scmp.eq.s32.totalorder %s31, 3
      %p503 = por %p501, %p502
      %p504 = scmp.ne.s32.totalorder %s493, %s494
      %p505 = scmp.eq.s32.totalorder %s31, 0
      %p506 = por %p504, %p505
      %p507 = scmp.ne.s32.totalorder %s493, %s494
      %p508 = scmp.eq.s32.totalorder %s32, 3
      %p509 = por %p507, %p508
      %p511 = scmp.ne.s32.totalorder %s494, %s510
      %p512 = scmp.eq.s32.totalorder %s32, 0
      %p513 = por %p511, %p512
      %p514 = scmp.le.s32.totalorder 1, %s26
      %p515 = scmp.lt.s32.totalorder %s26, 5
      %p516 = pnand %p514, %p515
      %p517 = pneg %p516
      // Predicated region
      $region9: #{tpu_custom_call.1} parent=5 // pred_check
        _
      $region10: #{tpu_custom_call.1} parent=5 // pred_check_branch
        %519 = sbr.rel (%p516) target = $region12
      $region11: #{tpu_custom_call.1} parent=5 // pred_region
        %s520 = ssub.s32 %s26, 1
      $region12: #{tpu_custom_call.1} parent=5 // pred_fallthru
        _
      %p521 = scmp.lt.s32.totalorder %s26, 4
      // Predicated region
      $region13: #{tpu_custom_call.1} parent=5 // pred_check
        %p522 = pneg %p521
      $region14: #{tpu_custom_call.1} parent=5 // pred_check_branch
        %524 = sbr.rel (%p522) target = $region16
      $region15: #{tpu_custom_call.1} parent=5 // pred_region
        // Predicated region
        $region17: #{tpu_custom_call.1} parent=15 // pred_check
          %p525 = pneg %p58
        $region18: #{tpu_custom_call.1} parent=15 // pred_check_branch
          %527 = sbr.rel (%p525) target = $region20
        $region19: #{tpu_custom_call.1} parent=15 // pred_region
          %p528 = scmp.lt.s32.totalorder %s33, 1
          %s529 = scalar_select %p528, %s33, 1
          %s530 = smul.addr %s529, 8
          %s531 = scalar_lea.vmem %s0, %s530
        $region20: #{tpu_custom_call.1} parent=15 // pred_fallthru
          _
        // Predicated region
        $region21: #{tpu_custom_call.1} parent=15 // pred_check
          %p532 = pneg %p84
        $region22: #{tpu_custom_call.1} parent=15 // pred_check_branch
          %534 = sbr.rel (%p532) target = $region24
        $region23: #{tpu_custom_call.1} parent=15 // pred_region
          %p535 = scmp.lt.s32.totalorder %s34, 1
          %s536 = scalar_select %p535, %s34, 1
          %s537 = smul.addr %s536, 16
          %s538 = smul.addr %s537, 8
          %s539 = scalar_lea.vmem %s1, %s538
        $region24: #{tpu_custom_call.1} parent=15 // pred_fallthru
          _
        // Predicated region
        $region25: #{tpu_custom_call.1} parent=15 // pred_check
          %p540 = pneg %p110
        $region26: #{tpu_custom_call.1} parent=15 // pred_check_branch
          %542 = sbr.rel (%p540) target = $region28
        $region27: #{tpu_custom_call.1} parent=15 // pred_region
          %p543 = scmp.lt.s32.totalorder %s34, 1
          %s544 = scalar_select %p543, %s34, 1
          %s545 = smul.addr %s544, 4
          %s546 = scalar_lea.vmem %s2, %s545
        $region28: #{tpu_custom_call.1} parent=15 // pred_fallthru
          _
        // Predicated region
        $region29: #{tpu_custom_call.1} parent=15 // pred_check
          %p547 = pneg %p136
        $region30: #{tpu_custom_call.1} parent=15 // pred_check_branch
          %549 = sbr.rel (%p547) target = $region32
        $region31: #{tpu_custom_call.1} parent=15 // pred_region
          %p550 = scmp.lt.s32.totalorder %s34, 1
          %s551 = scalar_select %p550, %s34, 1
          %s552 = smul.addr %s551, 16
          %s553 = smul.addr %s552, 8
          %s554 = scalar_lea.vmem %s3, %s553
        $region32: #{tpu_custom_call.1} parent=15 // pred_fallthru
          _
        // Predicated region
        $region33: #{tpu_custom_call.1} parent=15 // pred_check
          %p555 = pneg %p162
        $region34: #{tpu_custom_call.1} parent=15 // pred_check_branch
          %557 = sbr.rel (%p555) target = $region36
        $region35: #{tpu_custom_call.1} parent=15 // pred_region
          %p558 = scmp.lt.s32.totalorder %s34, 1
          %s559 = scalar_select %p558, %s34, 1
          %s560 = smul.addr %s559, 4
          %s561 = scalar_lea.vmem %s4, %s560
        $region36: #{tpu_custom_call.1} parent=15 // pred_fallthru
          _
        // Predicated region
        $region37: #{tpu_custom_call.1} parent=15 // pred_check
          %p562 = pneg %p188
        $region38: #{tpu_custom_call.1} parent=15 // pred_check_branch
          %564 = sbr.rel (%p562) target = $region40
        $region39: #{tpu_custom_call.1} parent=15 // pred_region
          %p565 = scmp.lt.s32.totalorder %s34, 1
          %s566 = scalar_select %p565, %s34, 1
          %s567 = smul.addr %s566, 16
          %s568 = smul.addr %s567, 8
          %s569 = scalar_lea.vmem %s5, %s568
        $region40: #{tpu_custom_call.1} parent=15 // pred_fallthru
          _
        // Predicated region
        $region41: #{tpu_custom_call.1} parent=15 // pred_check
          %p570 = pneg %p214
        $region42: #{tpu_custom_call.1} parent=15 // pred_check_branch
          %572 = sbr.rel (%p570) target = $region44
        $region43: #{tpu_custom_call.1} parent=15 // pred_region
          %p573 = scmp.lt.s32.totalorder %s34, 1
          %s574 = scalar_select %p573, %s34, 1
          %s575 = smul.addr %s574, 4
          %s576 = scalar_lea.vmem %s6, %s575
        $region44: #{tpu_custom_call.1} parent=15 // pred_fallthru
          _
        // Predicated region
        $region45: #{tpu_custom_call.1} parent=15 // pred_check
          %p577 = pneg %p240
        $region46: #{tpu_custom_call.1} parent=15 // pred_check_branch
          %579 = sbr.rel (%p577) target = $region48
        $region47: #{tpu_custom_call.1} parent=15 // pred_region
          %p580 = scmp.lt.s32.totalorder %s34, 1
          %s581 = scalar_select %p580, %s34, 1
          %s582 = smul.addr %s581, 4
          %s583 = smul.addr %s582, 8
          %s584 = scalar_lea.vmem %s7, %s583
        $region48: #{tpu_custom_call.1} parent=15 // pred_fallthru
          _
        // Predicated region
        $region49: #{tpu_custom_call.1} parent=15 // pred_check
          %p585 = pneg %p266
        $region50: #{tpu_custom_call.1} parent=15 // pred_check_branch
          %587 = sbr.rel (%p585) target = $region52
        $region51: #{tpu_custom_call.1} parent=15 // pred_region
          %p588 = scmp.lt.s32.totalorder %s34, 1
          %s589 = scalar_select %p588, %s34, 1
          %s590 = scalar_lea.vmem %s8, %s589
        $region52: #{tpu_custom_call.1} parent=15 // pred_fallthru
          _
        // Predicated region
        $region53: #{tpu_custom_call.1} parent=15 // pred_check
          %p591 = pneg %p292
        $region54: #{tpu_custom_call.1} parent=15 // pred_check_branch
          %593 = sbr.rel (%p591) target = $region56
        $region55: #{tpu_custom_call.1} parent=15 // pred_region
          %p594 = scmp.lt.s32.totalorder %s34, 1
          %s595 = scalar_select %p594, %s34, 1
          %s596 = scalar_lea.vmem %s9, %s595
        $region56: #{tpu_custom_call.1} parent=15 // pred_fallthru
          _
        // Predicated region
        $region57: #{tpu_custom_call.1} parent=15 // pred_check
          %p597 = pneg %p318
        $region58: #{tpu_custom_call.1} parent=15 // pred_check_branch
          %599 = sbr.rel (%p597) target = $region60
        $region59: #{tpu_custom_call.1} parent=15 // pred_region
          %p600 = scmp.lt.s32.totalorder %s34, 1
          %s601 = scalar_select %p600, %s34, 1
          %s602 = scalar_lea.vmem %s10, %s601
        $region60: #{tpu_custom_call.1} parent=15 // pred_fallthru
          _
        // Predicated region
        $region61: #{tpu_custom_call.1} parent=15 // pred_check
          %p603 = pneg %p344
        $region62: #{tpu_custom_call.1} parent=15 // pred_check_branch
          %605 = sbr.rel (%p603) target = $region64
        $region63: #{tpu_custom_call.1} parent=15 // pred_region
          %p606 = scmp.lt.s32.totalorder %s34, 1
          %s607 = scalar_select %p606, %s34, 1
          %s608 = scalar_lea.vmem %s11, %s607
        $region64: #{tpu_custom_call.1} parent=15 // pred_fallthru
          _
        // Predicated region
        $region65: #{tpu_custom_call.1} parent=15 // pred_check
          %p609 = pneg %p370
        $region66: #{tpu_custom_call.1} parent=15 // pred_check_branch
          %611 = sbr.rel (%p609) target = $region68
        $region67: #{tpu_custom_call.1} parent=15 // pred_region
          %p612 = scmp.lt.s32.totalorder %s34, 1
          %s613 = scalar_select %p612, %s34, 1
          %s614 = scalar_lea.vmem %s12, %s613
        $region68: #{tpu_custom_call.1} parent=15 // pred_fallthru
          _
        // Predicated region
        $region69: #{tpu_custom_call.1} parent=15 // pred_check
          %p615 = pneg %p396
        $region70: #{tpu_custom_call.1} parent=15 // pred_check_branch
          %617 = sbr.rel (%p615) target = $region72
        $region71: #{tpu_custom_call.1} parent=15 // pred_region
          %p618 = scmp.lt.s32.totalorder %s34, 1
          %s619 = scalar_select %p618, %s34, 1
          %s620 = smul.addr %s619, 4
          %s621 = smul.addr %s620, 8
          %s622 = scalar_lea.vmem %s13, %s621
        $region72: #{tpu_custom_call.1} parent=15 // pred_fallthru
          _
        // Predicated region
        $region73: #{tpu_custom_call.1} parent=15 // pred_check
          %p623 = pneg %p422
        $region74: #{tpu_custom_call.1} parent=15 // pred_check_branch
          %625 = sbr.rel (%p623) target = $region76
        $region75: #{tpu_custom_call.1} parent=15 // pred_region
          %p626 = scmp.lt.s32.totalorder %s34, 1
          %s627 = scalar_select %p626, %s34, 1
          %s628 = scalar_lea.vmem %s14, %s627
        $region76: #{tpu_custom_call.1} parent=15 // pred_fallthru
          _
        // Predicated region
        $region77: #{tpu_custom_call.1} parent=15 // pred_check
          %p629 = pneg %p448
        $region78: #{tpu_custom_call.1} parent=15 // pred_check_branch
          %631 = sbr.rel (%p629) target = $region80
        $region79: #{tpu_custom_call.1} parent=15 // pred_region
          %p632 = scmp.lt.s32.totalorder %s34, 1
          %s633 = scalar_select %p632, %s34, 1
          %s634 = smul.addr %s633, 8
          %s635 = smul.addr %s634, 8
          %s636 = scalar_lea.vmem %s15, %s635
        $region80: #{tpu_custom_call.1} parent=15 // pred_fallthru
          _
        // Predicated region
        $region81: #{tpu_custom_call.1} parent=15 // pred_check
          %p637 = pneg %p474
        $region82: #{tpu_custom_call.1} parent=15 // pred_check_branch
          %639 = sbr.rel (%p637) target = $region84
        $region83: #{tpu_custom_call.1} parent=15 // pred_region
          %p640 = scmp.lt.s32.totalorder %s34, 1
          %s641 = scalar_select %p640, %s34, 1
          %s642 = scalar_lea.vmem %s16, %s641
        $region84: #{tpu_custom_call.1} parent=15 // pred_fallthru
          _
      $region16: #{tpu_custom_call.1} parent=5 // pred_fallthru
        _
      %p643 = scmp.le.s32.totalorder 1, %s26
      %p644 = scmp.lt.s32.totalorder %s26, 5
      %p645 = pnand %p643, %p644
      %p646 = pneg %p645
      // Predicated region
      $region85: #{tpu_custom_call.1} parent=5 // pred_check
        _
      $region86: #{tpu_custom_call.1} parent=5 // pred_check_branch
        %648 = sbr.rel (%p645) target = $region88
      $region87: #{tpu_custom_call.1} parent=5 // pred_region
        %s649 = ssub.s32 %s26, 1
        %p650 = scmp.lt.s32.totalorder %s35, 1
        %s651 = scalar_select %p650, %s35, 1
        %s652 = smul.addr %s651, 8
        %s653 = scalar_lea.vmem %s0, %s652
        %p654 = pneg %p64
        %p655 = pneg %p61
        %p656 = scmp.lt.s32.totalorder %s36, 1
        %s657 = scalar_select %p656, %s36, 1
        %s658 = smul.addr %s657, 16
        %s659 = smul.addr %s658, 8
        %s660 = scalar_lea.vmem %s1, %s659
        %p661 = pneg %p90
        %p662 = pneg %p87
        %p663 = scmp.lt.s32.totalorder %s36, 1
        %s664 = scalar_select %p663, %s36, 1
        %s665 = smul.addr %s664, 4
        %s666 = scalar_lea.vmem %s2, %s665
        %p667 = pneg %p116
        %p668 = pneg %p113
        %p669 = scmp.lt.s32.totalorder %s36, 1
        %s670 = scalar_select %p669, %s36, 1
        %s671 = smul.addr %s670, 16
        %s672 = smul.addr %s671, 8
        %s673 = scalar_lea.vmem %s3, %s672
        %p674 = pneg %p142
        %p675 = pneg %p139
        %p676 = scmp.lt.s32.totalorder %s36, 1
        %s677 = scalar_select %p676, %s36, 1
        %s678 = smul.addr %s677, 4
        %s679 = scalar_lea.vmem %s4, %s678
        %p680 = pneg %p168
        %p681 = pneg %p165
        %p682 = scmp.lt.s32.totalorder %s36, 1
        %s683 = scalar_select %p682, %s36, 1
        %s684 = smul.addr %s683, 16
        %s685 = smul.addr %s684, 8
        %s686 = scalar_lea.vmem %s5, %s685
        %p687 = pneg %p194
        %p688 = pneg %p191
        %p689 = scmp.lt.s32.totalorder %s36, 1
        %s690 = scalar_select %p689, %s36, 1
        %s691 = smul.addr %s690, 4
        %s692 = scalar_lea.vmem %s6, %s691
        %p693 = pneg %p220
        %p694 = pneg %p217
        %p695 = scmp.lt.s32.totalorder %s36, 1
        %s696 = scalar_select %p695, %s36, 1
        %s697 = smul.addr %s696, 4
        %s698 = smul.addr %s697, 8
        %s699 = scalar_lea.vmem %s7, %s698
        %p700 = pneg %p246
        %p701 = pneg %p243
        %p702 = scmp.lt.s32.totalorder %s36, 1
        %s703 = scalar_select %p702, %s36, 1
        %s704 = scalar_lea.vmem %s8, %s703
        %p705 = pneg %p272
        %p706 = pneg %p269
        %p707 = scmp.lt.s32.totalorder %s36, 1
        %s708 = scalar_select %p707, %s36, 1
        %s709 = scalar_lea.vmem %s9, %s708
        %p710 = pneg %p298
        %p711 = pneg %p295
        %p712 = scmp.lt.s32.totalorder %s36, 1
        %s713 = scalar_select %p712, %s36, 1
        %s714 = scalar_lea.vmem %s10, %s713
        %p715 = pneg %p324
        %p716 = pneg %p321
        %p717 = scmp.lt.s32.totalorder %s36, 1
        %s718 = scalar_select %p717, %s36, 1
        %s719 = scalar_lea.vmem %s11, %s718
        %p720 = pneg %p350
        %p721 = pneg %p347
        %p722 = scmp.lt.s32.totalorder %s36, 1
        %s723 = scalar_select %p722, %s36, 1
        %s724 = scalar_lea.vmem %s12, %s723
        %p725 = pneg %p376
        %p726 = pneg %p373
        %p727 = scmp.lt.s32.totalorder %s36, 1
        %s728 = scalar_select %p727, %s36, 1
        %s729 = smul.addr %s728, 4
        %s730 = smul.addr %s729, 8
        %s731 = scalar_lea.vmem %s13, %s730
        %p732 = pneg %p402
        %p733 = pneg %p399
        %p734 = scmp.lt.s32.totalorder %s36, 1
        %s735 = scalar_select %p734, %s36, 1
        %s736 = scalar_lea.vmem %s14, %s735
        %p737 = pneg %p428
        %p738 = pneg %p425
        %p739 = scmp.lt.s32.totalorder %s36, 1
        %s740 = scalar_select %p739, %s36, 1
        %s741 = smul.addr %s740, 8
        %s742 = smul.addr %s741, 8
        %s743 = scalar_lea.vmem %s15, %s742
        %p744 = pneg %p454
        %p745 = pneg %p451
        %p746 = scmp.lt.s32.totalorder %s36, 1
        %s747 = scalar_select %p746, %s36, 1
        %s748 = scalar_lea.vmem %s16, %s747
        %p749 = pneg %p480
        %p750 = pneg %p477
        %p751 = pneg %p506
        %p752 = pneg %p503
        %s753 = sand.u32 %s493, 1
        %s754 = scalar_lea.sflag [#allocation3], %s753
        %s755 = sand.u32 %s493, 1
        %s756 = smul.addr %s755, 8
        %s757 = scalar_lea.vmem [#allocation2], %s756
        %p758 = scmp.lt.s32.totalorder %s35, 1
        %s759 = scalar_select %p758, %s35, 1
        %s760 = smul.addr %s759, 8
        %s761 = scalar_lea.vmem %s0, %s760
        %p762 = scmp.lt.s32.totalorder %s36, 1
        %s763 = scalar_select %p762, %s36, 1
        %s764 = smul.addr %s763, 16
        %s765 = smul.addr %s764, 8
        %s766 = scalar_lea.vmem %s1, %s765
        %p767 = scmp.lt.s32.totalorder %s36, 1
        %s768 = scalar_select %p767, %s36, 1
        %s769 = smul.addr %s768, 4
        %s770 = scalar_lea.vmem %s2, %s769
        %p771 = scmp.lt.s32.totalorder %s36, 1
        %s772 = scalar_select %p771, %s36, 1
        %s773 = smul.addr %s772, 16
        %s774 = smul.addr %s773, 8
        %s775 = scalar_lea.vmem %s3, %s774
        %p776 = scmp.lt.s32.totalorder %s36, 1
        %s777 = scalar_select %p776, %s36, 1
        %s778 = smul.addr %s777, 4
        %s779 = scalar_lea.vmem %s4, %s778
        %p780 = scmp.lt.s32.totalorder %s36, 1
        %s781 = scalar_select %p780, %s36, 1
        %s782 = smul.addr %s781, 16
        %s783 = smul.addr %s782, 8
        %s784 = scalar_lea.vmem %s5, %s783
        %p785 = scmp.lt.s32.totalorder %s36, 1
        %s786 = scalar_select %p785, %s36, 1
        %s787 = smul.addr %s786, 4
        %s788 = scalar_lea.vmem %s6, %s787
        %p789 = scmp.lt.s32.totalorder %s36, 1
        %s790 = scalar_select %p789, %s36, 1
        %s791 = smul.addr %s790, 4
        %s792 = smul.addr %s791, 8
        %s793 = scalar_lea.vmem %s7, %s792
        %p794 = scmp.lt.s32.totalorder %s36, 1
        %s795 = scalar_select %p794, %s36, 1
        %s796 = scalar_lea.vmem %s8, %s795
        %p797 = scmp.lt.s32.totalorder %s36, 1
        %s798 = scalar_select %p797, %s36, 1
        %s799 = scalar_lea.vmem %s9, %s798
        %p800 = scmp.lt.s32.totalorder %s36, 1
        %s801 = scalar_select %p800, %s36, 1
        %s802 = scalar_lea.vmem %s10, %s801
        %p803 = scmp.lt.s32.totalorder %s36, 1
        %s804 = scalar_select %p803, %s36, 1
        %s805 = scalar_lea.vmem %s11, %s804
        %p806 = scmp.lt.s32.totalorder %s36, 1
        %s807 = scalar_select %p806, %s36, 1
        %s808 = scalar_lea.vmem %s12, %s807
        %p809 = scmp.lt.s32.totalorder %s36, 1
        %s810 = scalar_select %p809, %s36, 1
        %s811 = smul.addr %s810, 4
        %s812 = smul.addr %s811, 8
        %s813 = scalar_lea.vmem %s13, %s812
        %p814 = scmp.lt.s32.totalorder %s36, 1
        %s815 = scalar_select %p814, %s36, 1
        %s816 = scalar_lea.vmem %s14, %s815
        %p817 = scmp.lt.s32.totalorder %s36, 1
        %s818 = scalar_select %p817, %s36, 1
        %s819 = smul.addr %s818, 8
        %s820 = smul.addr %s819, 8
        %s821 = scalar_lea.vmem %s15, %s820
        %p822 = scmp.lt.s32.totalorder %s36, 1
        %s823 = scalar_select %p822, %s36, 1
        %s824 = scalar_lea.vmem %s16, %s823
        %p825 = scmp.eq.s32.totalorder %s36, 0
        // Predicated region
        $region89: #{tpu_custom_call.1} parent=87 // pred_check
          %p826 = pneg %p825
        $region90: #{tpu_custom_call.1} parent=87 // pred_check_branch
          %828 = sbr.rel (%p826) target = $region92
        $region91: #{tpu_custom_call.1} parent=87 // pred_region
          %v829 = vld [vmem:[%s761] sm:$0xff]
          %vm830 = vcmask 261120
          %831 = vst.msk [vmem:[%s757] sm:$0xff] %vm830, %v829
        $region92: #{tpu_custom_call.1} parent=87 // pred_fallthru
          _
        %v832 = vld [vmem:[%s757] sm:$0xff]
        %v833 = vld [vmem:[%s799] sm:$0x1]
        %v834 = vld [vmem:[%s802] sm:$0x1]
        %vm835 = vcmask 261120
        %v836 = vsel %vm835, %v832, 0.0
        %837 = vadd.xlane.f32.xlu0 %v836
        %v838 = vpop.xlane.xlu0 %837
        %v839 = vrcp.pop 32.0
        %v840 = vmul.f32 %v838, %v839
        %v841 = vsub.f32 %v832, %v840
        %v842 = vmul.f32 %v841, %v841
        %v843 = vsel %vm835, %v842, 0.0
        %844 = vadd.xlane.f32.xlu0 %v843
        %v845 = vpop.xlane.xlu0 %844
        %v846 = vmul.f32 %v845, %v839
        %v847 = vadd.f32 %v846, 1e-05
        %v848 = vrsqrt.pop %v847
        %v849 = vmul.f32 %v841, %v848
        %v851 = vlaneseq
        %v852 = vshrl.u32 %v851, 7
        %v853 = vsub.s32 0, %v852
        %v854 = vrot.slane %v833, %v853
        %v856 = vmul.f32 %v849, %v854
        %v858 = vlaneseq
        %v859 = vshrl.u32 %v858, 7
        %v860 = vsub.s32 0, %v859
        %v861 = vrot.slane %v834, %v860
        %v863 = vadd.f32 %v856, %v861
        %v864 = vld [vmem:[%s766] sm:$0xff]
        %v865 = vld [vmem:[%s766 + $0x8] sm:$0xff]
        %v866 = vld [vmem:[%s766 + $0x10] sm:$0xff]
        %v867 = vld [vmem:[%s766 + $0x18] sm:$0xff]
        %v868 = vld [vmem:[%s766 + $0x20] sm:$0xff]
        %v869 = vld [vmem:[%s766 + $0x28] sm:$0xff]
        %v870 = vld [vmem:[%s766 + $0x30] sm:$0xff]
        %v871 = vld [vmem:[%s766 + $0x38] sm:$0xff]
        %v872 = vld [vmem:[%s766 + $0x40] sm:$0xff]
        %v873 = vld [vmem:[%s766 + $0x48] sm:$0xff]
        %v874 = vld [vmem:[%s766 + $0x50] sm:$0xff]
        %v875 = vld [vmem:[%s766 + $0x58] sm:$0xff]
        %v876 = vld [vmem:[%s766 + $0x60] sm:$0xff]
        %v877 = vld [vmem:[%s766 + $0x68] sm:$0xff]
        %v878 = vld [vmem:[%s766 + $0x70] sm:$0xff]
        %v879 = vld [vmem:[%s766 + $0x78] sm:$0xff]
        %v880 = vld [vmem:[%s770] sm:$0x1]
        %v881 = vld [vmem:[%s770 + $0x1] sm:$0x1]
        %v882 = vld [vmem:[%s770 + $0x2] sm:$0x1]
        %v883 = vld [vmem:[%s770 + $0x3] sm:$0x1]
        %v888 = vlaneseq
        %v889 = vshrl.u32 %v888, 7
        %v890 = vsub.s32 0, %v889
        %v891 = vrot.slane %v880, %v890
        %v892 = vlaneseq
        %v893 = vshrl.u32 %v892, 7
        %v894 = vsub.s32 0, %v893
        %v895 = vrot.slane %v881, %v894
        %v896 = vlaneseq
        %v897 = vshrl.u32 %v896, 7
        %v898 = vsub.s32 0, %v897
        %v899 = vrot.slane %v882, %v898
        %v900 = vlaneseq
        %v901 = vshrl.u32 %v900, 7
        %v902 = vsub.s32 0, %v901
        %v903 = vrot.slane %v883, %v902
        %v909 = vsel %vm835, %v863, 0
        %911 = vmatprep.subr.mxu0 0.0
        %912 = vmatpush1.msra.mxu0 0.0
        %913 = vmatprep.subr.mxu0 0.0
        %914 = vmatpush1.msra.mxu0 0.0
        %915 = vmatprep.subr.mxu0 0.0
        %916 = vmatpush1.msra.mxu0 0.0
        %917 = vmatprep.subr.mxu0 0.0
        %918 = vmatpush1.msra.mxu0 0.0
        %919 = vmatprep.subr.mxu0 0.0
        %920 = vmatpush1.msra.mxu0 0.0
        %921 = vmatprep.subr.mxu0 0.0
        %922 = vmatpush1.msra.mxu0 0.0
        %923 = vmatprep.subr.mxu0 0.0
        %924 = vmatpush1.msra.mxu0 0.0
        %925 = vmatprep.subr.mxu0 0.0
        %926 = vmatpush1.msra.mxu0 0.0
        %927 = vmatprep.subr.mxu0 0.0
        %928 = vmatpush1.msra.mxu0 0.0
        %929 = vmatprep.subr.mxu0 0.0
        %930 = vmatpush1.msra.mxu0 0.0
        %931 = vmatprep.subr.mxu0 0.0
        %932 = vmatpush1.msra.mxu0 0.0
        %933 = vmatprep.subr.mxu0 0.0
        %934 = vmatpush1.msra.mxu0 0.0
        %935 = vmatprep.subr.mxu0 0.0
        %936 = vmatpush1.msra.mxu0 %v867
        %937 = vmatprep.subr.mxu0 0.0
        %938 = vmatpush1.msra.mxu0 %v866
        %939 = vmatprep.subr.mxu0 0.0
        %940 = vmatpush1.msra.mxu0 %v865
        %941 = vmatprep.subr.mxu0 0.0
        %942 = vmatpush1.msra.mxu0 %v864
        %943 = vmatprep.subr.mxu0 0.0
        %944 = vmatpush2.msra.mxu0 0.0
        %945 = vmatprep.subr.mxu0 0.0
        %946 = vmatpush2.msra.mxu0 0.0
        %947 = vmatprep.subr.mxu0 0.0
        %948 = vmatpush2.msra.mxu0 0.0
        %949 = vmatprep.subr.mxu0 0.0
        %950 = vmatpush2.msra.mxu0 0.0
        %951 = vmatprep.subr.mxu0 0.0
        %952 = vmatpush2.msra.mxu0 0.0
        %953 = vmatprep.subr.mxu0 0.0
        %954 = vmatpush2.msra.mxu0 0.0
        %955 = vmatprep.subr.mxu0 0.0
        %956 = vmatpush2.msra.mxu0 0.0
        %957 = vmatprep.subr.mxu0 0.0
        %958 = vmatpush2.msra.mxu0 0.0
        %959 = vmatprep.subr.mxu0 0.0
        %960 = vmatpush2.msra.mxu0 0.0
        %961 = vmatprep.subr.mxu0 0.0
        %962 = vmatpush2.msra.mxu0 0.0
        %963 = vmatprep.subr.mxu0 0.0
        %964 = vmatpush2.msra.mxu0 0.0
        %965 = vmatprep.subr.mxu0 0.0
        %966 = vmatpush2.msra.mxu0 0.0
        %967 = vmatprep.subr.mxu0 0.0
        %968 = vmatpush2.msra.mxu0 0.0
        %969 = vmatprep.subr.mxu0 0.0
        %970 = vmatpush2.msra.mxu0 0.0
        %971 = vmatprep.subr.mxu0 0.0
        %972 = vmatpush2.msra.mxu0 0.0
        %973 = vmatprep.subr.mxu0 0.0
        %974 = vmatpush2.msra.mxu0 0.0
        %975 = vmatprep.mubr.f32.mxu0 0.0
        %976 = vmatmul.mubr.f32.gmra.mxu0 %v909
        %v977 = vpop.f32.mrf.mxu0
        %v978 = vadd.f32 %v891, %v977
        %v979 = vpop.f32.mrf.mxu0
        %980 = vdwg.mxu0
        %981 = vmatprep.subr.mxu0 0.0
        %982 = vmatpush1.msra.mxu0 0.0
        %983 = vmatprep.subr.mxu0 0.0
        %984 = vmatpush1.msra.mxu0 0.0
        %985 = vmatprep.subr.mxu0 0.0
        %986 = vmatpush1.msra.mxu0 0.0
        %987 = vmatprep.subr.mxu0 0.0
        %988 = vmatpush1.msra.mxu0 0.0
        %989 = vmatprep.subr.mxu0 0.0
        %990 = vmatpush1.msra.mxu0 0.0
        %991 = vmatprep.subr.mxu0 0.0
        %992 = vmatpush1.msra.mxu0 0.0
        %993 = vmatprep.subr.mxu0 0.0
        %994 = vmatpush1.msra.mxu0 0.0
        %995 = vmatprep.subr.mxu0 0.0
        %996 = vmatpush1.msra.mxu0 0.0
        %997 = vmatprep.subr.mxu0 0.0
        %998 = vmatpush1.msra.mxu0 0.0
        %999 = vmatprep.subr.mxu0 0.0
        %1000 = vmatpush1.msra.mxu0 0.0
        %1001 = vmatprep.subr.mxu0 0.0
        %1002 = vmatpush1.msra.mxu0 0.0
        %1003 = vmatprep.subr.mxu0 0.0
        %1004 = vmatpush1.msra.mxu0 0.0
        %1005 = vmatprep.subr.mxu0 0.0
        %1006 = vmatpush1.msra.mxu0 %v871
        %1007 = vmatprep.subr.mxu0 0.0
        %1008 = vmatpush1.msra.mxu0 %v870
        %1009 = vmatprep.subr.mxu0 0.0
        %1010 = vmatpush1.msra.mxu0 %v869
        %1011 = vmatprep.subr.mxu0 0.0
        %1012 = vmatpush1.msra.mxu0 %v868
        %1013 = vmatprep.subr.mxu0 0.0
        %1014 = vmatpush2.msra.mxu0 0.0
        %1015 = vmatprep.subr.mxu0 0.0
        %1016 = vmatpush2.msra.mxu0 0.0
        %1017 = vmatprep.subr.mxu0 0.0
        %1018 = vmatpush2.msra.mxu0 0.0
        %1019 = vmatprep.subr.mxu0 0.0
        %1020 = vmatpush2.msra.mxu0 0.0
        %1021 = vmatprep.subr.mxu0 0.0
        %1022 = vmatpush2.msra.mxu0 0.0
        %1023 = vmatprep.subr.mxu0 0.0
        %1024 = vmatpush2.msra.mxu0 0.0
        %1025 = vmatprep.subr.mxu0 0.0
        %1026 = vmatpush2.msra.mxu0 0.0
        %1027 = vmatprep.subr.mxu0 0.0
        %1028 = vmatpush2.msra.mxu0 0.0
        %1029 = vmatprep.subr.mxu0 0.0
        %1030 = vmatpush2.msra.mxu0 0.0
        %1031 = vmatprep.subr.mxu0 0.0
        %1032 = vmatpush2.msra.mxu0 0.0
        %1033 = vmatprep.subr.mxu0 0.0
        %1034 = vmatpush2.msra.mxu0 0.0
        %1035 = vmatprep.subr.mxu0 0.0
        %1036 = vmatpush2.msra.mxu0 0.0
        %1037 = vmatprep.subr.mxu0 0.0
        %1038 = vmatpush2.msra.mxu0 0.0
        %1039 = vmatprep.subr.mxu0 0.0
        %1040 = vmatpush2.msra.mxu0 0.0
        %1041 = vmatprep.subr.mxu0 0.0
        %1042 = vmatpush2.msra.mxu0 0.0
        %1043 = vmatprep.subr.mxu0 0.0
        %1044 = vmatpush2.msra.mxu0 0.0
        %1045 = vmatprep.mubr.f32.mxu0 0.0
        %1046 = vmatmul.mubr.f32.gmra.mxu0 %v909
        %v1047 = vpop.f32.mrf.mxu0
        %v1048 = vadd.f32 %v895, %v1047
        %v1049 = vpop.f32.mrf.mxu0
        %1050 = vdwg.mxu0
        %1051 = vmatprep.subr.mxu0 0.0
        %1052 = vmatpush1.msra.mxu0 0.0
        %1053 = vmatprep.subr.mxu0 0.0
        %1054 = vmatpush1.msra.mxu0 0.0
        %1055 = vmatprep.subr.mxu0 0.0
        %1056 = vmatpush1.msra.mxu0 0.0
        %1057 = vmatprep.subr.mxu0 0.0
        %1058 = vmatpush1.msra.mxu0 0.0
        %1059 = vmatprep.subr.mxu0 0.0
        %1060 = vmatpush1.msra.mxu0 0.0
        %1061 = vmatprep.subr.mxu0 0.0
        %1062 = vmatpush1.msra.mxu0 0.0
        %1063 = vmatprep.subr.mxu0 0.0
        %1064 = vmatpush1.msra.mxu0 0.0
        %1065 = vmatprep.subr.mxu0 0.0
        %1066 = vmatpush1.msra.mxu0 0.0
        %1067 = vmatprep.subr.mxu0 0.0
        %1068 = vmatpush1.msra.mxu0 0.0
        %1069 = vmatprep.subr.mxu0 0.0
        %1070 = vmatpush1.msra.mxu0 0.0
        %1071 = vmatprep.subr.mxu0 0.0
        %1072 = vmatpush1.msra.mxu0 0.0
        %1073 = vmatprep.subr.mxu0 0.0
        %1074 = vmatpush1.msra.mxu0 0.0
        %1075 = vmatprep.subr.mxu0 0.0
        %1076 = vmatpush1.msra.mxu0 %v875
        %1077 = vmatprep.subr.mxu0 0.0
        %1078 = vmatpush1.msra.mxu0 %v874
        %1079 = vmatprep.subr.mxu0 0.0
        %1080 = vmatpush1.msra.mxu0 %v873
        %1081 = vmatprep.subr.mxu0 0.0
        %1082 = vmatpush1.msra.mxu0 %v872
        %1083 = vmatprep.subr.mxu0 0.0
        %1084 = vmatpush2.msra.mxu0 0.0
        %1085 = vmatprep.subr.mxu0 0.0
        %1086 = vmatpush2.msra.mxu0 0.0
        %1087 = vmatprep.subr.mxu0 0.0
        %1088 = vmatpush2.msra.mxu0 0.0
        %1089 = vmatprep.subr.mxu0 0.0
        %1090 = vmatpush2.msra.mxu0 0.0
        %1091 = vmatprep.subr.mxu0 0.0
        %1092 = vmatpush2.msra.mxu0 0.0
        %1093 = vmatprep.subr.mxu0 0.0
        %1094 = vmatpush2.msra.mxu0 0.0
        %1095 = vmatprep.subr.mxu0 0.0
        %1096 = vmatpush2.msra.mxu0 0.0
        %1097 = vmatprep.subr.mxu0 0.0
        %1098 = vmatpush2.msra.mxu0 0.0
        %1099 = vmatprep.subr.mxu0 0.0
        %1100 = vmatpush2.msra.mxu0 0.0
        %1101 = vmatprep.subr.mxu0 0.0
        %1102 = vmatpush2.msra.mxu0 0.0
        %1103 = vmatprep.subr.mxu0 0.0
        %1104 = vmatpush2.msra.mxu0 0.0
        %1105 = vmatprep.subr.mxu0 0.0
        %1106 = vmatpush2.msra.mxu0 0.0
        %1107 = vmatprep.subr.mxu0 0.0
        %1108 = vmatpush2.msra.mxu0 0.0
        %1109 = vmatprep.subr.mxu0 0.0
        %1110 = vmatpush2.msra.mxu0 0.0
        %1111 = vmatprep.subr.mxu0 0.0
        %1112 = vmatpush2.msra.mxu0 0.0
        %1113 = vmatprep.subr.mxu0 0.0
        %1114 = vmatpush2.msra.mxu0 0.0
        %1115 = vmatprep.mubr.f32.mxu0 0.0
        %1116 = vmatmul.mubr.f32.gmra.mxu0 %v909
        %v1117 = vpop.f32.mrf.mxu0
        %v1118 = vadd.f32 %v899, %v1117
        %v1119 = vpop.f32.mrf.mxu0
        %1120 = vdwg.mxu0
        %1121 = vmatprep.subr.mxu0 0.0
        %1122 = vmatpush1.msra.mxu0 0.0
        %1123 = vmatprep.subr.mxu0 0.0
        %1124 = vmatpush1.msra.mxu0 0.0
        %1125 = vmatprep.subr.mxu0 0.0
        %1126 = vmatpush1.msra.mxu0 0.0
        %1127 = vmatprep.subr.mxu0 0.0
        %1128 = vmatpush1.msra.mxu0 0.0
        %1129 = vmatprep.subr.mxu0 0.0
        %1130 = vmatpush1.msra.mxu0 0.0
        %1131 = vmatprep.subr.mxu0 0.0
        %1132 = vmatpush1.msra.mxu0 0.0
        %1133 = vmatprep.subr.mxu0 0.0
        %1134 = vmatpush1.msra.mxu0 0.0
        %1135 = vmatprep.subr.mxu0 0.0
        %1136 = vmatpush1.msra.mxu0 0.0
        %1137 = vmatprep.subr.mxu0 0.0
        %1138 = vmatpush1.msra.mxu0 0.0
        %1139 = vmatprep.subr.mxu0 0.0
        %1140 = vmatpush1.msra.mxu0 0.0
        %1141 = vmatprep.subr.mxu0 0.0
        %1142 = vmatpush1.msra.mxu0 0.0
        %1143 = vmatprep.subr.mxu0 0.0
        %1144 = vmatpush1.msra.mxu0 0.0
        %1145 = vmatprep.subr.mxu0 0.0
        %1146 = vmatpush1.msra.mxu0 %v879
        %1147 = vmatprep.subr.mxu0 0.0
        %1148 = vmatpush1.msra.mxu0 %v878
        %1149 = vmatprep.subr.mxu0 0.0
        %1150 = vmatpush1.msra.mxu0 %v877
        %1151 = vmatprep.subr.mxu0 0.0
        %1152 = vmatpush1.msra.mxu0 %v876
        %1153 = vmatprep.subr.mxu0 0.0
        %1154 = vmatpush2.msra.mxu0 0.0
        %1155 = vmatprep.subr.mxu0 0.0
        %1156 = vmatpush2.msra.mxu0 0.0
        %1157 = vmatprep.subr.mxu0 0.0
        %1158 = vmatpush2.msra.mxu0 0.0
        %1159 = vmatprep.subr.mxu0 0.0
        %1160 = vmatpush2.msra.mxu0 0.0
        %1161 = vmatprep.subr.mxu0 0.0
        %1162 = vmatpush2.msra.mxu0 0.0
        %1163 = vmatprep.subr.mxu0 0.0
        %1164 = vmatpush2.msra.mxu0 0.0
        %1165 = vmatprep.subr.mxu0 0.0
        %1166 = vmatpush2.msra.mxu0 0.0
        %1167 = vmatprep.subr.mxu0 0.0
        %1168 = vmatpush2.msra.mxu0 0.0
        %1169 = vmatprep.subr.mxu0 0.0
        %1170 = vmatpush2.msra.mxu0 0.0
        %1171 = vmatprep.subr.mxu0 0.0
        %1172 = vmatpush2.msra.mxu0 0.0
        %1173 = vmatprep.subr.mxu0 0.0
        %1174 = vmatpush2.msra.mxu0 0.0
        %1175 = vmatprep.subr.mxu0 0.0
        %1176 = vmatpush2.msra.mxu0 0.0
        %1177 = vmatprep.subr.mxu0 0.0
        %1178 = vmatpush2.msra.mxu0 0.0
        %1179 = vmatprep.subr.mxu0 0.0
        %1180 = vmatpush2.msra.mxu0 0.0
        %1181 = vmatprep.subr.mxu0 0.0
        %1182 = vmatpush2.msra.mxu0 0.0
        %1183 = vmatprep.subr.mxu0 0.0
        %1184 = vmatpush2.msra.mxu0 0.0
        %1185 = vmatprep.mubr.f32.mxu0 0.0
        %1186 = vmatmul.mubr.f32.gmra.mxu0 %v909
        %v1187 = vpop.f32.mrf.mxu0
        %v1188 = vadd.f32 %v903, %v1187
        %v1189 = vpop.f32.mrf.mxu0
        %1190 = vdwg.mxu0
        %v1191 = vld [vmem:[%s775] sm:$0xff]
        %v1192 = vld [vmem:[%s775 + $0x8] sm:$0xff]
        %v1193 = vld [vmem:[%s775 + $0x10] sm:$0xff]
        %v1194 = vld [vmem:[%s775 + $0x18] sm:$0xff]
        %v1195 = vld [vmem:[%s775 + $0x20] sm:$0xff]
        %v1196 = vld [vmem:[%s775 + $0x28] sm:$0xff]
        %v1197 = vld [vmem:[%s775 + $0x30] sm:$0xff]
        %v1198 = vld [vmem:[%s775 + $0x38] sm:$0xff]
        %v1199 = vld [vmem:[%s775 + $0x40] sm:$0xff]
        %v1200 = vld [vmem:[%s775 + $0x48] sm:$0xff]
        %v1201 = vld [vmem:[%s775 + $0x50] sm:$0xff]
        %v1202 = vld [vmem:[%s775 + $0x58] sm:$0xff]
        %v1203 = vld [vmem:[%s775 + $0x60] sm:$0xff]
        %v1204 = vld [vmem:[%s775 + $0x68] sm:$0xff]
        %v1205 = vld [vmem:[%s775 + $0x70] sm:$0xff]
        %v1206 = vld [vmem:[%s775 + $0x78] sm:$0xff]
        %v1207 = vld [vmem:[%s779] sm:$0x1]
        %v1208 = vld [vmem:[%s779 + $0x1] sm:$0x1]
        %v1209 = vld [vmem:[%s779 + $0x2] sm:$0x1]
        %v1210 = vld [vmem:[%s779 + $0x3] sm:$0x1]
        %v1215 = vlaneseq
        %v1216 = vshrl.u32 %v1215, 7
        %v1217 = vsub.s32 0, %v1216
        %v1218 = vrot.slane %v1207, %v1217
        %v1219 = vlaneseq
        %v1220 = vshrl.u32 %v1219, 7
        %v1221 = vsub.s32 0, %v1220
        %v1222 = vrot.slane %v1208, %v1221
        %v1223 = vlaneseq
        %v1224 = vshrl.u32 %v1223, 7
        %v1225 = vsub.s32 0, %v1224
        %v1226 = vrot.slane %v1209, %v1225
        %v1227 = vlaneseq
        %v1228 = vshrl.u32 %v1227, 7
        %v1229 = vsub.s32 0, %v1228
        %v1230 = vrot.slane %v1210, %v1229
        %1235 = vmatprep.subr.mxu0 0.0
        %1236 = vmatpush1.msra.mxu0 0.0
        %1237 = vmatprep.subr.mxu0 0.0
        %1238 = vmatpush1.msra.mxu0 0.0
        %1239 = vmatprep.subr.mxu0 0.0
        %1240 = vmatpush1.msra.mxu0 0.0
        %1241 = vmatprep.subr.mxu0 0.0
        %1242 = vmatpush1.msra.mxu0 0.0
        %1243 = vmatprep.subr.mxu0 0.0
        %1244 = vmatpush1.msra.mxu0 0.0
        %1245 = vmatprep.subr.mxu0 0.0
        %1246 = vmatpush1.msra.mxu0 0.0
        %1247 = vmatprep.subr.mxu0 0.0
        %1248 = vmatpush1.msra.mxu0 0.0
        %1249 = vmatprep.subr.mxu0 0.0
        %1250 = vmatpush1.msra.mxu0 0.0
        %1251 = vmatprep.subr.mxu0 0.0
        %1252 = vmatpush1.msra.mxu0 0.0
        %1253 = vmatprep.subr.mxu0 0.0
        %1254 = vmatpush1.msra.mxu0 0.0
        %1255 = vmatprep.subr.mxu0 0.0
        %1256 = vmatpush1.msra.mxu0 0.0
        %1257 = vmatprep.subr.mxu0 0.0
        %1258 = vmatpush1.msra.mxu0 0.0
        %1259 = vmatprep.subr.mxu0 0.0
        %1260 = vmatpush1.msra.mxu0 %v1194
        %1261 = vmatprep.subr.mxu0 0.0
        %1262 = vmatpush1.msra.mxu0 %v1193
        %1263 = vmatprep.subr.mxu0 0.0
        %1264 = vmatpush1.msra.mxu0 %v1192
        %1265 = vmatprep.subr.mxu0 0.0
        %1266 = vmatpush1.msra.mxu0 %v1191
        %1267 = vmatprep.subr.mxu0 0.0
        %1268 = vmatpush2.msra.mxu0 0.0
        %1269 = vmatprep.subr.mxu0 0.0
        %1270 = vmatpush2.msra.mxu0 0.0
        %1271 = vmatprep.subr.mxu0 0.0
        %1272 = vmatpush2.msra.mxu0 0.0
        %1273 = vmatprep.subr.mxu0 0.0
        %1274 = vmatpush2.msra.mxu0 0.0
        %1275 = vmatprep.subr.mxu0 0.0
        %1276 = vmatpush2.msra.mxu0 0.0
        %1277 = vmatprep.subr.mxu0 0.0
        %1278 = vmatpush2.msra.mxu0 0.0
        %1279 = vmatprep.subr.mxu0 0.0
        %1280 = vmatpush2.msra.mxu0 0.0
        %1281 = vmatprep.subr.mxu0 0.0
        %1282 = vmatpush2.msra.mxu0 0.0
        %1283 = vmatprep.subr.mxu0 0.0
        %1284 = vmatpush2.msra.mxu0 0.0
        %1285 = vmatprep.subr.mxu0 0.0
        %1286 = vmatpush2.msra.mxu0 0.0
        %1287 = vmatprep.subr.mxu0 0.0
        %1288 = vmatpush2.msra.mxu0 0.0
        %1289 = vmatprep.subr.mxu0 0.0
        %1290 = vmatpush2.msra.mxu0 0.0
        %1291 = vmatprep.subr.mxu0 0.0
        %1292 = vmatpush2.msra.mxu0 0.0
        %1293 = vmatprep.subr.mxu0 0.0
        %1294 = vmatpush2.msra.mxu0 0.0
        %1295 = vmatprep.subr.mxu0 0.0
        %1296 = vmatpush2.msra.mxu0 0.0
        %1297 = vmatprep.subr.mxu0 0.0
        %1298 = vmatpush2.msra.mxu0 0.0
        %1299 = vmatprep.mubr.f32.mxu0 0.0
        %1300 = vmatmul.mubr.f32.gmra.mxu0 %v909
        %v1301 = vpop.f32.mrf.mxu0
        %v1302 = vadd.f32 %v1218, %v1301
        %v1303 = vpop.f32.mrf.mxu0
        %1304 = vdwg.mxu0
        %1305 = vmatprep.subr.mxu0 0.0
        %1306 = vmatpush1.msra.mxu0 0.0
        %1307 = vmatprep.subr.mxu0 0.0
        %1308 = vmatpush1.msra.mxu0 0.0
        %1309 = vmatprep.subr.mxu0 0.0
        %1310 = vmatpush1.msra.mxu0 0.0
        %1311 = vmatprep.subr.mxu0 0.0
        %1312 = vmatpush1.msra.mxu0 0.0
        %1313 = vmatprep.subr.mxu0 0.0
        %1314 = vmatpush1.msra.mxu0 0.0
        %1315 = vmatprep.subr.mxu0 0.0
        %1316 = vmatpush1.msra.mxu0 0.0
        %1317 = vmatprep.subr.mxu0 0.0
        %1318 = vmatpush1.msra.mxu0 0.0
        %1319 = vmatprep.subr.mxu0 0.0
        %1320 = vmatpush1.msra.mxu0 0.0
        %1321 = vmatprep.subr.mxu0 0.0
        %1322 = vmatpush1.msra.mxu0 0.0
        %1323 = vmatprep.subr.mxu0 0.0
        %1324 = vmatpush1.msra.mxu0 0.0
        %1325 = vmatprep.subr.mxu0 0.0
        %1326 = vmatpush1.msra.mxu0 0.0
        %1327 = vmatprep.subr.mxu0 0.0
        %1328 = vmatpush1.msra.mxu0 0.0
        %1329 = vmatprep.subr.mxu0 0.0
        %1330 = vmatpush1.msra.mxu0 %v1198
        %1331 = vmatprep.subr.mxu0 0.0
        %1332 = vmatpush1.msra.mxu0 %v1197
        %1333 = vmatprep.subr.mxu0 0.0
        %1334 = vmatpush1.msra.mxu0 %v1196
        %1335 = vmatprep.subr.mxu0 0.0
        %1336 = vmatpush1.msra.mxu0 %v1195
        %1337 = vmatprep.subr.mxu0 0.0
        %1338 = vmatpush2.msra.mxu0 0.0
        %1339 = vmatprep.subr.mxu0 0.0
        %1340 = vmatpush2.msra.mxu0 0.0
        %1341 = vmatprep.subr.mxu0 0.0
        %1342 = vmatpush2.msra.mxu0 0.0
        %1343 = vmatprep.subr.mxu0 0.0
        %1344 = vmatpush2.msra.mxu0 0.0
        %1345 = vmatprep.subr.mxu0 0.0
        %1346 = vmatpush2.msra.mxu0 0.0
        %1347 = vmatprep.subr.mxu0 0.0
        %1348 = vmatpush2.msra.mxu0 0.0
        %1349 = vmatprep.subr.mxu0 0.0
        %1350 = vmatpush2.msra.mxu0 0.0
        %1351 = vmatprep.subr.mxu0 0.0
        %1352 = vmatpush2.msra.mxu0 0.0
        %1353 = vmatprep.subr.mxu0 0.0
        %1354 = vmatpush2.msra.mxu0 0.0
        %1355 = vmatprep.subr.mxu0 0.0
        %1356 = vmatpush2.msra.mxu0 0.0
        %1357 = vmatprep.subr.mxu0 0.0
        %1358 = vmatpush2.msra.mxu0 0.0
        %1359 = vmatprep.subr.mxu0 0.0
        %1360 = vmatpush2.msra.mxu0 0.0
        %1361 = vmatprep.subr.mxu0 0.0
        %1362 = vmatpush2.msra.mxu0 0.0
        %1363 = vmatprep.subr.mxu0 0.0
        %1364 = vmatpush2.msra.mxu0 0.0
        %1365 = vmatprep.subr.mxu0 0.0
        %1366 = vmatpush2.msra.mxu0 0.0
        %1367 = vmatprep.subr.mxu0 0.0
        %1368 = vmatpush2.msra.mxu0 0.0
        %1369 = vmatprep.mubr.f32.mxu0 0.0
        %1370 = vmatmul.mubr.f32.gmra.mxu0 %v909
        %v1371 = vpop.f32.mrf.mxu0
        %v1372 = vadd.f32 %v1222, %v1371
        %v1373 = vpop.f32.mrf.mxu0
        %1374 = vdwg.mxu0
        %1375 = vmatprep.subr.mxu0 0.0
        %1376 = vmatpush1.msra.mxu0 0.0
        %1377 = vmatprep.subr.mxu0 0.0
        %1378 = vmatpush1.msra.mxu0 0.0
        %1379 = vmatprep.subr.mxu0 0.0
        %1380 = vmatpush1.msra.mxu0 0.0
        %1381 = vmatprep.subr.mxu0 0.0
        %1382 = vmatpush1.msra.mxu0 0.0
        %1383 = vmatprep.subr.mxu0 0.0
        %1384 = vmatpush1.msra.mxu0 0.0
        %1385 = vmatprep.subr.mxu0 0.0
        %1386 = vmatpush1.msra.mxu0 0.0
        %1387 = vmatprep.subr.mxu0 0.0
        %1388 = vmatpush1.msra.mxu0 0.0
        %1389 = vmatprep.subr.mxu0 0.0
        %1390 = vmatpush1.msra.mxu0 0.0
        %1391 = vmatprep.subr.mxu0 0.0
        %1392 = vmatpush1.msra.mxu0 0.0
        %1393 = vmatprep.subr.mxu0 0.0
        %1394 = vmatpush1.msra.mxu0 0.0
        %1395 = vmatprep.subr.mxu0 0.0
        %1396 = vmatpush1.msra.mxu0 0.0
        %1397 = vmatprep.subr.mxu0 0.0
        %1398 = vmatpush1.msra.mxu0 0.0
        %1399 = vmatprep.subr.mxu0 0.0
        %1400 = vmatpush1.msra.mxu0 %v1202
        %1401 = vmatprep.subr.mxu0 0.0
        %1402 = vmatpush1.msra.mxu0 %v1201
        %1403 = vmatprep.subr.mxu0 0.0
        %1404 = vmatpush1.msra.mxu0 %v1200
        %1405 = vmatprep.subr.mxu0 0.0
        %1406 = vmatpush1.msra.mxu0 %v1199
        %1407 = vmatprep.subr.mxu0 0.0
        %1408 = vmatpush2.msra.mxu0 0.0
        %1409 = vmatprep.subr.mxu0 0.0
        %1410 = vmatpush2.msra.mxu0 0.0
        %1411 = vmatprep.subr.mxu0 0.0
        %1412 = vmatpush2.msra.mxu0 0.0
        %1413 = vmatprep.subr.mxu0 0.0
        %1414 = vmatpush2.msra.mxu0 0.0
        %1415 = vmatprep.subr.mxu0 0.0
        %1416 = vmatpush2.msra.mxu0 0.0
        %1417 = vmatprep.subr.mxu0 0.0
        %1418 = vmatpush2.msra.mxu0 0.0
        %1419 = vmatprep.subr.mxu0 0.0
        %1420 = vmatpush2.msra.mxu0 0.0
        %1421 = vmatprep.subr.mxu0 0.0
        %1422 = vmatpush2.msra.mxu0 0.0
        %1423 = vmatprep.subr.mxu0 0.0
        %1424 = vmatpush2.msra.mxu0 0.0
        %1425 = vmatprep.subr.mxu0 0.0
        %1426 = vmatpush2.msra.mxu0 0.0
        %1427 = vmatprep.subr.mxu0 0.0
        %1428 = vmatpush2.msra.mxu0 0.0
        %1429 = vmatprep.subr.mxu0 0.0
        %1430 = vmatpush2.msra.mxu0 0.0
        %1431 = vmatprep.subr.mxu0 0.0
        %1432 = vmatpush2.msra.mxu0 0.0
        %1433 = vmatprep.subr.mxu0 0.0
        %1434 = vmatpush2.msra.mxu0 0.0
        %1435 = vmatprep.subr.mxu0 0.0
        %1436 = vmatpush2.msra.mxu0 0.0
        %1437 = vmatprep.subr.mxu0 0.0
        %1438 = vmatpush2.msra.mxu0 0.0
        %1439 = vmatprep.mubr.f32.mxu0 0.0
        %1440 = vmatmul.mubr.f32.gmra.mxu0 %v909
        %v1441 = vpop.f32.mrf.mxu0
        %v1442 = vadd.f32 %v1226, %v1441
        %v1443 = vpop.f32.mrf.mxu0
        %1444 = vdwg.mxu0
        %1445 = vmatprep.subr.mxu0 0.0
        %1446 = vmatpush1.msra.mxu0 0.0
        %1447 = vmatprep.subr.mxu0 0.0
        %1448 = vmatpush1.msra.mxu0 0.0
        %1449 = vmatprep.subr.mxu0 0.0
        %1450 = vmatpush1.msra.mxu0 0.0
        %1451 = vmatprep.subr.mxu0 0.0
        %1452 = vmatpush1.msra.mxu0 0.0
        %1453 = vmatprep.subr.mxu0 0.0
        %1454 = vmatpush1.msra.mxu0 0.0
        %1455 = vmatprep.subr.mxu0 0.0
        %1456 = vmatpush1.msra.mxu0 0.0
        %1457 = vmatprep.subr.mxu0 0.0
        %1458 = vmatpush1.msra.mxu0 0.0
        %1459 = vmatprep.subr.mxu0 0.0
        %1460 = vmatpush1.msra.mxu0 0.0
        %1461 = vmatprep.subr.mxu0 0.0
        %1462 = vmatpush1.msra.mxu0 0.0
        %1463 = vmatprep.subr.mxu0 0.0
        %1464 = vmatpush1.msra.mxu0 0.0
        %1465 = vmatprep.subr.mxu0 0.0
        %1466 = vmatpush1.msra.mxu0 0.0
        %1467 = vmatprep.subr.mxu0 0.0
        %1468 = vmatpush1.msra.mxu0 0.0
        %1469 = vmatprep.subr.mxu0 0.0
        %1470 = vmatpush1.msra.mxu0 %v1206
        %1471 = vmatprep.subr.mxu0 0.0
        %1472 = vmatpush1.msra.mxu0 %v1205
        %1473 = vmatprep.subr.mxu0 0.0
        %1474 = vmatpush1.msra.mxu0 %v1204
        %1475 = vmatprep.subr.mxu0 0.0
        %1476 = vmatpush1.msra.mxu0 %v1203
        %1477 = vmatprep.subr.mxu0 0.0
        %1478 = vmatpush2.msra.mxu0 0.0
        %1479 = vmatprep.subr.mxu0 0.0
        %1480 = vmatpush2.msra.mxu0 0.0
        %1481 = vmatprep.subr.mxu0 0.0
        %1482 = vmatpush2.msra.mxu0 0.0
        %1483 = vmatprep.subr.mxu0 0.0
        %1484 = vmatpush2.msra.mxu0 0.0
        %1485 = vmatprep.subr.mxu0 0.0
        %1486 = vmatpush2.msra.mxu0 0.0
        %1487 = vmatprep.subr.mxu0 0.0
        %1488 = vmatpush2.msra.mxu0 0.0
        %1489 = vmatprep.subr.mxu0 0.0
        %1490 = vmatpush2.msra.mxu0 0.0
        %1491 = vmatprep.subr.mxu0 0.0
        %1492 = vmatpush2.msra.mxu0 0.0
        %1493 = vmatprep.subr.mxu0 0.0
        %1494 = vmatpush2.msra.mxu0 0.0
        %1495 = vmatprep.subr.mxu0 0.0
        %1496 = vmatpush2.msra.mxu0 0.0
        %1497 = vmatprep.subr.mxu0 0.0
        %1498 = vmatpush2.msra.mxu0 0.0
        %1499 = vmatprep.subr.mxu0 0.0
        %1500 = vmatpush2.msra.mxu0 0.0
        %1501 = vmatprep.subr.mxu0 0.0
        %1502 = vmatpush2.msra.mxu0 0.0
        %1503 = vmatprep.subr.mxu0 0.0
        %1504 = vmatpush2.msra.mxu0 0.0
        %1505 = vmatprep.subr.mxu0 0.0
        %1506 = vmatpush2.msra.mxu0 0.0
        %1507 = vmatprep.subr.mxu0 0.0
        %1508 = vmatpush2.msra.mxu0 0.0
        %1509 = vmatprep.mubr.f32.mxu0 0.0
        %1510 = vmatmul.mubr.f32.gmra.mxu0 %v909
        %v1511 = vpop.f32.mrf.mxu0
        %v1512 = vadd.f32 %v1230, %v1511
        %v1513 = vpop.f32.mrf.mxu0
        %1514 = vdwg.mxu0
        %v1515 = vld [vmem:[%s784] sm:$0xff]
        %v1516 = vld [vmem:[%s784 + $0x8] sm:$0xff]
        %v1517 = vld [vmem:[%s784 + $0x10] sm:$0xff]
        %v1518 = vld [vmem:[%s784 + $0x18] sm:$0xff]
        %v1519 = vld [vmem:[%s784 + $0x20] sm:$0xff]
        %v1520 = vld [vmem:[%s784 + $0x28] sm:$0xff]
        %v1521 = vld [vmem:[%s784 + $0x30] sm:$0xff]
        %v1522 = vld [vmem:[%s784 + $0x38] sm:$0xff]
        %v1523 = vld [vmem:[%s784 + $0x40] sm:$0xff]
        %v1524 = vld [vmem:[%s784 + $0x48] sm:$0xff]
        %v1525 = vld [vmem:[%s784 + $0x50] sm:$0xff]
        %v1526 = vld [vmem:[%s784 + $0x58] sm:$0xff]
        %v1527 = vld [vmem:[%s784 + $0x60] sm:$0xff]
        %v1528 = vld [vmem:[%s784 + $0x68] sm:$0xff]
        %v1529 = vld [vmem:[%s784 + $0x70] sm:$0xff]
        %v1530 = vld [vmem:[%s784 + $0x78] sm:$0xff]
        %v1531 = vld [vmem:[%s788] sm:$0x1]
        %v1532 = vld [vmem:[%s788 + $0x1] sm:$0x1]
        %v1533 = vld [vmem:[%s788 + $0x2] sm:$0x1]
        %v1534 = vld [vmem:[%s788 + $0x3] sm:$0x1]
        %v1539 = vlaneseq
        %v1540 = vshrl.u32 %v1539, 7
        %v1541 = vsub.s32 0, %v1540
        %v1542 = vrot.slane %v1531, %v1541
        %v1543 = vlaneseq
        %v1544 = vshrl.u32 %v1543, 7
        %v1545 = vsub.s32 0, %v1544
        %v1546 = vrot.slane %v1532, %v1545
        %v1547 = vlaneseq
        %v1548 = vshrl.u32 %v1547, 7
        %v1549 = vsub.s32 0, %v1548
        %v1550 = vrot.slane %v1533, %v1549
        %v1551 = vlaneseq
        %v1552 = vshrl.u32 %v1551, 7
        %v1553 = vsub.s32 0, %v1552
        %v1554 = vrot.slane %v1534, %v1553
        %1559 = vmatprep.subr.mxu0 0.0
        %1560 = vmatpush1.msra.mxu0 0.0
        %1561 = vmatprep.subr.mxu0 0.0
        %1562 = vmatpush1.msra.mxu0 0.0
        %1563 = vmatprep.subr.mxu0 0.0
        %1564 = vmatpush1.msra.mxu0 0.0
        %1565 = vmatprep.subr.mxu0 0.0
        %1566 = vmatpush1.msra.mxu0 0.0
        %1567 = vmatprep.subr.mxu0 0.0
        %1568 = vmatpush1.msra.mxu0 0.0
        %1569 = vmatprep.subr.mxu0 0.0
        %1570 = vmatpush1.msra.mxu0 0.0
        %1571 = vmatprep.subr.mxu0 0.0
        %1572 = vmatpush1.msra.mxu0 0.0
        %1573 = vmatprep.subr.mxu0 0.0
        %1574 = vmatpush1.msra.mxu0 0.0
        %1575 = vmatprep.subr.mxu0 0.0
        %1576 = vmatpush1.msra.mxu0 0.0
        %1577 = vmatprep.subr.mxu0 0.0
        %1578 = vmatpush1.msra.mxu0 0.0
        %1579 = vmatprep.subr.mxu0 0.0
        %1580 = vmatpush1.msra.mxu0 0.0
        %1581 = vmatprep.subr.mxu0 0.0
        %1582 = vmatpush1.msra.mxu0 0.0
        %1583 = vmatprep.subr.mxu0 0.0
        %1584 = vmatpush1.msra.mxu0 %v1518
        %1585 = vmatprep.subr.mxu0 0.0
        %1586 = vmatpush1.msra.mxu0 %v1517
        %1587 = vmatprep.subr.mxu0 0.0
        %1588 = vmatpush1.msra.mxu0 %v1516
        %1589 = vmatprep.subr.mxu0 0.0
        %1590 = vmatpush1.msra.mxu0 %v1515
        %1591 = vmatprep.subr.mxu0 0.0
        %1592 = vmatpush2.msra.mxu0 0.0
        %1593 = vmatprep.subr.mxu0 0.0
        %1594 = vmatpush2.msra.mxu0 0.0
        %1595 = vmatprep.subr.mxu0 0.0
        %1596 = vmatpush2.msra.mxu0 0.0
        %1597 = vmatprep.subr.mxu0 0.0
        %1598 = vmatpush2.msra.mxu0 0.0
        %1599 = vmatprep.subr.mxu0 0.0
        %1600 = vmatpush2.msra.mxu0 0.0
        %1601 = vmatprep.subr.mxu0 0.0
        %1602 = vmatpush2.msra.mxu0 0.0
        %1603 = vmatprep.subr.mxu0 0.0
        %1604 = vmatpush2.msra.mxu0 0.0
        %1605 = vmatprep.subr.mxu0 0.0
        %1606 = vmatpush2.msra.mxu0 0.0
        %1607 = vmatprep.subr.mxu0 0.0
        %1608 = vmatpush2.msra.mxu0 0.0
        %1609 = vmatprep.subr.mxu0 0.0
        %1610 = vmatpush2.msra.mxu0 0.0
        %1611 = vmatprep.subr.mxu0 0.0
        %1612 = vmatpush2.msra.mxu0 0.0
        %1613 = vmatprep.subr.mxu0 0.0
        %1614 = vmatpush2.msra.mxu0 0.0
        %1615 = vmatprep.subr.mxu0 0.0
        %1616 = vmatpush2.msra.mxu0 0.0
        %1617 = vmatprep.subr.mxu0 0.0
        %1618 = vmatpush2.msra.mxu0 0.0
        %1619 = vmatprep.subr.mxu0 0.0
        %1620 = vmatpush2.msra.mxu0 0.0
        %1621 = vmatprep.subr.mxu0 0.0
        %1622 = vmatpush2.msra.mxu0 0.0
        %1623 = vmatprep.mubr.f32.mxu0 0.0
        %1624 = vmatmul.mubr.f32.gmra.mxu0 %v909
        %v1625 = vpop.f32.mrf.mxu0
        %v1626 = vadd.f32 %v1542, %v1625
        %v1627 = vpop.f32.mrf.mxu0
        %1628 = vdwg.mxu0
        %1629 = vmatprep.subr.mxu0 0.0
        %1630 = vmatpush1.msra.mxu0 0.0
        %1631 = vmatprep.subr.mxu0 0.0
        %1632 = vmatpush1.msra.mxu0 0.0
        %1633 = vmatprep.subr.mxu0 0.0
        %1634 = vmatpush1.msra.mxu0 0.0
        %1635 = vmatprep.subr.mxu0 0.0
        %1636 = vmatpush1.msra.mxu0 0.0
        %1637 = vmatprep.subr.mxu0 0.0
        %1638 = vmatpush1.msra.mxu0 0.0
        %1639 = vmatprep.subr.mxu0 0.0
        %1640 = vmatpush1.msra.mxu0 0.0
        %1641 = vmatprep.subr.mxu0 0.0
        %1642 = vmatpush1.msra.mxu0 0.0
        %1643 = vmatprep.subr.mxu0 0.0
        %1644 = vmatpush1.msra.mxu0 0.0
        %1645 = vmatprep.subr.mxu0 0.0
        %1646 = vmatpush1.msra.mxu0 0.0
        %1647 = vmatprep.subr.mxu0 0.0
        %1648 = vmatpush1.msra.mxu0 0.0
        %1649 = vmatprep.subr.mxu0 0.0
        %1650 = vmatpush1.msra.mxu0 0.0
        %1651 = vmatprep.subr.mxu0 0.0
        %1652 = vmatpush1.msra.mxu0 0.0
        %1653 = vmatprep.subr.mxu0 0.0
        %1654 = vmatpush1.msra.mxu0 %v1522
        %1655 = vmatprep.subr.mxu0 0.0
        %1656 = vmatpush1.msra.mxu0 %v1521
        %1657 = vmatprep.subr.mxu0 0.0
        %1658 = vmatpush1.msra.mxu0 %v1520
        %1659 = vmatprep.subr.mxu0 0.0
        %1660 = vmatpush1.msra.mxu0 %v1519
        %1661 = vmatprep.subr.mxu0 0.0
        %1662 = vmatpush2.msra.mxu0 0.0
        %1663 = vmatprep.subr.mxu0 0.0
        %1664 = vmatpush2.msra.mxu0 0.0
        %1665 = vmatprep.subr.mxu0 0.0
        %1666 = vmatpush2.msra.mxu0 0.0
        %1667 = vmatprep.subr.mxu0 0.0
        %1668 = vmatpush2.msra.mxu0 0.0
        %1669 = vmatprep.subr.mxu0 0.0
        %1670 = vmatpush2.msra.mxu0 0.0
        %1671 = vmatprep.subr.mxu0 0.0
        %1672 = vmatpush2.msra.mxu0 0.0
        %1673 = vmatprep.subr.mxu0 0.0
        %1674 = vmatpush2.msra.mxu0 0.0
        %1675 = vmatprep.subr.mxu0 0.0
        %1676 = vmatpush2.msra.mxu0 0.0
        %1677 = vmatprep.subr.mxu0 0.0
        %1678 = vmatpush2.msra.mxu0 0.0
        %1679 = vmatprep.subr.mxu0 0.0
        %1680 = vmatpush2.msra.mxu0 0.0
        %1681 = vmatprep.subr.mxu0 0.0
        %1682 = vmatpush2.msra.mxu0 0.0
        %1683 = vmatprep.subr.mxu0 0.0
        %1684 = vmatpush2.msra.mxu0 0.0
        %1685 = vmatprep.subr.mxu0 0.0
        %1686 = vmatpush2.msra.mxu0 0.0
        %1687 = vmatprep.subr.mxu0 0.0
        %1688 = vmatpush2.msra.mxu0 0.0
        %1689 = vmatprep.subr.mxu0 0.0
        %1690 = vmatpush2.msra.mxu0 0.0
        %1691 = vmatprep.subr.mxu0 0.0
        %1692 = vmatpush2.msra.mxu0 0.0
        %1693 = vmatprep.mubr.f32.mxu0 0.0
        %1694 = vmatmul.mubr.f32.gmra.mxu0 %v909
        %v1695 = vpop.f32.mrf.mxu0
        %v1696 = vadd.f32 %v1546, %v1695
        %v1697 = vpop.f32.mrf.mxu0
        %1698 = vdwg.mxu0
        %1699 = vmatprep.subr.mxu0 0.0
        %1700 = vmatpush1.msra.mxu0 0.0
        %1701 = vmatprep.subr.mxu0 0.0
        %1702 = vmatpush1.msra.mxu0 0.0
        %1703 = vmatprep.subr.mxu0 0.0
        %1704 = vmatpush1.msra.mxu0 0.0
        %1705 = vmatprep.subr.mxu0 0.0
        %1706 = vmatpush1.msra.mxu0 0.0
        %1707 = vmatprep.subr.mxu0 0.0
        %1708 = vmatpush1.msra.mxu0 0.0
        %1709 = vmatprep.subr.mxu0 0.0
        %1710 = vmatpush1.msra.mxu0 0.0
        %1711 = vmatprep.subr.mxu0 0.0
        %1712 = vmatpush1.msra.mxu0 0.0
        %1713 = vmatprep.subr.mxu0 0.0
        %1714 = vmatpush1.msra.mxu0 0.0
        %1715 = vmatprep.subr.mxu0 0.0
        %1716 = vmatpush1.msra.mxu0 0.0
        %1717 = vmatprep.subr.mxu0 0.0
        %1718 = vmatpush1.msra.mxu0 0.0
        %1719 = vmatprep.subr.mxu0 0.0
        %1720 = vmatpush1.msra.mxu0 0.0
        %1721 = vmatprep.subr.mxu0 0.0
        %1722 = vmatpush1.msra.mxu0 0.0
        %1723 = vmatprep.subr.mxu0 0.0
        %1724 = vmatpush1.msra.mxu0 %v1526
        %1725 = vmatprep.subr.mxu0 0.0
        %1726 = vmatpush1.msra.mxu0 %v1525
        %1727 = vmatprep.subr.mxu0 0.0
        %1728 = vmatpush1.msra.mxu0 %v1524
        %1729 = vmatprep.subr.mxu0 0.0
        %1730 = vmatpush1.msra.mxu0 %v1523
        %1731 = vmatprep.subr.mxu0 0.0
        %1732 = vmatpush2.msra.mxu0 0.0
        %1733 = vmatprep.subr.mxu0 0.0
        %1734 = vmatpush2.msra.mxu0 0.0
        %1735 = vmatprep.subr.mxu0 0.0
        %1736 = vmatpush2.msra.mxu0 0.0
        %1737 = vmatprep.subr.mxu0 0.0
        %1738 = vmatpush2.msra.mxu0 0.0
        %1739 = vmatprep.subr.mxu0 0.0
        %1740 = vmatpush2.msra.mxu0 0.0
        %1741 = vmatprep.subr.mxu0 0.0
        %1742 = vmatpush2.msra.mxu0 0.0
        %1743 = vmatprep.subr.mxu0 0.0
        %1744 = vmatpush2.msra.mxu0 0.0
        %1745 = vmatprep.subr.mxu0 0.0
        %1746 = vmatpush2.msra.mxu0 0.0
        %1747 = vmatprep.subr.mxu0 0.0
        %1748 = vmatpush2.msra.mxu0 0.0
        %1749 = vmatprep.subr.mxu0 0.0
        %1750 = vmatpush2.msra.mxu0 0.0
        %1751 = vmatprep.subr.mxu0 0.0
        %1752 = vmatpush2.msra.mxu0 0.0
        %1753 = vmatprep.subr.mxu0 0.0
        %1754 = vmatpush2.msra.mxu0 0.0
        %1755 = vmatprep.subr.mxu0 0.0
        %1756 = vmatpush2.msra.mxu0 0.0
        %1757 = vmatprep.subr.mxu0 0.0
        %1758 = vmatpush2.msra.mxu0 0.0
        %1759 = vmatprep.subr.mxu0 0.0
        %1760 = vmatpush2.msra.mxu0 0.0
        %1761 = vmatprep.subr.mxu0 0.0
        %1762 = vmatpush2.msra.mxu0 0.0
        %1763 = vmatprep.mubr.f32.mxu0 0.0
        %1764 = vmatmul.mubr.f32.gmra.mxu0 %v909
        %v1765 = vpop.f32.mrf.mxu0
        %v1766 = vadd.f32 %v1550, %v1765
        %v1767 = vpop.f32.mrf.mxu0
        %1768 = vdwg.mxu0
        %1769 = vmatprep.subr.mxu0 0.0
        %1770 = vmatpush1.msra.mxu0 0.0
        %1771 = vmatprep.subr.mxu0 0.0
        %1772 = vmatpush1.msra.mxu0 0.0
        %1773 = vmatprep.subr.mxu0 0.0
        %1774 = vmatpush1.msra.mxu0 0.0
        %1775 = vmatprep.subr.mxu0 0.0
        %1776 = vmatpush1.msra.mxu0 0.0
        %1777 = vmatprep.subr.mxu0 0.0
        %1778 = vmatpush1.msra.mxu0 0.0
        %1779 = vmatprep.subr.mxu0 0.0
        %1780 = vmatpush1.msra.mxu0 0.0
        %1781 = vmatprep.subr.mxu0 0.0
        %1782 = vmatpush1.msra.mxu0 0.0
        %1783 = vmatprep.subr.mxu0 0.0
        %1784 = vmatpush1.msra.mxu0 0.0
        %1785 = vmatprep.subr.mxu0 0.0
        %1786 = vmatpush1.msra.mxu0 0.0
        %1787 = vmatprep.subr.mxu0 0.0
        %1788 = vmatpush1.msra.mxu0 0.0
        %1789 = vmatprep.subr.mxu0 0.0
        %1790 = vmatpush1.msra.mxu0 0.0
        %1791 = vmatprep.subr.mxu0 0.0
        %1792 = vmatpush1.msra.mxu0 0.0
        %1793 = vmatprep.subr.mxu0 0.0
        %1794 = vmatpush1.msra.mxu0 %v1530
        %1795 = vmatprep.subr.mxu0 0.0
        %1796 = vmatpush1.msra.mxu0 %v1529
        %1797 = vmatprep.subr.mxu0 0.0
        %1798 = vmatpush1.msra.mxu0 %v1528
        %1799 = vmatprep.subr.mxu0 0.0
        %1800 = vmatpush1.msra.mxu0 %v1527
        %1801 = vmatprep.subr.mxu0 0.0
        %1802 = vmatpush2.msra.mxu0 0.0
        %1803 = vmatprep.subr.mxu0 0.0
        %1804 = vmatpush2.msra.mxu0 0.0
        %1805 = vmatprep.subr.mxu0 0.0
        %1806 = vmatpush2.msra.mxu0 0.0
        %1807 = vmatprep.subr.mxu0 0.0
        %1808 = vmatpush2.msra.mxu0 0.0
        %1809 = vmatprep.subr.mxu0 0.0
        %1810 = vmatpush2.msra.mxu0 0.0
        %1811 = vmatprep.subr.mxu0 0.0
        %1812 = vmatpush2.msra.mxu0 0.0
        %1813 = vmatprep.subr.mxu0 0.0
        %1814 = vmatpush2.msra.mxu0 0.0
        %1815 = vmatprep.subr.mxu0 0.0
        %1816 = vmatpush2.msra.mxu0 0.0
        %1817 = vmatprep.subr.mxu0 0.0
        %1818 = vmatpush2.msra.mxu0 0.0
        %1819 = vmatprep.subr.mxu0 0.0
        %1820 = vmatpush2.msra.mxu0 0.0
        %1821 = vmatprep.subr.mxu0 0.0
        %1822 = vmatpush2.msra.mxu0 0.0
        %1823 = vmatprep.subr.mxu0 0.0
        %1824 = vmatpush2.msra.mxu0 0.0
        %1825 = vmatprep.subr.mxu0 0.0
        %1826 = vmatpush2.msra.mxu0 0.0
        %1827 = vmatprep.subr.mxu0 0.0
        %1828 = vmatpush2.msra.mxu0 0.0
        %1829 = vmatprep.subr.mxu0 0.0
        %1830 = vmatpush2.msra.mxu0 0.0
        %1831 = vmatprep.subr.mxu0 0.0
        %1832 = vmatpush2.msra.mxu0 0.0
        %1833 = vmatprep.mubr.f32.mxu0 0.0
        %1834 = vmatmul.mubr.f32.gmra.mxu0 %v909
        %v1835 = vpop.f32.mrf.mxu0
        %v1836 = vadd.f32 %v1554, %v1835
        %v1837 = vpop.f32.mrf.mxu0
        %1838 = vdwg.mxu0
        %v1839 = vlaneseq
        %v1840 = vshrl.u32 %v1839, 7
        %v1841 = vlaneseq
        %v1842 = vand.u32 %v1841, 127
        %vm1843 = vcmp.le.s32.totalorder %v1842, %v1840
        %v1844 = vsel %vm1843, 0.0, -1e+09
        %v1845 = vmul.f32 %v978, 0.35355338
        %v1846 = vmul.f32 %v1048, 0.35355338
        %v1847 = vmul.f32 %v1118, 0.35355338
        %v1848 = vmul.f32 %v1188, 0.35355338
        %vm1849 = vcmask 64512
        %v1851 = vsel %vm1849, %v1845, 0
        %v1854 = vsel %vm1849, %v1302, 0
        %1856 = vmatprep.subr.mxu0 0.0
        %1857 = vmatpush1.xpose.msra.mxu0 0.0
        %1858 = vmatprep.subr.mxu0 0.0
        %1859 = vmatpush1.xpose.msra.mxu0 0.0
        %1860 = vmatprep.subr.mxu0 0.0
        %1861 = vmatpush1.xpose.msra.mxu0 0.0
        %1862 = vmatprep.subr.mxu0 0.0
        %1863 = vmatpush1.xpose.msra.mxu0 0.0
        %1864 = vmatprep.subr.mxu0 0.0
        %1865 = vmatpush1.xpose.msra.mxu0 0.0
        %1866 = vmatprep.subr.mxu0 0.0
        %1867 = vmatpush1.xpose.msra.mxu0 0.0
        %1868 = vmatprep.subr.mxu0 0.0
        %1869 = vmatpush1.xpose.msra.mxu0 0.0
        %1870 = vmatprep.subr.mxu0 0.0
        %1871 = vmatpush1.xpose.msra.mxu0 0.0
        %1872 = vmatprep.subr.mxu0 0.0
        %1873 = vmatpush1.xpose.msra.mxu0 0.0
        %1874 = vmatprep.subr.mxu0 0.0
        %1875 = vmatpush1.xpose.msra.mxu0 0.0
        %1876 = vmatprep.subr.mxu0 0.0
        %1877 = vmatpush1.xpose.msra.mxu0 0.0
        %1878 = vmatprep.subr.mxu0 0.0
        %1879 = vmatpush1.xpose.msra.mxu0 0.0
        %1880 = vmatprep.subr.mxu0 0.0
        %1881 = vmatpush1.xpose.msra.mxu0 0.0
        %1882 = vmatprep.subr.mxu0 0.0
        %1883 = vmatpush1.xpose.msra.mxu0 0.0
        %1884 = vmatprep.subr.mxu0 0.0
        %1885 = vmatpush1.xpose.msra.mxu0 0.0
        %1886 = vmatprep.subr.mxu0 0.0
        %1887 = vmatpush1.xpose.msra.mxu0 %v1854
        %1888 = vmatprep.subr.mxu0 0.0
        %1889 = vmatpush2.xpose.msra.mxu0 0.0
        %1890 = vmatprep.subr.mxu0 0.0
        %1891 = vmatpush2.xpose.msra.mxu0 0.0
        %1892 = vmatprep.subr.mxu0 0.0
        %1893 = vmatpush2.xpose.msra.mxu0 0.0
        %1894 = vmatprep.subr.mxu0 0.0
        %1895 = vmatpush2.xpose.msra.mxu0 0.0
        %1896 = vmatprep.subr.mxu0 0.0
        %1897 = vmatpush2.xpose.msra.mxu0 0.0
        %1898 = vmatprep.subr.mxu0 0.0
        %1899 = vmatpush2.xpose.msra.mxu0 0.0
        %1900 = vmatprep.subr.mxu0 0.0
        %1901 = vmatpush2.xpose.msra.mxu0 0.0
        %1902 = vmatprep.subr.mxu0 0.0
        %1903 = vmatpush2.xpose.msra.mxu0 0.0
        %1904 = vmatprep.subr.mxu0 0.0
        %1905 = vmatpush2.xpose.msra.mxu0 0.0
        %1906 = vmatprep.subr.mxu0 0.0
        %1907 = vmatpush2.xpose.msra.mxu0 0.0
        %1908 = vmatprep.subr.mxu0 0.0
        %1909 = vmatpush2.xpose.msra.mxu0 0.0
        %1910 = vmatprep.subr.mxu0 0.0
        %1911 = vmatpush2.xpose.msra.mxu0 0.0
        %1912 = vmatprep.subr.mxu0 0.0
        %1913 = vmatpush2.xpose.msra.mxu0 0.0
        %1914 = vmatprep.subr.mxu0 0.0
        %1915 = vmatpush2.xpose.msra.mxu0 0.0
        %1916 = vmatprep.subr.mxu0 0.0
        %1917 = vmatpush2.xpose.msra.mxu0 0.0
        %1918 = vmatprep.subr.mxu0 0.0
        %1919 = vmatpush2.xpose.msra.mxu0 0.0
        %1920 = vmatprep.mubr.f32.mxu0 0.0
        %1921 = vmatmul.mubr.f32.gmra.mxu0 %v1851
        %v1922 = vpop.f32.mrf.mxu0
        %v1923 = vadd.f32 %v1844, %v1922
        %v1924 = vpop.f32.mrf.mxu0
        %1925 = vdwg.mxu0
        %v1927 = vsel %vm1849, %v1846, 0
        %v1930 = vsel %vm1849, %v1372, 0
        %1932 = vmatprep.subr.mxu0 0.0
        %1933 = vmatpush1.xpose.msra.mxu0 0.0
        %1934 = vmatprep.subr.mxu0 0.0
        %1935 = vmatpush1.xpose.msra.mxu0 0.0
        %1936 = vmatprep.subr.mxu0 0.0
        %1937 = vmatpush1.xpose.msra.mxu0 0.0
        %1938 = vmatprep.subr.mxu0 0.0
        %1939 = vmatpush1.xpose.msra.mxu0 0.0
        %1940 = vmatprep.subr.mxu0 0.0
        %1941 = vmatpush1.xpose.msra.mxu0 0.0
        %1942 = vmatprep.subr.mxu0 0.0
        %1943 = vmatpush1.xpose.msra.mxu0 0.0
        %1944 = vmatprep.subr.mxu0 0.0
        %1945 = vmatpush1.xpose.msra.mxu0 0.0
        %1946 = vmatprep.subr.mxu0 0.0
        %1947 = vmatpush1.xpose.msra.mxu0 0.0
        %1948 = vmatprep.subr.mxu0 0.0
        %1949 = vmatpush1.xpose.msra.mxu0 0.0
        %1950 = vmatprep.subr.mxu0 0.0
        %1951 = vmatpush1.xpose.msra.mxu0 0.0
        %1952 = vmatprep.subr.mxu0 0.0
        %1953 = vmatpush1.xpose.msra.mxu0 0.0
        %1954 = vmatprep.subr.mxu0 0.0
        %1955 = vmatpush1.xpose.msra.mxu0 0.0
        %1956 = vmatprep.subr.mxu0 0.0
        %1957 = vmatpush1.xpose.msra.mxu0 0.0
        %1958 = vmatprep.subr.mxu0 0.0
        %1959 = vmatpush1.xpose.msra.mxu0 0.0
        %1960 = vmatprep.subr.mxu0 0.0
        %1961 = vmatpush1.xpose.msra.mxu0 0.0
        %1962 = vmatprep.subr.mxu0 0.0
        %1963 = vmatpush1.xpose.msra.mxu0 %v1930
        %1964 = vmatprep.subr.mxu0 0.0
        %1965 = vmatpush2.xpose.msra.mxu0 0.0
        %1966 = vmatprep.subr.mxu0 0.0
        %1967 = vmatpush2.xpose.msra.mxu0 0.0
        %1968 = vmatprep.subr.mxu0 0.0
        %1969 = vmatpush2.xpose.msra.mxu0 0.0
        %1970 = vmatprep.subr.mxu0 0.0
        %1971 = vmatpush2.xpose.msra.mxu0 0.0
        %1972 = vmatprep.subr.mxu0 0.0
        %1973 = vmatpush2.xpose.msra.mxu0 0.0
        %1974 = vmatprep.subr.mxu0 0.0
        %1975 = vmatpush2.xpose.msra.mxu0 0.0
        %1976 = vmatprep.subr.mxu0 0.0
        %1977 = vmatpush2.xpose.msra.mxu0 0.0
        %1978 = vmatprep.subr.mxu0 0.0
        %1979 = vmatpush2.xpose.msra.mxu0 0.0
        %1980 = vmatprep.subr.mxu0 0.0
        %1981 = vmatpush2.xpose.msra.mxu0 0.0
        %1982 = vmatprep.subr.mxu0 0.0
        %1983 = vmatpush2.xpose.msra.mxu0 0.0
        %1984 = vmatprep.subr.mxu0 0.0
        %1985 = vmatpush2.xpose.msra.mxu0 0.0
        %1986 = vmatprep.subr.mxu0 0.0
        %1987 = vmatpush2.xpose.msra.mxu0 0.0
        %1988 = vmatprep.subr.mxu0 0.0
        %1989 = vmatpush2.xpose.msra.mxu0 0.0
        %1990 = vmatprep.subr.mxu0 0.0
        %1991 = vmatpush2.xpose.msra.mxu0 0.0
        %1992 = vmatprep.subr.mxu0 0.0
        %1993 = vmatpush2.xpose.msra.mxu0 0.0
        %1994 = vmatprep.subr.mxu0 0.0
        %1995 = vmatpush2.xpose.msra.mxu0 0.0
        %1996 = vmatprep.mubr.f32.mxu0 0.0
        %1997 = vmatmul.mubr.f32.gmra.mxu0 %v1927
        %v1998 = vpop.f32.mrf.mxu0
        %v1999 = vadd.f32 %v1844, %v1998
        %v2000 = vpop.f32.mrf.mxu0
        %2001 = vdwg.mxu0
        %v2003 = vsel %vm1849, %v1847, 0
        %v2006 = vsel %vm1849, %v1442, 0
        %2008 = vmatprep.subr.mxu0 0.0
        %2009 = vmatpush1.xpose.msra.mxu0 0.0
        %2010 = vmatprep.subr.mxu0 0.0
        %2011 = vmatpush1.xpose.msra.mxu0 0.0
        %2012 = vmatprep.subr.mxu0 0.0
        %2013 = vmatpush1.xpose.msra.mxu0 0.0
        %2014 = vmatprep.subr.mxu0 0.0
        %2015 = vmatpush1.xpose.msra.mxu0 0.0
        %2016 = vmatprep.subr.mxu0 0.0
        %2017 = vmatpush1.xpose.msra.mxu0 0.0
        %2018 = vmatprep.subr.mxu0 0.0
        %2019 = vmatpush1.xpose.msra.mxu0 0.0
        %2020 = vmatprep.subr.mxu0 0.0
        %2021 = vmatpush1.xpose.msra.mxu0 0.0
        %2022 = vmatprep.subr.mxu0 0.0
        %2023 = vmatpush1.xpose.msra.mxu0 0.0
        %2024 = vmatprep.subr.mxu0 0.0
        %2025 = vmatpush1.xpose.msra.mxu0 0.0
        %2026 = vmatprep.subr.mxu0 0.0
        %2027 = vmatpush1.xpose.msra.mxu0 0.0
        %2028 = vmatprep.subr.mxu0 0.0
        %2029 = vmatpush1.xpose.msra.mxu0 0.0
        %2030 = vmatprep.subr.mxu0 0.0
        %2031 = vmatpush1.xpose.msra.mxu0 0.0
        %2032 = vmatprep.subr.mxu0 0.0
        %2033 = vmatpush1.xpose.msra.mxu0 0.0
        %2034 = vmatprep.subr.mxu0 0.0
        %2035 = vmatpush1.xpose.msra.mxu0 0.0
        %2036 = vmatprep.subr.mxu0 0.0
        %2037 = vmatpush1.xpose.msra.mxu0 0.0
        %2038 = vmatprep.subr.mxu0 0.0
        %2039 = vmatpush1.xpose.msra.mxu0 %v2006
        %2040 = vmatprep.subr.mxu0 0.0
        %2041 = vmatpush2.xpose.msra.mxu0 0.0
        %2042 = vmatprep.subr.mxu0 0.0
        %2043 = vmatpush2.xpose.msra.mxu0 0.0
        %2044 = vmatprep.subr.mxu0 0.0
        %2045 = vmatpush2.xpose.msra.mxu0 0.0
        %2046 = vmatprep.subr.mxu0 0.0
        %2047 = vmatpush2.xpose.msra.mxu0 0.0
        %2048 = vmatprep.subr.mxu0 0.0
        %2049 = vmatpush2.xpose.msra.mxu0 0.0
        %2050 = vmatprep.subr.mxu0 0.0
        %2051 = vmatpush2.xpose.msra.mxu0 0.0
        %2052 = vmatprep.subr.mxu0 0.0
        %2053 = vmatpush2.xpose.msra.mxu0 0.0
        %2054 = vmatprep.subr.mxu0 0.0
        %2055 = vmatpush2.xpose.msra.mxu0 0.0
        %2056 = vmatprep.subr.mxu0 0.0
        %2057 = vmatpush2.xpose.msra.mxu0 0.0
        %2058 = vmatprep.subr.mxu0 0.0
        %2059 = vmatpush2.xpose.msra.mxu0 0.0
        %2060 = vmatprep.subr.mxu0 0.0
        %2061 = vmatpush2.xpose.msra.mxu0 0.0
        %2062 = vmatprep.subr.mxu0 0.0
        %2063 = vmatpush2.xpose.msra.mxu0 0.0
        %2064 = vmatprep.subr.mxu0 0.0
        %2065 = vmatpush2.xpose.msra.mxu0 0.0
        %2066 = vmatprep.subr.mxu0 0.0
        %2067 = vmatpush2.xpose.msra.mxu0 0.0
        %2068 = vmatprep.subr.mxu0 0.0
        %2069 = vmatpush2.xpose.msra.mxu0 0.0
        %2070 = vmatprep.subr.mxu0 0.0
        %2071 = vmatpush2.xpose.msra.mxu0 0.0
        %2072 = vmatprep.mubr.f32.mxu0 0.0
        %2073 = vmatmul.mubr.f32.gmra.mxu0 %v2003
        %v2074 = vpop.f32.mrf.mxu0
        %v2075 = vadd.f32 %v1844, %v2074
        %v2076 = vpop.f32.mrf.mxu0
        %2077 = vdwg.mxu0
        %v2079 = vsel %vm1849, %v1848, 0
        %v2082 = vsel %vm1849, %v1512, 0
        %2084 = vmatprep.subr.mxu0 0.0
        %2085 = vmatpush1.xpose.msra.mxu0 0.0
        %2086 = vmatprep.subr.mxu0 0.0
        %2087 = vmatpush1.xpose.msra.mxu0 0.0
        %2088 = vmatprep.subr.mxu0 0.0
        %2089 = vmatpush1.xpose.msra.mxu0 0.0
        %2090 = vmatprep.subr.mxu0 0.0
        %2091 = vmatpush1.xpose.msra.mxu0 0.0
        %2092 = vmatprep.subr.mxu0 0.0
        %2093 = vmatpush1.xpose.msra.mxu0 0.0
        %2094 = vmatprep.subr.mxu0 0.0
        %2095 = vmatpush1.xpose.msra.mxu0 0.0
        %2096 = vmatprep.subr.mxu0 0.0
        %2097 = vmatpush1.xpose.msra.mxu0 0.0
        %2098 = vmatprep.subr.mxu0 0.0
        %2099 = vmatpush1.xpose.msra.mxu0 0.0
        %2100 = vmatprep.subr.mxu0 0.0
        %2101 = vmatpush1.xpose.msra.mxu0 0.0
        %2102 = vmatprep.subr.mxu0 0.0
        %2103 = vmatpush1.xpose.msra.mxu0 0.0
        %2104 = vmatprep.subr.mxu0 0.0
        %2105 = vmatpush1.xpose.msra.mxu0 0.0
        %2106 = vmatprep.subr.mxu0 0.0
        %2107 = vmatpush1.xpose.msra.mxu0 0.0
        %2108 = vmatprep.subr.mxu0 0.0
        %2109 = vmatpush1.xpose.msra.mxu0 0.0
        %2110 = vmatprep.subr.mxu0 0.0
        %2111 = vmatpush1.xpose.msra.mxu0 0.0
        %2112 = vmatprep.subr.mxu0 0.0
        %2113 = vmatpush1.xpose.msra.mxu0 0.0
        %2114 = vmatprep.subr.mxu0 0.0
        %2115 = vmatpush1.xpose.msra.mxu0 %v2082
        %2116 = vmatprep.subr.mxu0 0.0
        %2117 = vmatpush2.xpose.msra.mxu0 0.0
        %2118 = vmatprep.subr.mxu0 0.0
        %2119 = vmatpush2.xpose.msra.mxu0 0.0
        %2120 = vmatprep.subr.mxu0 0.0
        %2121 = vmatpush2.xpose.msra.mxu0 0.0
        %2122 = vmatprep.subr.mxu0 0.0
        %2123 = vmatpush2.xpose.msra.mxu0 0.0
        %2124 = vmatprep.subr.mxu0 0.0
        %2125 = vmatpush2.xpose.msra.mxu0 0.0
        %2126 = vmatprep.subr.mxu0 0.0
        %2127 = vmatpush2.xpose.msra.mxu0 0.0
        %2128 = vmatprep.subr.mxu0 0.0
        %2129 = vmatpush2.xpose.msra.mxu0 0.0
        %2130 = vmatprep.subr.mxu0 0.0
        %2131 = vmatpush2.xpose.msra.mxu0 0.0
        %2132 = vmatprep.subr.mxu0 0.0
        %2133 = vmatpush2.xpose.msra.mxu0 0.0
        %2134 = vmatprep.subr.mxu0 0.0
        %2135 = vmatpush2.xpose.msra.mxu0 0.0
        %2136 = vmatprep.subr.mxu0 0.0
        %2137 = vmatpush2.xpose.msra.mxu0 0.0
        %2138 = vmatprep.subr.mxu0 0.0
        %2139 = vmatpush2.xpose.msra.mxu0 0.0
        %2140 = vmatprep.subr.mxu0 0.0
        %2141 = vmatpush2.xpose.msra.mxu0 0.0
        %2142 = vmatprep.subr.mxu0 0.0
        %2143 = vmatpush2.xpose.msra.mxu0 0.0
        %2144 = vmatprep.subr.mxu0 0.0
        %2145 = vmatpush2.xpose.msra.mxu0 0.0
        %2146 = vmatprep.subr.mxu0 0.0
        %2147 = vmatpush2.xpose.msra.mxu0 0.0
        %2148 = vmatprep.mubr.f32.mxu0 0.0
        %2149 = vmatmul.mubr.f32.gmra.mxu0 %v2079
        %v2150 = vpop.f32.mrf.mxu0
        %v2151 = vadd.f32 %v1844, %v2150
        %v2152 = vpop.f32.mrf.mxu0
        %2153 = vdwg.mxu0
        %v2154 = vsel %vm1849, %v1923, -inf
        %2155 = vmax.xlane.f32.xlu0 %v2154
        %v2156 = vpop.xlane.xlu0 %2155
        %v2157 = vsel %vm1849, %v1999, -inf
        %2158 = vmax.xlane.f32.xlu0 %v2157
        %v2159 = vpop.xlane.xlu0 %2158
        %v2160 = vsel %vm1849, %v2075, -inf
        %2161 = vmax.xlane.f32.xlu0 %v2160
        %v2162 = vpop.xlane.xlu0 %2161
        %v2163 = vsel %vm1849, %v2151, -inf
        %2164 = vmax.xlane.f32.xlu0 %v2163
        %v2165 = vpop.xlane.xlu0 %2164
        %v2166 = vsub.f32 %v1923, %v2156
        %v2167 = vsub.f32 %v1999, %v2159
        %v2168 = vsub.f32 %v2075, %v2162
        %v2169 = vsub.f32 %v2151, %v2165
        %v2170 = vmul.f32 %v2166, 1.442695
        %v2171 = vpow.pop %v2170
        %v2172 = vmul.f32 %v2167, 1.442695
        %v2173 = vpow.pop %v2172
        %v2174 = vmul.f32 %v2168, 1.442695
        %v2175 = vpow.pop %v2174
        %v2176 = vmul.f32 %v2169, 1.442695
        %v2177 = vpow.pop %v2176
        %v2178 = vsel %vm1849, %v2171, 0.0
        %2179 = vadd.xlane.f32.xlu0 %v2178
        %v2180 = vpop.xlane.xlu0 %2179
        %v2181 = vsel %vm1849, %v2173, 0.0
        %2182 = vadd.xlane.f32.xlu0 %v2181
        %v2183 = vpop.xlane.xlu0 %2182
        %v2184 = vsel %vm1849, %v2175, 0.0
        %2185 = vadd.xlane.f32.xlu0 %v2184
        %v2186 = vpop.xlane.xlu0 %2185
        %v2187 = vsel %vm1849, %v2177, 0.0
        %2188 = vadd.xlane.f32.xlu0 %v2187
        %v2189 = vpop.xlane.xlu0 %2188
        %v2190 = vrcp.pop %v2180
        %v2191 = vrcp.pop %v2183
        %v2192 = vrcp.pop %v2186
        %v2193 = vrcp.pop %v2189
        %v2194 = vmul.f32 %v2171, %v2190
        %v2195 = vmul.f32 %v2173, %v2191
        %v2196 = vmul.f32 %v2175, %v2192
        %v2197 = vmul.f32 %v2177, %v2193
        %v2199 = vsel %vm1849, %v2194, 0
        %2201 = vmatprep.subr.mxu0 0.0
        %2202 = vmatpush1.msra.mxu0 0.0
        %2203 = vmatprep.subr.mxu0 0.0
        %2204 = vmatpush1.msra.mxu0 0.0
        %2205 = vmatprep.subr.mxu0 0.0
        %2206 = vmatpush1.msra.mxu0 0.0
        %2207 = vmatprep.subr.mxu0 0.0
        %2208 = vmatpush1.msra.mxu0 0.0
        %2209 = vmatprep.subr.mxu0 0.0
        %2210 = vmatpush1.msra.mxu0 0.0
        %2211 = vmatprep.subr.mxu0 0.0
        %2212 = vmatpush1.msra.mxu0 0.0
        %2213 = vmatprep.subr.mxu0 0.0
        %2214 = vmatpush1.msra.mxu0 0.0
        %2215 = vmatprep.subr.mxu0 0.0
        %2216 = vmatpush1.msra.mxu0 0.0
        %2217 = vmatprep.subr.mxu0 0.0
        %2218 = vmatpush1.msra.mxu0 0.0
        %2219 = vmatprep.subr.mxu0 0.0
        %2220 = vmatpush1.msra.mxu0 0.0
        %2221 = vmatprep.subr.mxu0 0.0
        %2222 = vmatpush1.msra.mxu0 0.0
        %2223 = vmatprep.subr.mxu0 0.0
        %2224 = vmatpush1.msra.mxu0 0.0
        %2225 = vmatprep.subr.mxu0 0.0
        %2226 = vmatpush1.msra.mxu0 0.0
        %2227 = vmatprep.subr.mxu0 0.0
        %2228 = vmatpush1.msra.mxu0 0.0
        %2229 = vmatprep.subr.mxu0 0.0
        %2230 = vmatpush1.msra.mxu0 0.0
        %2231 = vmatprep.subr.mxu0 0.0
        %2232 = vmatpush1.msra.mxu0 %v1626
        %2233 = vmatprep.subr.mxu0 0.0
        %2234 = vmatpush2.msra.mxu0 0.0
        %2235 = vmatprep.subr.mxu0 0.0
        %2236 = vmatpush2.msra.mxu0 0.0
        %2237 = vmatprep.subr.mxu0 0.0
        %2238 = vmatpush2.msra.mxu0 0.0
        %2239 = vmatprep.subr.mxu0 0.0
        %2240 = vmatpush2.msra.mxu0 0.0
        %2241 = vmatprep.subr.mxu0 0.0
        %2242 = vmatpush2.msra.mxu0 0.0
        %2243 = vmatprep.subr.mxu0 0.0
        %2244 = vmatpush2.msra.mxu0 0.0
        %2245 = vmatprep.subr.mxu0 0.0
        %2246 = vmatpush2.msra.mxu0 0.0
        %2247 = vmatprep.subr.mxu0 0.0
        %2248 = vmatpush2.msra.mxu0 0.0
        %2249 = vmatprep.subr.mxu0 0.0
        %2250 = vmatpush2.msra.mxu0 0.0
        %2251 = vmatprep.subr.mxu0 0.0
        %2252 = vmatpush2.msra.mxu0 0.0
        %2253 = vmatprep.subr.mxu0 0.0
        %2254 = vmatpush2.msra.mxu0 0.0
        %2255 = vmatprep.subr.mxu0 0.0
        %2256 = vmatpush2.msra.mxu0 0.0
        %2257 = vmatprep.subr.mxu0 0.0
        %2258 = vmatpush2.msra.mxu0 0.0
        %2259 = vmatprep.subr.mxu0 0.0
        %2260 = vmatpush2.msra.mxu0 0.0
        %2261 = vmatprep.subr.mxu0 0.0
        %2262 = vmatpush2.msra.mxu0 0.0
        %2263 = vmatprep.subr.mxu0 0.0
        %2264 = vmatpush2.msra.mxu0 0.0
        %2265 = vmatprep.mubr.f32.mxu0 0.0
        %2266 = vmatmul.mubr.f32.gmra.mxu0 %v2199
        %v2267 = vpop.f32.mrf.mxu0
        %v2268 = vadd.f32 0.0, %v2267
        %v2269 = vpop.f32.mrf.mxu0
        %2270 = vdwg.mxu0
        %v2272 = vsel %vm1849, %v2195, 0
        %2274 = vmatprep.subr.mxu0 0.0
        %2275 = vmatpush1.msra.mxu0 0.0
        %2276 = vmatprep.subr.mxu0 0.0
        %2277 = vmatpush1.msra.mxu0 0.0
        %2278 = vmatprep.subr.mxu0 0.0
        %2279 = vmatpush1.msra.mxu0 0.0
        %2280 = vmatprep.subr.mxu0 0.0
        %2281 = vmatpush1.msra.mxu0 0.0
        %2282 = vmatprep.subr.mxu0 0.0
        %2283 = vmatpush1.msra.mxu0 0.0
        %2284 = vmatprep.subr.mxu0 0.0
        %2285 = vmatpush1.msra.mxu0 0.0
        %2286 = vmatprep.subr.mxu0 0.0
        %2287 = vmatpush1.msra.mxu0 0.0
        %2288 = vmatprep.subr.mxu0 0.0
        %2289 = vmatpush1.msra.mxu0 0.0
        %2290 = vmatprep.subr.mxu0 0.0
        %2291 = vmatpush1.msra.mxu0 0.0
        %2292 = vmatprep.subr.mxu0 0.0
        %2293 = vmatpush1.msra.mxu0 0.0
        %2294 = vmatprep.subr.mxu0 0.0
        %2295 = vmatpush1.msra.mxu0 0.0
        %2296 = vmatprep.subr.mxu0 0.0
        %2297 = vmatpush1.msra.mxu0 0.0
        %2298 = vmatprep.subr.mxu0 0.0
        %2299 = vmatpush1.msra.mxu0 0.0
        %2300 = vmatprep.subr.mxu0 0.0
        %2301 = vmatpush1.msra.mxu0 0.0
        %2302 = vmatprep.subr.mxu0 0.0
        %2303 = vmatpush1.msra.mxu0 0.0
        %2304 = vmatprep.subr.mxu0 0.0
        %2305 = vmatpush1.msra.mxu0 %v1696
        %2306 = vmatprep.subr.mxu0 0.0
        %2307 = vmatpush2.msra.mxu0 0.0
        %2308 = vmatprep.subr.mxu0 0.0
        %2309 = vmatpush2.msra.mxu0 0.0
        %2310 = vmatprep.subr.mxu0 0.0
        %2311 = vmatpush2.msra.mxu0 0.0
        %2312 = vmatprep.subr.mxu0 0.0
        %2313 = vmatpush2.msra.mxu0 0.0
        %2314 = vmatprep.subr.mxu0 0.0
        %2315 = vmatpush2.msra.mxu0 0.0
        %2316 = vmatprep.subr.mxu0 0.0
        %2317 = vmatpush2.msra.mxu0 0.0
        %2318 = vmatprep.subr.mxu0 0.0
        %2319 = vmatpush2.msra.mxu0 0.0
        %2320 = vmatprep.subr.mxu0 0.0
        %2321 = vmatpush2.msra.mxu0 0.0
        %2322 = vmatprep.subr.mxu0 0.0
        %2323 = vmatpush2.msra.mxu0 0.0
        %2324 = vmatprep.subr.mxu0 0.0
        %2325 = vmatpush2.msra.mxu0 0.0
        %2326 = vmatprep.subr.mxu0 0.0
        %2327 = vmatpush2.msra.mxu0 0.0
        %2328 = vmatprep.subr.mxu0 0.0
        %2329 = vmatpush2.msra.mxu0 0.0
        %2330 = vmatprep.subr.mxu0 0.0
        %2331 = vmatpush2.msra.mxu0 0.0
        %2332 = vmatprep.subr.mxu0 0.0
        %2333 = vmatpush2.msra.mxu0 0.0
        %2334 = vmatprep.subr.mxu0 0.0
        %2335 = vmatpush2.msra.mxu0 0.0
        %2336 = vmatprep.subr.mxu0 0.0
        %2337 = vmatpush2.msra.mxu0 0.0
        %2338 = vmatprep.mubr.f32.mxu0 0.0
        %2339 = vmatmul.mubr.f32.gmra.mxu0 %v2272
        %v2340 = vpop.f32.mrf.mxu0
        %v2341 = vadd.f32 0.0, %v2340
        %v2342 = vpop.f32.mrf.mxu0
        %2343 = vdwg.mxu0
        %v2345 = vsel %vm1849, %v2196, 0
        %2347 = vmatprep.subr.mxu0 0.0
        %2348 = vmatpush1.msra.mxu0 0.0
        %2349 = vmatprep.subr.mxu0 0.0
        %2350 = vmatpush1.msra.mxu0 0.0
        %2351 = vmatprep.subr.mxu0 0.0
        %2352 = vmatpush1.msra.mxu0 0.0
        %2353 = vmatprep.subr.mxu0 0.0
        %2354 = vmatpush1.msra.mxu0 0.0
        %2355 = vmatprep.subr.mxu0 0.0
        %2356 = vmatpush1.msra.mxu0 0.0
        %2357 = vmatprep.subr.mxu0 0.0
        %2358 = vmatpush1.msra.mxu0 0.0
        %2359 = vmatprep.subr.mxu0 0.0
        %2360 = vmatpush1.msra.mxu0 0.0
        %2361 = vmatprep.subr.mxu0 0.0
        %2362 = vmatpush1.msra.mxu0 0.0
        %2363 = vmatprep.subr.mxu0 0.0
        %2364 = vmatpush1.msra.mxu0 0.0
        %2365 = vmatprep.subr.mxu0 0.0
        %2366 = vmatpush1.msra.mxu0 0.0
        %2367 = vmatprep.subr.mxu0 0.0
        %2368 = vmatpush1.msra.mxu0 0.0
        %2369 = vmatprep.subr.mxu0 0.0
        %2370 = vmatpush1.msra.mxu0 0.0
        %2371 = vmatprep.subr.mxu0 0.0
        %2372 = vmatpush1.msra.mxu0 0.0
        %2373 = vmatprep.subr.mxu0 0.0
        %2374 = vmatpush1.msra.mxu0 0.0
        %2375 = vmatprep.subr.mxu0 0.0
        %2376 = vmatpush1.msra.mxu0 0.0
        %2377 = vmatprep.subr.mxu0 0.0
        %2378 = vmatpush1.msra.mxu0 %v1766
        %2379 = vmatprep.subr.mxu0 0.0
        %2380 = vmatpush2.msra.mxu0 0.0
        %2381 = vmatprep.subr.mxu0 0.0
        %2382 = vmatpush2.msra.mxu0 0.0
        %2383 = vmatprep.subr.mxu0 0.0
        %2384 = vmatpush2.msra.mxu0 0.0
        %2385 = vmatprep.subr.mxu0 0.0
        %2386 = vmatpush2.msra.mxu0 0.0
        %2387 = vmatprep.subr.mxu0 0.0
        %2388 = vmatpush2.msra.mxu0 0.0
        %2389 = vmatprep.subr.mxu0 0.0
        %2390 = vmatpush2.msra.mxu0 0.0
        %2391 = vmatprep.subr.mxu0 0.0
        %2392 = vmatpush2.msra.mxu0 0.0
        %2393 = vmatprep.subr.mxu0 0.0
        %2394 = vmatpush2.msra.mxu0 0.0
        %2395 = vmatprep.subr.mxu0 0.0
        %2396 = vmatpush2.msra.mxu0 0.0
        %2397 = vmatprep.subr.mxu0 0.0
        %2398 = vmatpush2.msra.mxu0 0.0
        %2399 = vmatprep.subr.mxu0 0.0
        %2400 = vmatpush2.msra.mxu0 0.0
        %2401 = vmatprep.subr.mxu0 0.0
        %2402 = vmatpush2.msra.mxu0 0.0
        %2403 = vmatprep.subr.mxu0 0.0
        %2404 = vmatpush2.msra.mxu0 0.0
        %2405 = vmatprep.subr.mxu0 0.0
        %2406 = vmatpush2.msra.mxu0 0.0
        %2407 = vmatprep.subr.mxu0 0.0
        %2408 = vmatpush2.msra.mxu0 0.0
        %2409 = vmatprep.subr.mxu0 0.0
        %2410 = vmatpush2.msra.mxu0 0.0
        %2411 = vmatprep.mubr.f32.mxu0 0.0
        %2412 = vmatmul.mubr.f32.gmra.mxu0 %v2345
        %v2413 = vpop.f32.mrf.mxu0
        %v2414 = vadd.f32 0.0, %v2413
        %v2415 = vpop.f32.mrf.mxu0
        %2416 = vdwg.mxu0
        %v2418 = vsel %vm1849, %v2197, 0
        %2420 = vmatprep.subr.mxu0 0.0
        %2421 = vmatpush1.msra.mxu0 0.0
        %2422 = vmatprep.subr.mxu0 0.0
        %2423 = vmatpush1.msra.mxu0 0.0
        %2424 = vmatprep.subr.mxu0 0.0
        %2425 = vmatpush1.msra.mxu0 0.0
        %2426 = vmatprep.subr.mxu0 0.0
        %2427 = vmatpush1.msra.mxu0 0.0
        %2428 = vmatprep.subr.mxu0 0.0
        %2429 = vmatpush1.msra.mxu0 0.0
        %2430 = vmatprep.subr.mxu0 0.0
        %2431 = vmatpush1.msra.mxu0 0.0
        %2432 = vmatprep.subr.mxu0 0.0
        %2433 = vmatpush1.msra.mxu0 0.0
        %2434 = vmatprep.subr.mxu0 0.0
        %2435 = vmatpush1.msra.mxu0 0.0
        %2436 = vmatprep.subr.mxu0 0.0
        %2437 = vmatpush1.msra.mxu0 0.0
        %2438 = vmatprep.subr.mxu0 0.0
        %2439 = vmatpush1.msra.mxu0 0.0
        %2440 = vmatprep.subr.mxu0 0.0
        %2441 = vmatpush1.msra.mxu0 0.0
        %2442 = vmatprep.subr.mxu0 0.0
        %2443 = vmatpush1.msra.mxu0 0.0
        %2444 = vmatprep.subr.mxu0 0.0
        %2445 = vmatpush1.msra.mxu0 0.0
        %2446 = vmatprep.subr.mxu0 0.0
        %2447 = vmatpush1.msra.mxu0 0.0
        %2448 = vmatprep.subr.mxu0 0.0
        %2449 = vmatpush1.msra.mxu0 0.0
        %2450 = vmatprep.subr.mxu0 0.0
        %2451 = vmatpush1.msra.mxu0 %v1836
        %2452 = vmatprep.subr.mxu0 0.0
        %2453 = vmatpush2.msra.mxu0 0.0
        %2454 = vmatprep.subr.mxu0 0.0
        %2455 = vmatpush2.msra.mxu0 0.0
        %2456 = vmatprep.subr.mxu0 0.0
        %2457 = vmatpush2.msra.mxu0 0.0
        %2458 = vmatprep.subr.mxu0 0.0
        %2459 = vmatpush2.msra.mxu0 0.0
        %2460 = vmatprep.subr.mxu0 0.0
        %2461 = vmatpush2.msra.mxu0 0.0
        %2462 = vmatprep.subr.mxu0 0.0
        %2463 = vmatpush2.msra.mxu0 0.0
        %2464 = vmatprep.subr.mxu0 0.0
        %2465 = vmatpush2.msra.mxu0 0.0
        %2466 = vmatprep.subr.mxu0 0.0
        %2467 = vmatpush2.msra.mxu0 0.0
        %2468 = vmatprep.subr.mxu0 0.0
        %2469 = vmatpush2.msra.mxu0 0.0
        %2470 = vmatprep.subr.mxu0 0.0
        %2471 = vmatpush2.msra.mxu0 0.0
        %2472 = vmatprep.subr.mxu0 0.0
        %2473 = vmatpush2.msra.mxu0 0.0
        %2474 = vmatprep.subr.mxu0 0.0
        %2475 = vmatpush2.msra.mxu0 0.0
        %2476 = vmatprep.subr.mxu0 0.0
        %2477 = vmatpush2.msra.mxu0 0.0
        %2478 = vmatprep.subr.mxu0 0.0
        %2479 = vmatpush2.msra.mxu0 0.0
        %2480 = vmatprep.subr.mxu0 0.0
        %2481 = vmatpush2.msra.mxu0 0.0
        %2482 = vmatprep.subr.mxu0 0.0
        %2483 = vmatpush2.msra.mxu0 0.0
        %2484 = vmatprep.mubr.f32.mxu0 0.0
        %2485 = vmatmul.mubr.f32.gmra.mxu0 %v2418
        %v2486 = vpop.f32.mrf.mxu0
        %v2487 = vadd.f32 0.0, %v2486
        %v2488 = vpop.f32.mrf.mxu0
        %2489 = vdwg.mxu0
        %v2490 = vld [vmem:[%s793] sm:$0xff]
        %v2491 = vld [vmem:[%s793 + $0x8] sm:$0xff]
        %v2492 = vld [vmem:[%s793 + $0x10] sm:$0xff]
        %v2493 = vld [vmem:[%s793 + $0x18] sm:$0xff]
        %v2495 = vsel %vm1849, %v2268, 0
        %2497 = vmatprep.subr.mxu0 0.0
        %2498 = vmatpush1.msra.mxu0 0.0
        %2499 = vmatprep.subr.mxu0 0.0
        %2500 = vmatpush1.msra.mxu0 0.0
        %2501 = vmatprep.subr.mxu0 0.0
        %2502 = vmatpush1.msra.mxu0 0.0
        %2503 = vmatprep.subr.mxu0 0.0
        %2504 = vmatpush1.msra.mxu0 0.0
        %2505 = vmatprep.subr.mxu0 0.0
        %2506 = vmatpush1.msra.mxu0 0.0
        %2507 = vmatprep.subr.mxu0 0.0
        %2508 = vmatpush1.msra.mxu0 0.0
        %2509 = vmatprep.subr.mxu0 0.0
        %2510 = vmatpush1.msra.mxu0 0.0
        %2511 = vmatprep.subr.mxu0 0.0
        %2512 = vmatpush1.msra.mxu0 0.0
        %2513 = vmatprep.subr.mxu0 0.0
        %2514 = vmatpush1.msra.mxu0 0.0
        %2515 = vmatprep.subr.mxu0 0.0
        %2516 = vmatpush1.msra.mxu0 0.0
        %2517 = vmatprep.subr.mxu0 0.0
        %2518 = vmatpush1.msra.mxu0 0.0
        %2519 = vmatprep.subr.mxu0 0.0
        %2520 = vmatpush1.msra.mxu0 0.0
        %2521 = vmatprep.subr.mxu0 0.0
        %2522 = vmatpush1.msra.mxu0 0.0
        %2523 = vmatprep.subr.mxu0 0.0
        %2524 = vmatpush1.msra.mxu0 0.0
        %2525 = vmatprep.subr.mxu0 0.0
        %2526 = vmatpush1.msra.mxu0 0.0
        %2527 = vmatprep.subr.mxu0 0.0
        %2528 = vmatpush1.msra.mxu0 %v2490
        %2529 = vmatprep.subr.mxu0 0.0
        %2530 = vmatpush2.msra.mxu0 0.0
        %2531 = vmatprep.subr.mxu0 0.0
        %2532 = vmatpush2.msra.mxu0 0.0
        %2533 = vmatprep.subr.mxu0 0.0
        %2534 = vmatpush2.msra.mxu0 0.0
        %2535 = vmatprep.subr.mxu0 0.0
        %2536 = vmatpush2.msra.mxu0 0.0
        %2537 = vmatprep.subr.mxu0 0.0
        %2538 = vmatpush2.msra.mxu0 0.0
        %2539 = vmatprep.subr.mxu0 0.0
        %2540 = vmatpush2.msra.mxu0 0.0
        %2541 = vmatprep.subr.mxu0 0.0
        %2542 = vmatpush2.msra.mxu0 0.0
        %2543 = vmatprep.subr.mxu0 0.0
        %2544 = vmatpush2.msra.mxu0 0.0
        %2545 = vmatprep.subr.mxu0 0.0
        %2546 = vmatpush2.msra.mxu0 0.0
        %2547 = vmatprep.subr.mxu0 0.0
        %2548 = vmatpush2.msra.mxu0 0.0
        %2549 = vmatprep.subr.mxu0 0.0
        %2550 = vmatpush2.msra.mxu0 0.0
        %2551 = vmatprep.subr.mxu0 0.0
        %2552 = vmatpush2.msra.mxu0 0.0
        %2553 = vmatprep.subr.mxu0 0.0
        %2554 = vmatpush2.msra.mxu0 0.0
        %2555 = vmatprep.subr.mxu0 0.0
        %2556 = vmatpush2.msra.mxu0 0.0
        %2557 = vmatprep.subr.mxu0 0.0
        %2558 = vmatpush2.msra.mxu0 0.0
        %2559 = vmatprep.subr.mxu0 0.0
        %2560 = vmatpush2.msra.mxu0 0.0
        %2561 = vmatprep.mubr.f32.mxu0 0.0
        %2562 = vmatmul.mubr.f32.gmra.mxu0 %v2495
        %v2563 = vpop.f32.mrf.mxu0
        %v2564 = vadd.f32 0.0, %v2563
        %v2565 = vpop.f32.mrf.mxu0
        %2566 = vdwg.mxu0
        %v2568 = vsel %vm1849, %v2341, 0
        %2570 = vmatprep.subr.mxu0 0.0
        %2571 = vmatpush1.msra.mxu0 0.0
        %2572 = vmatprep.subr.mxu0 0.0
        %2573 = vmatpush1.msra.mxu0 0.0
        %2574 = vmatprep.subr.mxu0 0.0
        %2575 = vmatpush1.msra.mxu0 0.0
        %2576 = vmatprep.subr.mxu0 0.0
        %2577 = vmatpush1.msra.mxu0 0.0
        %2578 = vmatprep.subr.mxu0 0.0
        %2579 = vmatpush1.msra.mxu0 0.0
        %2580 = vmatprep.subr.mxu0 0.0
        %2581 = vmatpush1.msra.mxu0 0.0
        %2582 = vmatprep.subr.mxu0 0.0
        %2583 = vmatpush1.msra.mxu0 0.0
        %2584 = vmatprep.subr.mxu0 0.0
        %2585 = vmatpush1.msra.mxu0 0.0
        %2586 = vmatprep.subr.mxu0 0.0
        %2587 = vmatpush1.msra.mxu0 0.0
        %2588 = vmatprep.subr.mxu0 0.0
        %2589 = vmatpush1.msra.mxu0 0.0
        %2590 = vmatprep.subr.mxu0 0.0
        %2591 = vmatpush1.msra.mxu0 0.0
        %2592 = vmatprep.subr.mxu0 0.0
        %2593 = vmatpush1.msra.mxu0 0.0
        %2594 = vmatprep.subr.mxu0 0.0
        %2595 = vmatpush1.msra.mxu0 0.0
        %2596 = vmatprep.subr.mxu0 0.0
        %2597 = vmatpush1.msra.mxu0 0.0
        %2598 = vmatprep.subr.mxu0 0.0
        %2599 = vmatpush1.msra.mxu0 0.0
        %2600 = vmatprep.subr.mxu0 0.0
        %2601 = vmatpush1.msra.mxu0 %v2491
        %2602 = vmatprep.subr.mxu0 0.0
        %2603 = vmatpush2.msra.mxu0 0.0
        %2604 = vmatprep.subr.mxu0 0.0
        %2605 = vmatpush2.msra.mxu0 0.0
        %2606 = vmatprep.subr.mxu0 0.0
        %2607 = vmatpush2.msra.mxu0 0.0
        %2608 = vmatprep.subr.mxu0 0.0
        %2609 = vmatpush2.msra.mxu0 0.0
        %2610 = vmatprep.subr.mxu0 0.0
        %2611 = vmatpush2.msra.mxu0 0.0
        %2612 = vmatprep.subr.mxu0 0.0
        %2613 = vmatpush2.msra.mxu0 0.0
        %2614 = vmatprep.subr.mxu0 0.0
        %2615 = vmatpush2.msra.mxu0 0.0
        %2616 = vmatprep.subr.mxu0 0.0
        %2617 = vmatpush2.msra.mxu0 0.0
        %2618 = vmatprep.subr.mxu0 0.0
        %2619 = vmatpush2.msra.mxu0 0.0
        %2620 = vmatprep.subr.mxu0 0.0
        %2621 = vmatpush2.msra.mxu0 0.0
        %2622 = vmatprep.subr.mxu0 0.0
        %2623 = vmatpush2.msra.mxu0 0.0
        %2624 = vmatprep.subr.mxu0 0.0
        %2625 = vmatpush2.msra.mxu0 0.0
        %2626 = vmatprep.subr.mxu0 0.0
        %2627 = vmatpush2.msra.mxu0 0.0
        %2628 = vmatprep.subr.mxu0 0.0
        %2629 = vmatpush2.msra.mxu0 0.0
        %2630 = vmatprep.subr.mxu0 0.0
        %2631 = vmatpush2.msra.mxu0 0.0
        %2632 = vmatprep.subr.mxu0 0.0
        %2633 = vmatpush2.msra.mxu0 0.0
        %2634 = vmatprep.mubr.f32.mxu0 0.0
        %2635 = vmatmul.mubr.f32.gmra.mxu0 %v2568
        %v2636 = vpop.f32.mrf.mxu0
        %v2637 = vadd.f32 0.0, %v2636
        %v2638 = vpop.f32.mrf.mxu0
        %2639 = vdwg.mxu0
        %v2641 = vsel %vm1849, %v2414, 0
        %2643 = vmatprep.subr.mxu0 0.0
        %2644 = vmatpush1.msra.mxu0 0.0
        %2645 = vmatprep.subr.mxu0 0.0
        %2646 = vmatpush1.msra.mxu0 0.0
        %2647 = vmatprep.subr.mxu0 0.0
        %2648 = vmatpush1.msra.mxu0 0.0
        %2649 = vmatprep.subr.mxu0 0.0
        %2650 = vmatpush1.msra.mxu0 0.0
        %2651 = vmatprep.subr.mxu0 0.0
        %2652 = vmatpush1.msra.mxu0 0.0
        %2653 = vmatprep.subr.mxu0 0.0
        %2654 = vmatpush1.msra.mxu0 0.0
        %2655 = vmatprep.subr.mxu0 0.0
        %2656 = vmatpush1.msra.mxu0 0.0
        %2657 = vmatprep.subr.mxu0 0.0
        %2658 = vmatpush1.msra.mxu0 0.0
        %2659 = vmatprep.subr.mxu0 0.0
        %2660 = vmatpush1.msra.mxu0 0.0
        %2661 = vmatprep.subr.mxu0 0.0
        %2662 = vmatpush1.msra.mxu0 0.0
        %2663 = vmatprep.subr.mxu0 0.0
        %2664 = vmatpush1.msra.mxu0 0.0
        %2665 = vmatprep.subr.mxu0 0.0
        %2666 = vmatpush1.msra.mxu0 0.0
        %2667 = vmatprep.subr.mxu0 0.0
        %2668 = vmatpush1.msra.mxu0 0.0
        %2669 = vmatprep.subr.mxu0 0.0
        %2670 = vmatpush1.msra.mxu0 0.0
        %2671 = vmatprep.subr.mxu0 0.0
        %2672 = vmatpush1.msra.mxu0 0.0
        %2673 = vmatprep.subr.mxu0 0.0
        %2674 = vmatpush1.msra.mxu0 %v2492
        %2675 = vmatprep.subr.mxu0 0.0
        %2676 = vmatpush2.msra.mxu0 0.0
        %2677 = vmatprep.subr.mxu0 0.0
        %2678 = vmatpush2.msra.mxu0 0.0
        %2679 = vmatprep.subr.mxu0 0.0
        %2680 = vmatpush2.msra.mxu0 0.0
        %2681 = vmatprep.subr.mxu0 0.0
        %2682 = vmatpush2.msra.mxu0 0.0
        %2683 = vmatprep.subr.mxu0 0.0
        %2684 = vmatpush2.msra.mxu0 0.0
        %2685 = vmatprep.subr.mxu0 0.0
        %2686 = vmatpush2.msra.mxu0 0.0
        %2687 = vmatprep.subr.mxu0 0.0
        %2688 = vmatpush2.msra.mxu0 0.0
        %2689 = vmatprep.subr.mxu0 0.0
        %2690 = vmatpush2.msra.mxu0 0.0
        %2691 = vmatprep.subr.mxu0 0.0
        %2692 = vmatpush2.msra.mxu0 0.0
        %2693 = vmatprep.subr.mxu0 0.0
        %2694 = vmatpush2.msra.mxu0 0.0
        %2695 = vmatprep.subr.mxu0 0.0
        %2696 = vmatpush2.msra.mxu0 0.0
        %2697 = vmatprep.subr.mxu0 0.0
        %2698 = vmatpush2.msra.mxu0 0.0
        %2699 = vmatprep.subr.mxu0 0.0
        %2700 = vmatpush2.msra.mxu0 0.0
        %2701 = vmatprep.subr.mxu0 0.0
        %2702 = vmatpush2.msra.mxu0 0.0
        %2703 = vmatprep.subr.mxu0 0.0
        %2704 = vmatpush2.msra.mxu0 0.0
        %2705 = vmatprep.subr.mxu0 0.0
        %2706 = vmatpush2.msra.mxu0 0.0
        %2707 = vmatprep.mubr.f32.mxu0 0.0
        %2708 = vmatmul.mubr.f32.gmra.mxu0 %v2641
        %v2709 = vpop.f32.mrf.mxu0
        %v2710 = vadd.f32 0.0, %v2709
        %v2711 = vpop.f32.mrf.mxu0
        %2712 = vdwg.mxu0
        %v2714 = vsel %vm1849, %v2487, 0
        %2716 = vmatprep.subr.mxu0 0.0
        %2717 = vmatpush1.msra.mxu0 0.0
        %2718 = vmatprep.subr.mxu0 0.0
        %2719 = vmatpush1.msra.mxu0 0.0
        %2720 = vmatprep.subr.mxu0 0.0
        %2721 = vmatpush1.msra.mxu0 0.0
        %2722 = vmatprep.subr.mxu0 0.0
        %2723 = vmatpush1.msra.mxu0 0.0
        %2724 = vmatprep.subr.mxu0 0.0
        %2725 = vmatpush1.msra.mxu0 0.0
        %2726 = vmatprep.subr.mxu0 0.0
        %2727 = vmatpush1.msra.mxu0 0.0
        %2728 = vmatprep.subr.mxu0 0.0
        %2729 = vmatpush1.msra.mxu0 0.0
        %2730 = vmatprep.subr.mxu0 0.0
        %2731 = vmatpush1.msra.mxu0 0.0
        %2732 = vmatprep.subr.mxu0 0.0
        %2733 = vmatpush1.msra.mxu0 0.0
        %2734 = vmatprep.subr.mxu0 0.0
        %2735 = vmatpush1.msra.mxu0 0.0
        %2736 = vmatprep.subr.mxu0 0.0
        %2737 = vmatpush1.msra.mxu0 0.0
        %2738 = vmatprep.subr.mxu0 0.0
        %2739 = vmatpush1.msra.mxu0 0.0
        %2740 = vmatprep.subr.mxu0 0.0
        %2741 = vmatpush1.msra.mxu0 0.0
        %2742 = vmatprep.subr.mxu0 0.0
        %2743 = vmatpush1.msra.mxu0 0.0
        %2744 = vmatprep.subr.mxu0 0.0
        %2745 = vmatpush1.msra.mxu0 0.0
        %2746 = vmatprep.subr.mxu0 0.0
        %2747 = vmatpush1.msra.mxu0 %v2493
        %2748 = vmatprep.subr.mxu0 0.0
        %2749 = vmatpush2.msra.mxu0 0.0
        %2750 = vmatprep.subr.mxu0 0.0
        %2751 = vmatpush2.msra.mxu0 0.0
        %2752 = vmatprep.subr.mxu0 0.0
        %2753 = vmatpush2.msra.mxu0 0.0
        %2754 = vmatprep.subr.mxu0 0.0
        %2755 = vmatpush2.msra.mxu0 0.0
        %2756 = vmatprep.subr.mxu0 0.0
        %2757 = vmatpush2.msra.mxu0 0.0
        %2758 = vmatprep.subr.mxu0 0.0
        %2759 = vmatpush2.msra.mxu0 0.0
        %2760 = vmatprep.subr.mxu0 0.0
        %2761 = vmatpush2.msra.mxu0 0.0
        %2762 = vmatprep.subr.mxu0 0.0
        %2763 = vmatpush2.msra.mxu0 0.0
        %2764 = vmatprep.subr.mxu0 0.0
        %2765 = vmatpush2.msra.mxu0 0.0
        %2766 = vmatprep.subr.mxu0 0.0
        %2767 = vmatpush2.msra.mxu0 0.0
        %2768 = vmatprep.subr.mxu0 0.0
        %2769 = vmatpush2.msra.mxu0 0.0
        %2770 = vmatprep.subr.mxu0 0.0
        %2771 = vmatpush2.msra.mxu0 0.0
        %2772 = vmatprep.subr.mxu0 0.0
        %2773 = vmatpush2.msra.mxu0 0.0
        %2774 = vmatprep.subr.mxu0 0.0
        %2775 = vmatpush2.msra.mxu0 0.0
        %2776 = vmatprep.subr.mxu0 0.0
        %2777 = vmatpush2.msra.mxu0 0.0
        %2778 = vmatprep.subr.mxu0 0.0
        %2779 = vmatpush2.msra.mxu0 0.0
        %2780 = vmatprep.mubr.f32.mxu0 0.0
        %2781 = vmatmul.mubr.f32.gmra.mxu0 %v2714
        %v2782 = vpop.f32.mrf.mxu0
        %v2783 = vadd.f32 0.0, %v2782
        %v2784 = vpop.f32.mrf.mxu0
        %2785 = vdwg.mxu0
        %v2786 = vsel %vm835, %v2564, 0.0
        %v2787 = vsel %vm835, %v2637, 0.0
        %v2788 = vadd.f32 %v2786, %v2787
        %v2789 = vsel %vm835, %v2710, 0.0
        %v2790 = vadd.f32 %v2788, %v2789
        %v2791 = vsel %vm835, %v2783, 0.0
        %v2792 = vadd.f32 %v2790, %v2791
        %v2793 = vld [vmem:[%s796] sm:$0x1]
        %v2795 = vlaneseq
        %v2796 = vshrl.u32 %v2795, 7
        %v2797 = vsub.s32 0, %v2796
        %v2798 = vrot.slane %v2793, %v2797
        %v2800 = vadd.f32 %v2792, %v2798
        %v2801 = vadd.f32 %v832, %v2800
        %v2802 = vld [vmem:[%s805] sm:$0x1]
        %v2803 = vld [vmem:[%s808] sm:$0x1]
        %v2804 = vsel %vm835, %v2801, 0.0
        %2805 = vadd.xlane.f32.xlu0 %v2804
        %v2806 = vpop.xlane.xlu0 %2805
        %v2807 = vmul.f32 %v2806, %v839
        %v2808 = vsub.f32 %v2801, %v2807
        %v2809 = vmul.f32 %v2808, %v2808
        %v2810 = vsel %vm835, %v2809, 0.0
        %2811 = vadd.xlane.f32.xlu0 %v2810
        %v2812 = vpop.xlane.xlu0 %2811
        %v2813 = vmul.f32 %v2812, %v839
        %v2814 = vadd.f32 %v2813, 1e-05
        %v2815 = vrsqrt.pop %v2814
        %v2816 = vmul.f32 %v2808, %v2815
        %v2818 = vlaneseq
        %v2819 = vshrl.u32 %v2818, 7
        %v2820 = vsub.s32 0, %v2819
        %v2821 = vrot.slane %v2802, %v2820
        %v2823 = vmul.f32 %v2816, %v2821
        %v2825 = vlaneseq
        %v2826 = vshrl.u32 %v2825, 7
        %v2827 = vsub.s32 0, %v2826
        %v2828 = vrot.slane %v2803, %v2827
        %v2830 = vadd.f32 %v2823, %v2828
        %v2831 = vld [vmem:[%s813] sm:$0xff]
        %v2832 = vld [vmem:[%s813 + $0x8] sm:$0xff]
        %v2833 = vld [vmem:[%s813 + $0x10] sm:$0xff]
        %v2834 = vld [vmem:[%s813 + $0x18] sm:$0xff]
        %v2835 = vld [vmem:[%s816] sm:$0x1]
        %v2837 = vlaneseq
        %v2838 = vshrl.u32 %v2837, 7
        %v2839 = vsub.s32 0, %v2838
        %v2840 = vrot.slane %v2835, %v2839
        %v2843 = vsel %vm835, %v2830, 0
        %2845 = vmatprep.subr.mxu0 0.0
        %2846 = vmatpush1.msra.mxu0 0.0
        %2847 = vmatprep.subr.mxu0 0.0
        %2848 = vmatpush1.msra.mxu0 0.0
        %2849 = vmatprep.subr.mxu0 0.0
        %2850 = vmatpush1.msra.mxu0 0.0
        %2851 = vmatprep.subr.mxu0 0.0
        %2852 = vmatpush1.msra.mxu0 0.0
        %2853 = vmatprep.subr.mxu0 0.0
        %2854 = vmatpush1.msra.mxu0 0.0
        %2855 = vmatprep.subr.mxu0 0.0
        %2856 = vmatpush1.msra.mxu0 0.0
        %2857 = vmatprep.subr.mxu0 0.0
        %2858 = vmatpush1.msra.mxu0 0.0
        %2859 = vmatprep.subr.mxu0 0.0
        %2860 = vmatpush1.msra.mxu0 0.0
        %2861 = vmatprep.subr.mxu0 0.0
        %2862 = vmatpush1.msra.mxu0 0.0
        %2863 = vmatprep.subr.mxu0 0.0
        %2864 = vmatpush1.msra.mxu0 0.0
        %2865 = vmatprep.subr.mxu0 0.0
        %2866 = vmatpush1.msra.mxu0 0.0
        %2867 = vmatprep.subr.mxu0 0.0
        %2868 = vmatpush1.msra.mxu0 0.0
        %2869 = vmatprep.subr.mxu0 0.0
        %2870 = vmatpush1.msra.mxu0 %v2834
        %2871 = vmatprep.subr.mxu0 0.0
        %2872 = vmatpush1.msra.mxu0 %v2833
        %2873 = vmatprep.subr.mxu0 0.0
        %2874 = vmatpush1.msra.mxu0 %v2832
        %2875 = vmatprep.subr.mxu0 0.0
        %2876 = vmatpush1.msra.mxu0 %v2831
        %2877 = vmatprep.subr.mxu0 0.0
        %2878 = vmatpush2.msra.mxu0 0.0
        %2879 = vmatprep.subr.mxu0 0.0
        %2880 = vmatpush2.msra.mxu0 0.0
        %2881 = vmatprep.subr.mxu0 0.0
        %2882 = vmatpush2.msra.mxu0 0.0
        %2883 = vmatprep.subr.mxu0 0.0
        %2884 = vmatpush2.msra.mxu0 0.0
        %2885 = vmatprep.subr.mxu0 0.0
        %2886 = vmatpush2.msra.mxu0 0.0
        %2887 = vmatprep.subr.mxu0 0.0
        %2888 = vmatpush2.msra.mxu0 0.0
        %2889 = vmatprep.subr.mxu0 0.0
        %2890 = vmatpush2.msra.mxu0 0.0
        %2891 = vmatprep.subr.mxu0 0.0
        %2892 = vmatpush2.msra.mxu0 0.0
        %2893 = vmatprep.subr.mxu0 0.0
        %2894 = vmatpush2.msra.mxu0 0.0
        %2895 = vmatprep.subr.mxu0 0.0
        %2896 = vmatpush2.msra.mxu0 0.0
        %2897 = vmatprep.subr.mxu0 0.0
        %2898 = vmatpush2.msra.mxu0 0.0
        %2899 = vmatprep.subr.mxu0 0.0
        %2900 = vmatpush2.msra.mxu0 0.0
        %2901 = vmatprep.subr.mxu0 0.0
        %2902 = vmatpush2.msra.mxu0 0.0
        %2903 = vmatprep.subr.mxu0 0.0
        %2904 = vmatpush2.msra.mxu0 0.0
        %2905 = vmatprep.subr.mxu0 0.0
        %2906 = vmatpush2.msra.mxu0 0.0
        %2907 = vmatprep.subr.mxu0 0.0
        %2908 = vmatpush2.msra.mxu0 0.0
        %2909 = vmatprep.mubr.f32.mxu0 0.0
        %2910 = vmatmul.mubr.f32.gmra.mxu0 %v2843
        %v2911 = vpop.f32.mrf.mxu0
        %v2912 = vadd.f32 %v2840, %v2911
        %v2913 = vpop.f32.mrf.mxu0
        %2914 = vdwg.mxu0
        %v2915 = vmax.f32 %v2912, 0.0
        %v2916 = vld [vmem:[%s821] sm:$0xff]
        %v2917 = vld [vmem:[%s821 + $0x8] sm:$0xff]
        %v2918 = vld [vmem:[%s821 + $0x10] sm:$0xff]
        %v2919 = vld [vmem:[%s821 + $0x18] sm:$0xff]
        %v2920 = vld [vmem:[%s821 + $0x20] sm:$0xff]
        %v2921 = vld [vmem:[%s821 + $0x28] sm:$0xff]
        %v2922 = vld [vmem:[%s821 + $0x30] sm:$0xff]
        %v2923 = vld [vmem:[%s821 + $0x38] sm:$0xff]
        %v2924 = vld [vmem:[%s824] sm:$0x1]
        %v2926 = vlaneseq
        %v2927 = vshrl.u32 %v2926, 7
        %v2928 = vsub.s32 0, %v2927
        %v2929 = vrot.slane %v2924, %v2928
        %vm2931 = vcmask 523264
        %v2933 = vsel %vm2931, %v2915, 0
        %2935 = vmatprep.subr.mxu0 0.0
        %2936 = vmatpush1.msra.mxu0 0.0
        %2937 = vmatprep.subr.mxu0 0.0
        %2938 = vmatpush1.msra.mxu0 0.0
        %2939 = vmatprep.subr.mxu0 0.0
        %2940 = vmatpush1.msra.mxu0 0.0
        %2941 = vmatprep.subr.mxu0 0.0
        %2942 = vmatpush1.msra.mxu0 0.0
        %2943 = vmatprep.subr.mxu0 0.0
        %2944 = vmatpush1.msra.mxu0 0.0
        %2945 = vmatprep.subr.mxu0 0.0
        %2946 = vmatpush1.msra.mxu0 0.0
        %2947 = vmatprep.subr.mxu0 0.0
        %2948 = vmatpush1.msra.mxu0 0.0
        %2949 = vmatprep.subr.mxu0 0.0
        %2950 = vmatpush1.msra.mxu0 0.0
        %2951 = vmatprep.subr.mxu0 0.0
        %2952 = vmatpush1.msra.mxu0 %v2923
        %2953 = vmatprep.subr.mxu0 0.0
        %2954 = vmatpush1.msra.mxu0 %v2922
        %2955 = vmatprep.subr.mxu0 0.0
        %2956 = vmatpush1.msra.mxu0 %v2921
        %2957 = vmatprep.subr.mxu0 0.0
        %2958 = vmatpush1.msra.mxu0 %v2920
        %2959 = vmatprep.subr.mxu0 0.0
        %2960 = vmatpush1.msra.mxu0 %v2919
        %2961 = vmatprep.subr.mxu0 0.0
        %2962 = vmatpush1.msra.mxu0 %v2918
        %2963 = vmatprep.subr.mxu0 0.0
        %2964 = vmatpush1.msra.mxu0 %v2917
        %2965 = vmatprep.subr.mxu0 0.0
        %2966 = vmatpush1.msra.mxu0 %v2916
        %2967 = vmatprep.subr.mxu0 0.0
        %2968 = vmatpush2.msra.mxu0 0.0
        %2969 = vmatprep.subr.mxu0 0.0
        %2970 = vmatpush2.msra.mxu0 0.0
        %2971 = vmatprep.subr.mxu0 0.0
        %2972 = vmatpush2.msra.mxu0 0.0
        %2973 = vmatprep.subr.mxu0 0.0
        %2974 = vmatpush2.msra.mxu0 0.0
        %2975 = vmatprep.subr.mxu0 0.0
        %2976 = vmatpush2.msra.mxu0 0.0
        %2977 = vmatprep.subr.mxu0 0.0
        %2978 = vmatpush2.msra.mxu0 0.0
        %2979 = vmatprep.subr.mxu0 0.0
        %2980 = vmatpush2.msra.mxu0 0.0
        %2981 = vmatprep.subr.mxu0 0.0
        %2982 = vmatpush2.msra.mxu0 0.0
        %2983 = vmatprep.subr.mxu0 0.0
        %2984 = vmatpush2.msra.mxu0 0.0
        %2985 = vmatprep.subr.mxu0 0.0
        %2986 = vmatpush2.msra.mxu0 0.0
        %2987 = vmatprep.subr.mxu0 0.0
        %2988 = vmatpush2.msra.mxu0 0.0
        %2989 = vmatprep.subr.mxu0 0.0
        %2990 = vmatpush2.msra.mxu0 0.0
        %2991 = vmatprep.subr.mxu0 0.0
        %2992 = vmatpush2.msra.mxu0 0.0
        %2993 = vmatprep.subr.mxu0 0.0
        %2994 = vmatpush2.msra.mxu0 0.0
        %2995 = vmatprep.subr.mxu0 0.0
        %2996 = vmatpush2.msra.mxu0 0.0
        %2997 = vmatprep.subr.mxu0 0.0
        %2998 = vmatpush2.msra.mxu0 0.0
        %2999 = vmatprep.mubr.f32.mxu0 0.0
        %3000 = vmatmul.mubr.f32.gmra.mxu0 %v2933
        %v3001 = vpop.f32.mrf.mxu0
        %v3002 = vadd.f32 %v2929, %v3001
        %v3003 = vpop.f32.mrf.mxu0
        %3004 = vdwg.mxu0
        %v3005 = vadd.f32 %v2801, %v3002
        %3006 = vst.msk [vmem:[%s757] sm:$0xff] %vm835, %v3005
        %s3007 = sand.u32 %s493, 1
        %s3008 = scalar_lea.sflag [#allocation3], %s3007
        %s3009 = sand.u32 %s493, 1
        %s3010 = smul.addr %s3009, 8
        %s3011 = scalar_lea.vmem [#allocation2], %s3010
        // Predicated region
        $region93: #{tpu_custom_call.1} parent=87 // pred_check
          %p3012 = pneg %p503
        $region94: #{tpu_custom_call.1} parent=87 // pred_check_branch
          %3014 = sbr.rel (%p3012) target = $region96
        $region95: #{tpu_custom_call.1} parent=87 // pred_region
          %s3016 = ssub.s32 128, 128
          %3017 = vsyncadd %s3008, %s3016
          %s3018 = smul.addr %s35, 128
          %s3019 = scalar_lea.hbm %s17, %s3018
          %s3021 = sshll.u32 %s3011, 4
          %s3022 = int_to_ptr.vmem [resolvable:$true] %s3021
          %3024 = dma.vmem_to_hbm [thread:$0]  %s3022, 128, %s3019, %s3008
        $region96: #{tpu_custom_call.1} parent=87 // pred_fallthru
          _
      $region88: #{tpu_custom_call.1} parent=5 // pred_fallthru
        _
      %p3025 = scmp.le.s32.totalorder 2, %s26
      // Predicated region
      $region97: #{tpu_custom_call.1} parent=5 // pred_check
        %p3026 = pneg %p3025
      $region98: #{tpu_custom_call.1} parent=5 // pred_check_branch
        %3028 = sbr.rel (%p3026) target = $region100
      $region99: #{tpu_custom_call.1} parent=5 // pred_region
        %s3029 = ssub.s32 %s26, 2
        // Predicated region
        $region101: #{tpu_custom_call.1} parent=99 // pred_check
          %p3030 = pneg %p509
        $region102: #{tpu_custom_call.1} parent=99 // pred_check_branch
          %3032 = sbr.rel (%p3030) target = $region104
        $region103: #{tpu_custom_call.1} parent=99 // pred_region
          %s3033 = sand.u32 %s494, 1
          %s3034 = scalar_lea.sflag [#allocation3], %s3033
          %s3035 = sand.u32 %s494, 1
          %s3036 = smul.addr %s3035, 8
          %s3037 = scalar_lea.vmem [#allocation2], %s3036
          %3038 = dma.done %s3034, 128
        $region104: #{tpu_custom_call.1} parent=99 // pred_fallthru
          _
      $region100: #{tpu_custom_call.1} parent=5 // pred_fallthru
        _
    $region6: #{tpu_custom_call.1} parent=1 // loop_footer
      %s30 = sadd.s32 1, %s26
    $region7: #{tpu_custom_call.1} parent=1 // loop_footer_branch
      %25 = sbr.rel target = $region3
    $region8: #{tpu_custom_call.1} parent=1 // loop_exit
      _
    %3039 = vsyncpa [#allocation3], 1
    %s3040 = scalar_lea.sflag [#allocation3], 1
    %3041 = vsyncpa %s3040, 1

</llo_original>
